<compile_context>
chip_gen: v6e
topology: v6e:2x2x1
jax: 0.10.0
libtpu: 0.0.40
codegen_flags: <defaults>
</compile_context>

<pallas_src>
import jax
import jax.numpy as jnp
from jax import lax
from jax.experimental import pallas as pl
from jax.experimental.pallas import tpu as pltpu
import numpy as np

HIDDEN_DIM = 64
INPUT_DIM = 1
NUM_LAYERS = 2
OUTPUT_DIM = 1

HP = 128  # hidden dim padded to a full 128-lane vreg span


def lstm_kernel(xproj_ref, whh0_ref, w1_ref, b1_ref, fcw_ref, fcb_ref, out_ref):
    """xproj: (T, B, 4*HP) precomputed layer-0 input projection (bias folded in);
    whh0: (HP, 4*HP); w1: (2*HP, 4*HP) stacked [W_ih_l1; W_hh_l1]; b1: (1, 4*HP);
    fcw: (HP, O); fcb: (1, O); out: (B, O)."""
    T, B, G = xproj_ref.shape
    hp = G // 4

    # Hoist weight loads and the bias broadcast out of the time loop
    # (JAX does not CSE broadcasts; doing it per-step would repeat it T times).
    whh0 = whh0_ref[...]
    w1 = w1_ref[...]
    b1 = jnp.broadcast_to(b1_ref[...], (B, G))

    def gate_act(gates):
        # Each slice is a full 128-lane span (lane-aligned, no masked relayout).
        i = jax.nn.sigmoid(gates[:, 0 * hp:1 * hp])
        f = jax.nn.sigmoid(gates[:, 1 * hp:2 * hp])
        g = jnp.tanh(gates[:, 2 * hp:3 * hp])
        o = jax.nn.sigmoid(gates[:, 3 * hp:4 * hp])
        return i, f, g, o

    def step(t, carry):
        h0, c0, h1, c1 = carry
        # Layer 0: input projection precomputed -> only the recurrent matmul remains.
        gates0 = xproj_ref[t] + jnp.dot(h0, whh0, preferred_element_type=jnp.float32)
        i0, f0, g0, o0 = gate_act(gates0)
        c0n = f0 * c0 + i0 * g0
        h0n = o0 * jnp.tanh(c0n)
        # Layer 1: fused input + recurrent matmul, K = 2*HP = 256.
        inp1 = jnp.concatenate([h0n, h1], axis=1)                 # (B, 2*HP)
        gates1 = jnp.dot(inp1, w1, preferred_element_type=jnp.float32) + b1
        i1, f1, g1, o1 = gate_act(gates1)
        c1n = f1 * c1 + i1 * g1
        h1n = o1 * jnp.tanh(c1n)
        return (h0n, c0n, h1n, c1n)

    zeros = jnp.zeros((B, hp), jnp.float32)
    _, _, h1_last, _ = lax.fori_loop(0, T, step, (zeros, zeros, zeros, zeros),
                                     unroll=True)

    # fc on the last-timestep hidden state of the top layer (padded rows of fcw are 0).
    out_ref[...] = (jnp.dot(h1_last, fcw_ref[...], preferred_element_type=jnp.float32)
                    + fcb_ref[...]).astype(out_ref.dtype)


def _pad_gate_cols(w, hidden=HIDDEN_DIM, hp=HP):
    """PyTorch (4H, in) weight -> transposed (in, 4*HP) with each gate occupying its own
    128-lane span (i, f, g, o order); padded columns are zero."""
    wt = w.T                                  # (in, 4H)
    in_dim = wt.shape[0]
    out = jnp.zeros((in_dim, 4 * hp), jnp.float32)
    for g in range(4):
        out = out.at[:, g * hp:g * hp + hidden].set(wt[:, g * hidden:(g + 1) * hidden])
    return out


def _pad_gate_bias(b, hidden=HIDDEN_DIM, hp=HP):
    out = jnp.zeros((4 * hp,), jnp.float32)
    for g in range(4):
        out = out.at[g * hp:g * hp + hidden].set(b[g * hidden:(g + 1) * hidden])
    return out.reshape(1, 4 * hp)


def init_params(key, input_dim=INPUT_DIM, hidden_dim=HIDDEN_DIM, output_dim=OUTPUT_DIM):
    """Deterministic init mirroring PyTorch's U(-1/sqrt(H), 1/sqrt(H)) default."""
    H = hidden_dim
    k = 1.0 / np.sqrt(H)
    names_shapes = [
        ("w_ih_l0", (4 * H, input_dim)),
        ("w_hh_l0", (4 * H, H)),
        ("b_ih_l0", (4 * H,)),
        ("b_hh_l0", (4 * H,)),
        ("w_ih_l1", (4 * H, H)),
        ("w_hh_l1", (4 * H, H)),
        ("b_ih_l1", (4 * H,)),
        ("b_hh_l1", (4 * H,)),
        ("fc_w", (output_dim, H)),
        ("fc_b", (output_dim,)),
    ]
    params = {}
    keys = jax.random.split(key, len(names_shapes))
    for (name, shape), kk in zip(names_shapes, keys):
        params[name] = jax.random.uniform(kk, shape, jnp.float32, minval=-k, maxval=k)
    return params


def lstm_forward(x, params):
    """x: (B, T, D_in) float32, batch_first like the PyTorch module."""
    B, T, D = x.shape
    H = HIDDEN_DIM

    x_tm = jnp.transpose(x, (1, 0, 2))                            # (T, B, D) time-major

    # Layer 0: precompute input projection once (removes a K=1 matmul from every step).
    wih0_p = _pad_gate_cols(params["w_ih_l0"])                    # (D, 4*HP)
    b0_p = _pad_gate_bias(params["b_ih_l0"] + params["b_hh_l0"])  # (1, 4*HP)
    xproj = jnp.einsum("tbd,dg->tbg", x_tm, wih0_p) + b0_p        # (T, B, 4*HP)

    # Layer 0 recurrent weight, rows padded H -> HP.
    whh0_cols = _pad_gate_cols(params["w_hh_l0"])                 # (H, 4*HP)
    whh0_p = jnp.zeros((HP, 4 * HP), jnp.float32).at[:H].set(whh0_cols)

    # Layer 1: stack [W_ih_l1; W_hh_l1] so one K=2*HP matmul does both projections.
    wih1_cols = _pad_gate_cols(params["w_ih_l1"])                 # (H, 4*HP)
    whh1_cols = _pad_gate_cols(params["w_hh_l1"])                 # (H, 4*HP)
    w1_p = jnp.zeros((2 * HP, 4 * HP), jnp.float32)
    w1_p = w1_p.at[:H].set(wih1_cols).at[HP:HP + H].set(whh1_cols)
    b1_p = _pad_gate_bias(params["b_ih_l1"] + params["b_hh_l1"])

    fcw_p = jnp.zeros((HP, OUTPUT_DIM), jnp.float32).at[:H].set(params["fc_w"].T)
    fcb = params["fc_b"].reshape(1, OUTPUT_DIM)

    vmem = pl.BlockSpec(memory_space=pltpu.MemorySpace.VMEM)
    out = pl.pallas_call(
        lstm_kernel,
        out_shape=jax.ShapeDtypeStruct((B, OUTPUT_DIM), jnp.float32),
        in_specs=[vmem] * 6,
        out_specs=vmem,
    )(xproj, whh0_p, w1_p, b1_p, fcw_p, fcb)
    return out


def lstm_forward_ref(x, params):
    """Pure-JAX reference of the PyTorch module (for correctness check)."""
    B, T, D = x.shape
    H = HIDDEN_DIM

    def cell(x_t, h, c, wih, whh, bih, bhh):
        gates = x_t @ wih.T + h @ whh.T + bih + bhh
        i = jax.nn.sigmoid(gates[:, 0 * H:1 * H])
        f = jax.nn.sigmoid(gates[:, 1 * H:2 * H])
        g = jnp.tanh(gates[:, 2 * H:3 * H])
        o = jax.nn.sigmoid(gates[:, 3 * H:4 * H])
        c = f * c + i * g
        h = o * jnp.tanh(c)
        return h, c

    h0 = jnp.zeros((B, H), jnp.float32)
    c0 = jnp.zeros((B, H), jnp.float32)
    h1 = jnp.zeros((B, H), jnp.float32)
    c1 = jnp.zeros((B, H), jnp.float32)
    for t in range(T):
        h0, c0 = cell(x[:, t, :], h0, c0,
                      params["w_ih_l0"], params["w_hh_l0"],
                      params["b_ih_l0"], params["b_hh_l0"])
        h1, c1 = cell(h0, h1, c1,
                      params["w_ih_l1"], params["w_hh_l1"],
                      params["b_ih_l1"], params["b_hh_l1"])
    return h1 @ params["fc_w"].T + params["fc_b"]


if __name__ == "__main__":
    key = jax.random.PRNGKey(0)
    k_param, k_x = jax.random.split(key)

    B, T = 8, 8
    params = init_params(k_param)
    x = jax.random.normal(k_x, (B, T, INPUT_DIM), jnp.float32)

    out = lstm_forward(x, params)
    out = jax.block_until_ready(out)

    ref = lstm_forward_ref(x, params)
    np.testing.assert_allclose(np.asarray(out), np.asarray(ref), rtol=1e-5, atol=1e-5)

    print("KERNEL_OK")
</pallas_src>

<mosaic_0001>
module attributes {stable_mosaic.version = 11 : i64} {
  func.func @lstm_kernel(%arg0: memref<8x8x512xf32, #tpu.memory_space<vmem>>, %arg1: memref<128x512xf32, #tpu.memory_space<vmem>>, %arg2: memref<256x512xf32, #tpu.memory_space<vmem>>, %arg3: memref<1x512xf32, #tpu.memory_space<vmem>>, %arg4: memref<128x1xf32, #tpu.memory_space<vmem>>, %arg5: memref<1x1xf32, #tpu.memory_space<vmem>>, %arg6: memref<8x1xf32, #tpu.memory_space<vmem>>) attributes {dimension_semantics = [], scalar_prefetch = 0 : i64, scratch_operands = 0 : i64, tpu.core_type = #tpu.core_type<tc>} {
    %c0 = arith.constant 0 : index
    %c0_0 = arith.constant 0 : index
    %0 = vector.load %arg1[%c0, %c0_0] : memref<128x512xf32, #tpu.memory_space<vmem>>, vector<128x512xf32>
    %c0_1 = arith.constant 0 : index
    %c0_2 = arith.constant 0 : index
    %1 = vector.load %arg2[%c0_1, %c0_2] : memref<256x512xf32, #tpu.memory_space<vmem>>, vector<256x512xf32>
    %c0_3 = arith.constant 0 : index
    %c0_4 = arith.constant 0 : index
    %2 = vector.load %arg3[%c0_3, %c0_4] : memref<1x512xf32, #tpu.memory_space<vmem>>, vector<1x512xf32>
    %3 = vector.shape_cast %2 : vector<1x512xf32> to vector<1x512xf32>
    %4 = vector.broadcast %3 : vector<1x512xf32> to vector<8x512xf32>
    %cst = arith.constant 0.000000e+00 : f32
    %5 = vector.broadcast %cst : f32 to vector<8x128xf32>
    %c0_i32 = arith.constant 0 : i32
    %6 = arith.index_cast %c0_i32 : i32 to index
    %c0_5 = arith.constant 0 : index
    %c0_6 = arith.constant 0 : index
    %7 = vector.load %arg0[%6, %c0_5, %c0_6] : memref<8x8x512xf32, #tpu.memory_space<vmem>>, vector<1x8x512xf32>
    %8 = vector.shape_cast %7 : vector<1x8x512xf32> to vector<8x512xf32>
    %cst_7 = arith.constant dense<0.000000e+00> : vector<8x512xf32>
    %9 = tpu.matmul %5, %0, %cst_7 {dimension_numbers = #tpu.dot_dimension_numbers<[1], [0], [0], [1], [0, 0, 1, 1], [], []>} : vector<8x128xf32>, vector<128x512xf32>, vector<8x512xf32> -> vector<8x512xf32>
    %10 = arith.addf %8, %9 : vector<8x512xf32>
    %11 = vector.extract_strided_slice %10 {offsets = [0, 0], sizes = [8, 128], strides = [1, 1]} : vector<8x512xf32> to vector<8x128xf32>
    %12 = arith.negf %11 : vector<8x128xf32>
    %13 = math.exp %12 : vector<8x128xf32>
    %cst_8 = arith.constant 1.000000e+00 : f32
    %14 = vector.broadcast %cst_8 : f32 to vector<8x128xf32>
    %15 = arith.addf %14, %13 : vector<8x128xf32>
    %16 = arith.divf %14, %15 : vector<8x128xf32>
    %17 = vector.extract_strided_slice %10 {offsets = [0, 128], sizes = [8, 128], strides = [1, 1]} : vector<8x512xf32> to vector<8x128xf32>
    %18 = arith.negf %17 : vector<8x128xf32>
    %19 = math.exp %18 : vector<8x128xf32>
    %cst_9 = arith.constant 1.000000e+00 : f32
    %20 = vector.broadcast %cst_9 : f32 to vector<8x128xf32>
    %21 = arith.addf %20, %19 : vector<8x128xf32>
    %22 = arith.divf %20, %21 : vector<8x128xf32>
    %23 = vector.extract_strided_slice %10 {offsets = [0, 256], sizes = [8, 128], strides = [1, 1]} : vector<8x512xf32> to vector<8x128xf32>
    %24 = math.tanh %23 : vector<8x128xf32>
    %25 = vector.extract_strided_slice %10 {offsets = [0, 384], sizes = [8, 128], strides = [1, 1]} : vector<8x512xf32> to vector<8x128xf32>
    %26 = arith.negf %25 : vector<8x128xf32>
    %27 = math.exp %26 : vector<8x128xf32>
    %cst_10 = arith.constant 1.000000e+00 : f32
    %28 = vector.broadcast %cst_10 : f32 to vector<8x128xf32>
    %29 = arith.addf %28, %27 : vector<8x128xf32>
    %30 = arith.divf %28, %29 : vector<8x128xf32>
    %31 = arith.mulf %22, %5 : vector<8x128xf32>
    %32 = arith.mulf %16, %24 : vector<8x128xf32>
    %33 = arith.addf %31, %32 : vector<8x128xf32>
    %34 = math.tanh %33 : vector<8x128xf32>
    %35 = arith.mulf %30, %34 : vector<8x128xf32>
    %36 = tpu.concatenate %35, %5 in 1 : vector<8x128xf32>, vector<8x128xf32> -> vector<8x256xf32>
    %cst_11 = arith.constant dense<0.000000e+00> : vector<8x512xf32>
    %37 = tpu.matmul %36, %1, %cst_11 {dimension_numbers = #tpu.dot_dimension_numbers<[1], [0], [0], [1], [0, 0, 1, 1], [], []>} : vector<8x256xf32>, vector<256x512xf32>, vector<8x512xf32> -> vector<8x512xf32>
    %38 = arith.addf %37, %4 : vector<8x512xf32>
    %39 = vector.extract_strided_slice %38 {offsets = [0, 0], sizes = [8, 128], strides = [1, 1]} : vector<8x512xf32> to vector<8x128xf32>
    %40 = arith.negf %39 : vector<8x128xf32>
    %41 = math.exp %40 : vector<8x128xf32>
    %cst_12 = arith.constant 1.000000e+00 : f32
    %42 = vector.broadcast %cst_12 : f32 to vector<8x128xf32>
    %43 = arith.addf %42, %41 : vector<8x128xf32>
    %44 = arith.divf %42, %43 : vector<8x128xf32>
    %45 = vector.extract_strided_slice %38 {offsets = [0, 128], sizes = [8, 128], strides = [1, 1]} : vector<8x512xf32> to vector<8x128xf32>
    %46 = arith.negf %45 : vector<8x128xf32>
    %47 = math.exp %46 : vector<8x128xf32>
    %cst_13 = arith.constant 1.000000e+00 : f32
    %48 = vector.broadcast %cst_13 : f32 to vector<8x128xf32>
    %49 = arith.addf %48, %47 : vector<8x128xf32>
    %50 = arith.divf %48, %49 : vector<8x128xf32>
    %51 = vector.extract_strided_slice %38 {offsets = [0, 256], sizes = [8, 128], strides = [1, 1]} : vector<8x512xf32> to vector<8x128xf32>
    %52 = math.tanh %51 : vector<8x128xf32>
    %53 = vector.extract_strided_slice %38 {offsets = [0, 384], sizes = [8, 128], strides = [1, 1]} : vector<8x512xf32> to vector<8x128xf32>
    %54 = arith.negf %53 : vector<8x128xf32>
    %55 = math.exp %54 : vector<8x128xf32>
    %cst_14 = arith.constant 1.000000e+00 : f32
    %56 = vector.broadcast %cst_14 : f32 to vector<8x128xf32>
    %57 = arith.addf %56, %55 : vector<8x128xf32>
    %58 = arith.divf %56, %57 : vector<8x128xf32>
    %59 = arith.mulf %50, %5 : vector<8x128xf32>
    %60 = arith.mulf %44, %52 : vector<8x128xf32>
    %61 = arith.addf %59, %60 : vector<8x128xf32>
    %62 = math.tanh %61 : vector<8x128xf32>
    %63 = arith.mulf %58, %62 : vector<8x128xf32>
    %c1_i32 = arith.constant 1 : i32
    %64 = arith.index_cast %c1_i32 : i32 to index
    %c0_15 = arith.constant 0 : index
    %c0_16 = arith.constant 0 : index
    %65 = vector.load %arg0[%64, %c0_15, %c0_16] : memref<8x8x512xf32, #tpu.memory_space<vmem>>, vector<1x8x512xf32>
    %66 = vector.shape_cast %65 : vector<1x8x512xf32> to vector<8x512xf32>
    %cst_17 = arith.constant dense<0.000000e+00> : vector<8x512xf32>
    %67 = tpu.matmul %35, %0, %cst_17 {dimension_numbers = #tpu.dot_dimension_numbers<[1], [0], [0], [1], [0, 0, 1, 1], [], []>} : vector<8x128xf32>, vector<128x512xf32>, vector<8x512xf32> -> vector<8x512xf32>
    %68 = arith.addf %66, %67 : vector<8x512xf32>
    %69 = vector.extract_strided_slice %68 {offsets = [0, 0], sizes = [8, 128], strides = [1, 1]} : vector<8x512xf32> to vector<8x128xf32>
    %70 = arith.negf %69 : vector<8x128xf32>
    %71 = math.exp %70 : vector<8x128xf32>
    %cst_18 = arith.constant 1.000000e+00 : f32
    %72 = vector.broadcast %cst_18 : f32 to vector<8x128xf32>
    %73 = arith.addf %72, %71 : vector<8x128xf32>
    %74 = arith.divf %72, %73 : vector<8x128xf32>
    %75 = vector.extract_strided_slice %68 {offsets = [0, 128], sizes = [8, 128], strides = [1, 1]} : vector<8x512xf32> to vector<8x128xf32>
    %76 = arith.negf %75 : vector<8x128xf32>
    %77 = math.exp %76 : vector<8x128xf32>
    %cst_19 = arith.constant 1.000000e+00 : f32
    %78 = vector.broadcast %cst_19 : f32 to vector<8x128xf32>
    %79 = arith.addf %78, %77 : vector<8x128xf32>
    %80 = arith.divf %78, %79 : vector<8x128xf32>
    %81 = vector.extract_strided_slice %68 {offsets = [0, 256], sizes = [8, 128], strides = [1, 1]} : vector<8x512xf32> to vector<8x128xf32>
    %82 = math.tanh %81 : vector<8x128xf32>
    %83 = vector.extract_strided_slice %68 {offsets = [0, 384], sizes = [8, 128], strides = [1, 1]} : vector<8x512xf32> to vector<8x128xf32>
    %84 = arith.negf %83 : vector<8x128xf32>
    %85 = math.exp %84 : vector<8x128xf32>
    %cst_20 = arith.constant 1.000000e+00 : f32
    %86 = vector.broadcast %cst_20 : f32 to vector<8x128xf32>
    %87 = arith.addf %86, %85 : vector<8x128xf32>
    %88 = arith.divf %86, %87 : vector<8x128xf32>
    %89 = arith.mulf %80, %33 : vector<8x128xf32>
    %90 = arith.mulf %74, %82 : vector<8x128xf32>
    %91 = arith.addf %89, %90 : vector<8x128xf32>
    %92 = math.tanh %91 : vector<8x128xf32>
    %93 = arith.mulf %88, %92 : vector<8x128xf32>
    %94 = tpu.concatenate %93, %63 in 1 : vector<8x128xf32>, vector<8x128xf32> -> vector<8x256xf32>
    %cst_21 = arith.constant dense<0.000000e+00> : vector<8x512xf32>
    %95 = tpu.matmul %94, %1, %cst_21 {dimension_numbers = #tpu.dot_dimension_numbers<[1], [0], [0], [1], [0, 0, 1, 1], [], []>} : vector<8x256xf32>, vector<256x512xf32>, vector<8x512xf32> -> vector<8x512xf32>
    %96 = arith.addf %95, %4 : vector<8x512xf32>
    %97 = vector.extract_strided_slice %96 {offsets = [0, 0], sizes = [8, 128], strides = [1, 1]} : vector<8x512xf32> to vector<8x128xf32>
    %98 = arith.negf %97 : vector<8x128xf32>
    %99 = math.exp %98 : vector<8x128xf32>
    %cst_22 = arith.constant 1.000000e+00 : f32
    %100 = vector.broadcast %cst_22 : f32 to vector<8x128xf32>
    %101 = arith.addf %100, %99 : vector<8x128xf32>
    %102 = arith.divf %100, %101 : vector<8x128xf32>
    %103 = vector.extract_strided_slice %96 {offsets = [0, 128], sizes = [8, 128], strides = [1, 1]} : vector<8x512xf32> to vector<8x128xf32>
    %104 = arith.negf %103 : vector<8x128xf32>
    %105 = math.exp %104 : vector<8x128xf32>
    %cst_23 = arith.constant 1.000000e+00 : f32
    %106 = vector.broadcast %cst_23 : f32 to vector<8x128xf32>
    %107 = arith.addf %106, %105 : vector<8x128xf32>
    %108 = arith.divf %106, %107 : vector<8x128xf32>
    %109 = vector.extract_strided_slice %96 {offsets = [0, 256], sizes = [8, 128], strides = [1, 1]} : vector<8x512xf32> to vector<8x128xf32>
    %110 = math.tanh %109 : vector<8x128xf32>
    %111 = vector.extract_strided_slice %96 {offsets = [0, 384], sizes = [8, 128], strides = [1, 1]} : vector<8x512xf32> to vector<8x128xf32>
    %112 = arith.negf %111 : vector<8x128xf32>
    %113 = math.exp %112 : vector<8x128xf32>
    %cst_24 = arith.constant 1.000000e+00 : f32
    %114 = vector.broadcast %cst_24 : f32 to vector<8x128xf32>
    %115 = arith.addf %114, %113 : vector<8x128xf32>
    %116 = arith.divf %114, %115 : vector<8x128xf32>
    %117 = arith.mulf %108, %61 : vector<8x128xf32>
    %118 = arith.mulf %102, %110 : vector<8x128xf32>
    %119 = arith.addf %117, %118 : vector<8x128xf32>
    %120 = math.tanh %119 : vector<8x128xf32>
    %121 = arith.mulf %116, %120 : vector<8x128xf32>
    %c2_i32 = arith.constant 2 : i32
    %122 = arith.index_cast %c2_i32 : i32 to index
    %c0_25 = arith.constant 0 : index
    %c0_26 = arith.constant 0 : index
    %123 = vector.load %arg0[%122, %c0_25, %c0_26] : memref<8x8x512xf32, #tpu.memory_space<vmem>>, vector<1x8x512xf32>
    %124 = vector.shape_cast %123 : vector<1x8x512xf32> to vector<8x512xf32>
    %cst_27 = arith.constant dense<0.000000e+00> : vector<8x512xf32>
    %125 = tpu.matmul %93, %0, %cst_27 {dimension_numbers = #tpu.dot_dimension_numbers<[1], [0], [0], [1], [0, 0, 1, 1], [], []>} : vector<8x128xf32>, vector<128x512xf32>, vector<8x512xf32> -> vector<8x512xf32>
    %126 = arith.addf %124, %125 : vector<8x512xf32>
    %127 = vector.extract_strided_slice %126 {offsets = [0, 0], sizes = [8, 128], strides = [1, 1]} : vector<8x512xf32> to vector<8x128xf32>
    %128 = arith.negf %127 : vector<8x128xf32>
    %129 = math.exp %128 : vector<8x128xf32>
    %cst_28 = arith.constant 1.000000e+00 : f32
    %130 = vector.broadcast %cst_28 : f32 to vector<8x128xf32>
    %131 = arith.addf %130, %129 : vector<8x128xf32>
    %132 = arith.divf %130, %131 : vector<8x128xf32>
    %133 = vector.extract_strided_slice %126 {offsets = [0, 128], sizes = [8, 128], strides = [1, 1]} : vector<8x512xf32> to vector<8x128xf32>
    %134 = arith.negf %133 : vector<8x128xf32>
    %135 = math.exp %134 : vector<8x128xf32>
    %cst_29 = arith.constant 1.000000e+00 : f32
    %136 = vector.broadcast %cst_29 : f32 to vector<8x128xf32>
    %137 = arith.addf %136, %135 : vector<8x128xf32>
    %138 = arith.divf %136, %137 : vector<8x128xf32>
    %139 = vector.extract_strided_slice %126 {offsets = [0, 256], sizes = [8, 128], strides = [1, 1]} : vector<8x512xf32> to vector<8x128xf32>
    %140 = math.tanh %139 : vector<8x128xf32>
    %141 = vector.extract_strided_slice %126 {offsets = [0, 384], sizes = [8, 128], strides = [1, 1]} : vector<8x512xf32> to vector<8x128xf32>
    %142 = arith.negf %141 : vector<8x128xf32>
    %143 = math.exp %142 : vector<8x128xf32>
    %cst_30 = arith.constant 1.000000e+00 : f32
    %144 = vector.broadcast %cst_30 : f32 to vector<8x128xf32>
    %145 = arith.addf %144, %143 : vector<8x128xf32>
    %146 = arith.divf %144, %145 : vector<8x128xf32>
    %147 = arith.mulf %138, %91 : vector<8x128xf32>
    %148 = arith.mulf %132, %140 : vector<8x128xf32>
    %149 = arith.addf %147, %148 : vector<8x128xf32>
    %150 = math.tanh %149 : vector<8x128xf32>
    %151 = arith.mulf %146, %150 : vector<8x128xf32>
    %152 = tpu.concatenate %151, %121 in 1 : vector<8x128xf32>, vector<8x128xf32> -> vector<8x256xf32>
    %cst_31 = arith.constant dense<0.000000e+00> : vector<8x512xf32>
    %153 = tpu.matmul %152, %1, %cst_31 {dimension_numbers = #tpu.dot_dimension_numbers<[1], [0], [0], [1], [0, 0, 1, 1], [], []>} : vector<8x256xf32>, vector<256x512xf32>, vector<8x512xf32> -> vector<8x512xf32>
    %154 = arith.addf %153, %4 : vector<8x512xf32>
    %155 = vector.extract_strided_slice %154 {offsets = [0, 0], sizes = [8, 128], strides = [1, 1]} : vector<8x512xf32> to vector<8x128xf32>
    %156 = arith.negf %155 : vector<8x128xf32>
    %157 = math.exp %156 : vector<8x128xf32>
    %cst_32 = arith.constant 1.000000e+00 : f32
    %158 = vector.broadcast %cst_32 : f32 to vector<8x128xf32>
    %159 = arith.addf %158, %157 : vector<8x128xf32>
    %160 = arith.divf %158, %159 : vector<8x128xf32>
    %161 = vector.extract_strided_slice %154 {offsets = [0, 128], sizes = [8, 128], strides = [1, 1]} : vector<8x512xf32> to vector<8x128xf32>
    %162 = arith.negf %161 : vector<8x128xf32>
    %163 = math.exp %162 : vector<8x128xf32>
    %cst_33 = arith.constant 1.000000e+00 : f32
    %164 = vector.broadcast %cst_33 : f32 to vector<8x128xf32>
    %165 = arith.addf %164, %163 : vector<8x128xf32>
    %166 = arith.divf %164, %165 : vector<8x128xf32>
    %167 = vector.extract_strided_slice %154 {offsets = [0, 256], sizes = [8, 128], strides = [1, 1]} : vector<8x512xf32> to vector<8x128xf32>
    %168 = math.tanh %167 : vector<8x128xf32>
    %169 = vector.extract_strided_slice %154 {offsets = [0, 384], sizes = [8, 128], strides = [1, 1]} : vector<8x512xf32> to vector<8x128xf32>
    %170 = arith.negf %169 : vector<8x128xf32>
    %171 = math.exp %170 : vector<8x128xf32>
    %cst_34 = arith.constant 1.000000e+00 : f32
    %172 = vector.broadcast %cst_34 : f32 to vector<8x128xf32>
    %173 = arith.addf %172, %171 : vector<8x128xf32>
    %174 = arith.divf %172, %173 : vector<8x128xf32>
    %175 = arith.mulf %166, %119 : vector<8x128xf32>
    %176 = arith.mulf %160, %168 : vector<8x128xf32>
    %177 = arith.addf %175, %176 : vector<8x128xf32>
    %178 = math.tanh %177 : vector<8x128xf32>
    %179 = arith.mulf %174, %178 : vector<8x128xf32>
    %c3_i32 = arith.constant 3 : i32
    %180 = arith.index_cast %c3_i32 : i32 to index
    %c0_35 = arith.constant 0 : index
    %c0_36 = arith.constant 0 : index
    %181 = vector.load %arg0[%180, %c0_35, %c0_36] : memref<8x8x512xf32, #tpu.memory_space<vmem>>, vector<1x8x512xf32>
    %182 = vector.shape_cast %181 : vector<1x8x512xf32> to vector<8x512xf32>
    %cst_37 = arith.constant dense<0.000000e+00> : vector<8x512xf32>
    %183 = tpu.matmul %151, %0, %cst_37 {dimension_numbers = #tpu.dot_dimension_numbers<[1], [0], [0], [1], [0, 0, 1, 1], [], []>} : vector<8x128xf32>, vector<128x512xf32>, vector<8x512xf32> -> vector<8x512xf32>
    %184 = arith.addf %182, %183 : vector<8x512xf32>
    %185 = vector.extract_strided_slice %184 {offsets = [0, 0], sizes = [8, 128], strides = [1, 1]} : vector<8x512xf32> to vector<8x128xf32>
    %186 = arith.negf %185 : vector<8x128xf32>
    %187 = math.exp %186 : vector<8x128xf32>
    %cst_38 = arith.constant 1.000000e+00 : f32
    %188 = vector.broadcast %cst_38 : f32 to vector<8x128xf32>
    %189 = arith.addf %188, %187 : vector<8x128xf32>
    %190 = arith.divf %188, %189 : vector<8x128xf32>
    %191 = vector.extract_strided_slice %184 {offsets = [0, 128], sizes = [8, 128], strides = [1, 1]} : vector<8x512xf32> to vector<8x128xf32>
    %192 = arith.negf %191 : vector<8x128xf32>
    %193 = math.exp %192 : vector<8x128xf32>
    %cst_39 = arith.constant 1.000000e+00 : f32
    %194 = vector.broadcast %cst_39 : f32 to vector<8x128xf32>
    %195 = arith.addf %194, %193 : vector<8x128xf32>
    %196 = arith.divf %194, %195 : vector<8x128xf32>
    %197 = vector.extract_strided_slice %184 {offsets = [0, 256], sizes = [8, 128], strides = [1, 1]} : vector<8x512xf32> to vector<8x128xf32>
    %198 = math.tanh %197 : vector<8x128xf32>
    %199 = vector.extract_strided_slice %184 {offsets = [0, 384], sizes = [8, 128], strides = [1, 1]} : vector<8x512xf32> to vector<8x128xf32>
    %200 = arith.negf %199 : vector<8x128xf32>
    %201 = math.exp %200 : vector<8x128xf32>
    %cst_40 = arith.constant 1.000000e+00 : f32
    %202 = vector.broadcast %cst_40 : f32 to vector<8x128xf32>
    %203 = arith.addf %202, %201 : vector<8x128xf32>
    %204 = arith.divf %202, %203 : vector<8x128xf32>
    %205 = arith.mulf %196, %149 : vector<8x128xf32>
    %206 = arith.mulf %190, %198 : vector<8x128xf32>
    %207 = arith.addf %205, %206 : vector<8x128xf32>
    %208 = math.tanh %207 : vector<8x128xf32>
    %209 = arith.mulf %204, %208 : vector<8x128xf32>
    %210 = tpu.concatenate %209, %179 in 1 : vector<8x128xf32>, vector<8x128xf32> -> vector<8x256xf32>
    %cst_41 = arith.constant dense<0.000000e+00> : vector<8x512xf32>
    %211 = tpu.matmul %210, %1, %cst_41 {dimension_numbers = #tpu.dot_dimension_numbers<[1], [0], [0], [1], [0, 0, 1, 1], [], []>} : vector<8x256xf32>, vector<256x512xf32>, vector<8x512xf32> -> vector<8x512xf32>
    %212 = arith.addf %211, %4 : vector<8x512xf32>
    %213 = vector.extract_strided_slice %212 {offsets = [0, 0], sizes = [8, 128], strides = [1, 1]} : vector<8x512xf32> to vector<8x128xf32>
    %214 = arith.negf %213 : vector<8x128xf32>
    %215 = math.exp %214 : vector<8x128xf32>
    %cst_42 = arith.constant 1.000000e+00 : f32
    %216 = vector.broadcast %cst_42 : f32 to vector<8x128xf32>
    %217 = arith.addf %216, %215 : vector<8x128xf32>
    %218 = arith.divf %216, %217 : vector<8x128xf32>
    %219 = vector.extract_strided_slice %212 {offsets = [0, 128], sizes = [8, 128], strides = [1, 1]} : vector<8x512xf32> to vector<8x128xf32>
    %220 = arith.negf %219 : vector<8x128xf32>
    %221 = math.exp %220 : vector<8x128xf32>
    %cst_43 = arith.constant 1.000000e+00 : f32
    %222 = vector.broadcast %cst_43 : f32 to vector<8x128xf32>
    %223 = arith.addf %222, %221 : vector<8x128xf32>
    %224 = arith.divf %222, %223 : vector<8x128xf32>
    %225 = vector.extract_strided_slice %212 {offsets = [0, 256], sizes = [8, 128], strides = [1, 1]} : vector<8x512xf32> to vector<8x128xf32>
    %226 = math.tanh %225 : vector<8x128xf32>
    %227 = vector.extract_strided_slice %212 {offsets = [0, 384], sizes = [8, 128], strides = [1, 1]} : vector<8x512xf32> to vector<8x128xf32>
    %228 = arith.negf %227 : vector<8x128xf32>
    %229 = math.exp %228 : vector<8x128xf32>
    %cst_44 = arith.constant 1.000000e+00 : f32
    %230 = vector.broadcast %cst_44 : f32 to vector<8x128xf32>
    %231 = arith.addf %230, %229 : vector<8x128xf32>
    %232 = arith.divf %230, %231 : vector<8x128xf32>
    %233 = arith.mulf %224, %177 : vector<8x128xf32>
    %234 = arith.mulf %218, %226 : vector<8x128xf32>
    %235 = arith.addf %233, %234 : vector<8x128xf32>
    %236 = math.tanh %235 : vector<8x128xf32>
    %237 = arith.mulf %232, %236 : vector<8x128xf32>
    %c4_i32 = arith.constant 4 : i32
    %238 = arith.index_cast %c4_i32 : i32 to index
    %c0_45 = arith.constant 0 : index
    %c0_46 = arith.constant 0 : index
    %239 = vector.load %arg0[%238, %c0_45, %c0_46] : memref<8x8x512xf32, #tpu.memory_space<vmem>>, vector<1x8x512xf32>
    %240 = vector.shape_cast %239 : vector<1x8x512xf32> to vector<8x512xf32>
    %cst_47 = arith.constant dense<0.000000e+00> : vector<8x512xf32>
    %241 = tpu.matmul %209, %0, %cst_47 {dimension_numbers = #tpu.dot_dimension_numbers<[1], [0], [0], [1], [0, 0, 1, 1], [], []>} : vector<8x128xf32>, vector<128x512xf32>, vector<8x512xf32> -> vector<8x512xf32>
    %242 = arith.addf %240, %241 : vector<8x512xf32>
    %243 = vector.extract_strided_slice %242 {offsets = [0, 0], sizes = [8, 128], strides = [1, 1]} : vector<8x512xf32> to vector<8x128xf32>
    %244 = arith.negf %243 : vector<8x128xf32>
    %245 = math.exp %244 : vector<8x128xf32>
    %cst_48 = arith.constant 1.000000e+00 : f32
    %246 = vector.broadcast %cst_48 : f32 to vector<8x128xf32>
    %247 = arith.addf %246, %245 : vector<8x128xf32>
    %248 = arith.divf %246, %247 : vector<8x128xf32>
    %249 = vector.extract_strided_slice %242 {offsets = [0, 128], sizes = [8, 128], strides = [1, 1]} : vector<8x512xf32> to vector<8x128xf32>
    %250 = arith.negf %249 : vector<8x128xf32>
    %251 = math.exp %250 : vector<8x128xf32>
    %cst_49 = arith.constant 1.000000e+00 : f32
    %252 = vector.broadcast %cst_49 : f32 to vector<8x128xf32>
    %253 = arith.addf %252, %251 : vector<8x128xf32>
    %254 = arith.divf %252, %253 : vector<8x128xf32>
    %255 = vector.extract_strided_slice %242 {offsets = [0, 256], sizes = [8, 128], strides = [1, 1]} : vector<8x512xf32> to vector<8x128xf32>
    %256 = math.tanh %255 : vector<8x128xf32>
    %257 = vector.extract_strided_slice %242 {offsets = [0, 384], sizes = [8, 128], strides = [1, 1]} : vector<8x512xf32> to vector<8x128xf32>
    %258 = arith.negf %257 : vector<8x128xf32>
    %259 = math.exp %258 : vector<8x128xf32>
    %cst_50 = arith.constant 1.000000e+00 : f32
    %260 = vector.broadcast %cst_50 : f32 to vector<8x128xf32>
    %261 = arith.addf %260, %259 : vector<8x128xf32>
    %262 = arith.divf %260, %261 : vector<8x128xf32>
    %263 = arith.mulf %254, %207 : vector<8x128xf32>
    %264 = arith.mulf %248, %256 : vector<8x128xf32>
    %265 = arith.addf %263, %264 : vector<8x128xf32>
    %266 = math.tanh %265 : vector<8x128xf32>
    %267 = arith.mulf %262, %266 : vector<8x128xf32>
    %268 = tpu.concatenate %267, %237 in 1 : vector<8x128xf32>, vector<8x128xf32> -> vector<8x256xf32>
    %cst_51 = arith.constant dense<0.000000e+00> : vector<8x512xf32>
    %269 = tpu.matmul %268, %1, %cst_51 {dimension_numbers = #tpu.dot_dimension_numbers<[1], [0], [0], [1], [0, 0, 1, 1], [], []>} : vector<8x256xf32>, vector<256x512xf32>, vector<8x512xf32> -> vector<8x512xf32>
    %270 = arith.addf %269, %4 : vector<8x512xf32>
    %271 = vector.extract_strided_slice %270 {offsets = [0, 0], sizes = [8, 128], strides = [1, 1]} : vector<8x512xf32> to vector<8x128xf32>
    %272 = arith.negf %271 : vector<8x128xf32>
    %273 = math.exp %272 : vector<8x128xf32>
    %cst_52 = arith.constant 1.000000e+00 : f32
    %274 = vector.broadcast %cst_52 : f32 to vector<8x128xf32>
    %275 = arith.addf %274, %273 : vector<8x128xf32>
    %276 = arith.divf %274, %275 : vector<8x128xf32>
    %277 = vector.extract_strided_slice %270 {offsets = [0, 128], sizes = [8, 128], strides = [1, 1]} : vector<8x512xf32> to vector<8x128xf32>
    %278 = arith.negf %277 : vector<8x128xf32>
    %279 = math.exp %278 : vector<8x128xf32>
    %cst_53 = arith.constant 1.000000e+00 : f32
    %280 = vector.broadcast %cst_53 : f32 to vector<8x128xf32>
    %281 = arith.addf %280, %279 : vector<8x128xf32>
    %282 = arith.divf %280, %281 : vector<8x128xf32>
    %283 = vector.extract_strided_slice %270 {offsets = [0, 256], sizes = [8, 128], strides = [1, 1]} : vector<8x512xf32> to vector<8x128xf32>
    %284 = math.tanh %283 : vector<8x128xf32>
    %285 = vector.extract_strided_slice %270 {offsets = [0, 384], sizes = [8, 128], strides = [1, 1]} : vector<8x512xf32> to vector<8x128xf32>
    %286 = arith.negf %285 : vector<8x128xf32>
    %287 = math.exp %286 : vector<8x128xf32>
    %cst_54 = arith.constant 1.000000e+00 : f32
    %288 = vector.broadcast %cst_54 : f32 to vector<8x128xf32>
    %289 = arith.addf %288, %287 : vector<8x128xf32>
    %290 = arith.divf %288, %289 : vector<8x128xf32>
    %291 = arith.mulf %282, %235 : vector<8x128xf32>
    %292 = arith.mulf %276, %284 : vector<8x128xf32>
    %293 = arith.addf %291, %292 : vector<8x128xf32>
    %294 = math.tanh %293 : vector<8x128xf32>
    %295 = arith.mulf %290, %294 : vector<8x128xf32>
    %c5_i32 = arith.constant 5 : i32
    %296 = arith.index_cast %c5_i32 : i32 to index
    %c0_55 = arith.constant 0 : index
    %c0_56 = arith.constant 0 : index
    %297 = vector.load %arg0[%296, %c0_55, %c0_56] : memref<8x8x512xf32, #tpu.memory_space<vmem>>, vector<1x8x512xf32>
    %298 = vector.shape_cast %297 : vector<1x8x512xf32> to vector<8x512xf32>
    %cst_57 = arith.constant dense<0.000000e+00> : vector<8x512xf32>
    %299 = tpu.matmul %267, %0, %cst_57 {dimension_numbers = #tpu.dot_dimension_numbers<[1], [0], [0], [1], [0, 0, 1, 1], [], []>} : vector<8x128xf32>, vector<128x512xf32>, vector<8x512xf32> -> vector<8x512xf32>
    %300 = arith.addf %298, %299 : vector<8x512xf32>
    %301 = vector.extract_strided_slice %300 {offsets = [0, 0], sizes = [8, 128], strides = [1, 1]} : vector<8x512xf32> to vector<8x128xf32>
    %302 = arith.negf %301 : vector<8x128xf32>
    %303 = math.exp %302 : vector<8x128xf32>
    %cst_58 = arith.constant 1.000000e+00 : f32
    %304 = vector.broadcast %cst_58 : f32 to vector<8x128xf32>
    %305 = arith.addf %304, %303 : vector<8x128xf32>
    %306 = arith.divf %304, %305 : vector<8x128xf32>
    %307 = vector.extract_strided_slice %300 {offsets = [0, 128], sizes = [8, 128], strides = [1, 1]} : vector<8x512xf32> to vector<8x128xf32>
    %308 = arith.negf %307 : vector<8x128xf32>
    %309 = math.exp %308 : vector<8x128xf32>
    %cst_59 = arith.constant 1.000000e+00 : f32
    %310 = vector.broadcast %cst_59 : f32 to vector<8x128xf32>
    %311 = arith.addf %310, %309 : vector<8x128xf32>
    %312 = arith.divf %310, %311 : vector<8x128xf32>
    %313 = vector.extract_strided_slice %300 {offsets = [0, 256], sizes = [8, 128], strides = [1, 1]} : vector<8x512xf32> to vector<8x128xf32>
    %314 = math.tanh %313 : vector<8x128xf32>
    %315 = vector.extract_strided_slice %300 {offsets = [0, 384], sizes = [8, 128], strides = [1, 1]} : vector<8x512xf32> to vector<8x128xf32>
    %316 = arith.negf %315 : vector<8x128xf32>
    %317 = math.exp %316 : vector<8x128xf32>
    %cst_60 = arith.constant 1.000000e+00 : f32
    %318 = vector.broadcast %cst_60 : f32 to vector<8x128xf32>
    %319 = arith.addf %318, %317 : vector<8x128xf32>
    %320 = arith.divf %318, %319 : vector<8x128xf32>
    %321 = arith.mulf %312, %265 : vector<8x128xf32>
    %322 = arith.mulf %306, %314 : vector<8x128xf32>
    %323 = arith.addf %321, %322 : vector<8x128xf32>
    %324 = math.tanh %323 : vector<8x128xf32>
    %325 = arith.mulf %320, %324 : vector<8x128xf32>
    %326 = tpu.concatenate %325, %295 in 1 : vector<8x128xf32>, vector<8x128xf32> -> vector<8x256xf32>
    %cst_61 = arith.constant dense<0.000000e+00> : vector<8x512xf32>
    %327 = tpu.matmul %326, %1, %cst_61 {dimension_numbers = #tpu.dot_dimension_numbers<[1], [0], [0], [1], [0, 0, 1, 1], [], []>} : vector<8x256xf32>, vector<256x512xf32>, vector<8x512xf32> -> vector<8x512xf32>
    %328 = arith.addf %327, %4 : vector<8x512xf32>
    %329 = vector.extract_strided_slice %328 {offsets = [0, 0], sizes = [8, 128], strides = [1, 1]} : vector<8x512xf32> to vector<8x128xf32>
    %330 = arith.negf %329 : vector<8x128xf32>
    %331 = math.exp %330 : vector<8x128xf32>
    %cst_62 = arith.constant 1.000000e+00 : f32
    %332 = vector.broadcast %cst_62 : f32 to vector<8x128xf32>
    %333 = arith.addf %332, %331 : vector<8x128xf32>
    %334 = arith.divf %332, %333 : vector<8x128xf32>
    %335 = vector.extract_strided_slice %328 {offsets = [0, 128], sizes = [8, 128], strides = [1, 1]} : vector<8x512xf32> to vector<8x128xf32>
    %336 = arith.negf %335 : vector<8x128xf32>
    %337 = math.exp %336 : vector<8x128xf32>
    %cst_63 = arith.constant 1.000000e+00 : f32
    %338 = vector.broadcast %cst_63 : f32 to vector<8x128xf32>
    %339 = arith.addf %338, %337 : vector<8x128xf32>
    %340 = arith.divf %338, %339 : vector<8x128xf32>
    %341 = vector.extract_strided_slice %328 {offsets = [0, 256], sizes = [8, 128], strides = [1, 1]} : vector<8x512xf32> to vector<8x128xf32>
    %342 = math.tanh %341 : vector<8x128xf32>
    %343 = vector.extract_strided_slice %328 {offsets = [0, 384], sizes = [8, 128], strides = [1, 1]} : vector<8x512xf32> to vector<8x128xf32>
    %344 = arith.negf %343 : vector<8x128xf32>
    %345 = math.exp %344 : vector<8x128xf32>
    %cst_64 = arith.constant 1.000000e+00 : f32
    %346 = vector.broadcast %cst_64 : f32 to vector<8x128xf32>
    %347 = arith.addf %346, %345 : vector<8x128xf32>
    %348 = arith.divf %346, %347 : vector<8x128xf32>
    %349 = arith.mulf %340, %293 : vector<8x128xf32>
    %350 = arith.mulf %334, %342 : vector<8x128xf32>
    %351 = arith.addf %349, %350 : vector<8x128xf32>
    %352 = math.tanh %351 : vector<8x128xf32>
    %353 = arith.mulf %348, %352 : vector<8x128xf32>
    %c6_i32 = arith.constant 6 : i32
    %354 = arith.index_cast %c6_i32 : i32 to index
    %c0_65 = arith.constant 0 : index
    %c0_66 = arith.constant 0 : index
    %355 = vector.load %arg0[%354, %c0_65, %c0_66] : memref<8x8x512xf32, #tpu.memory_space<vmem>>, vector<1x8x512xf32>
    %356 = vector.shape_cast %355 : vector<1x8x512xf32> to vector<8x512xf32>
    %cst_67 = arith.constant dense<0.000000e+00> : vector<8x512xf32>
    %357 = tpu.matmul %325, %0, %cst_67 {dimension_numbers = #tpu.dot_dimension_numbers<[1], [0], [0], [1], [0, 0, 1, 1], [], []>} : vector<8x128xf32>, vector<128x512xf32>, vector<8x512xf32> -> vector<8x512xf32>
    %358 = arith.addf %356, %357 : vector<8x512xf32>
    %359 = vector.extract_strided_slice %358 {offsets = [0, 0], sizes = [8, 128], strides = [1, 1]} : vector<8x512xf32> to vector<8x128xf32>
    %360 = arith.negf %359 : vector<8x128xf32>
    %361 = math.exp %360 : vector<8x128xf32>
    %cst_68 = arith.constant 1.000000e+00 : f32
    %362 = vector.broadcast %cst_68 : f32 to vector<8x128xf32>
    %363 = arith.addf %362, %361 : vector<8x128xf32>
    %364 = arith.divf %362, %363 : vector<8x128xf32>
    %365 = vector.extract_strided_slice %358 {offsets = [0, 128], sizes = [8, 128], strides = [1, 1]} : vector<8x512xf32> to vector<8x128xf32>
    %366 = arith.negf %365 : vector<8x128xf32>
    %367 = math.exp %366 : vector<8x128xf32>
    %cst_69 = arith.constant 1.000000e+00 : f32
    %368 = vector.broadcast %cst_69 : f32 to vector<8x128xf32>
    %369 = arith.addf %368, %367 : vector<8x128xf32>
    %370 = arith.divf %368, %369 : vector<8x128xf32>
    %371 = vector.extract_strided_slice %358 {offsets = [0, 256], sizes = [8, 128], strides = [1, 1]} : vector<8x512xf32> to vector<8x128xf32>
    %372 = math.tanh %371 : vector<8x128xf32>
    %373 = vector.extract_strided_slice %358 {offsets = [0, 384], sizes = [8, 128], strides = [1, 1]} : vector<8x512xf32> to vector<8x128xf32>
    %374 = arith.negf %373 : vector<8x128xf32>
    %375 = math.exp %374 : vector<8x128xf32>
    %cst_70 = arith.constant 1.000000e+00 : f32
    %376 = vector.broadcast %cst_70 : f32 to vector<8x128xf32>
    %377 = arith.addf %376, %375 : vector<8x128xf32>
    %378 = arith.divf %376, %377 : vector<8x128xf32>
    %379 = arith.mulf %370, %323 : vector<8x128xf32>
    %380 = arith.mulf %364, %372 : vector<8x128xf32>
    %381 = arith.addf %379, %380 : vector<8x128xf32>
    %382 = math.tanh %381 : vector<8x128xf32>
    %383 = arith.mulf %378, %382 : vector<8x128xf32>
    %384 = tpu.concatenate %383, %353 in 1 : vector<8x128xf32>, vector<8x128xf32> -> vector<8x256xf32>
    %cst_71 = arith.constant dense<0.000000e+00> : vector<8x512xf32>
    %385 = tpu.matmul %384, %1, %cst_71 {dimension_numbers = #tpu.dot_dimension_numbers<[1], [0], [0], [1], [0, 0, 1, 1], [], []>} : vector<8x256xf32>, vector<256x512xf32>, vector<8x512xf32> -> vector<8x512xf32>
    %386 = arith.addf %385, %4 : vector<8x512xf32>
    %387 = vector.extract_strided_slice %386 {offsets = [0, 0], sizes = [8, 128], strides = [1, 1]} : vector<8x512xf32> to vector<8x128xf32>
    %388 = arith.negf %387 : vector<8x128xf32>
    %389 = math.exp %388 : vector<8x128xf32>
    %cst_72 = arith.constant 1.000000e+00 : f32
    %390 = vector.broadcast %cst_72 : f32 to vector<8x128xf32>
    %391 = arith.addf %390, %389 : vector<8x128xf32>
    %392 = arith.divf %390, %391 : vector<8x128xf32>
    %393 = vector.extract_strided_slice %386 {offsets = [0, 128], sizes = [8, 128], strides = [1, 1]} : vector<8x512xf32> to vector<8x128xf32>
    %394 = arith.negf %393 : vector<8x128xf32>
    %395 = math.exp %394 : vector<8x128xf32>
    %cst_73 = arith.constant 1.000000e+00 : f32
    %396 = vector.broadcast %cst_73 : f32 to vector<8x128xf32>
    %397 = arith.addf %396, %395 : vector<8x128xf32>
    %398 = arith.divf %396, %397 : vector<8x128xf32>
    %399 = vector.extract_strided_slice %386 {offsets = [0, 256], sizes = [8, 128], strides = [1, 1]} : vector<8x512xf32> to vector<8x128xf32>
    %400 = math.tanh %399 : vector<8x128xf32>
    %401 = vector.extract_strided_slice %386 {offsets = [0, 384], sizes = [8, 128], strides = [1, 1]} : vector<8x512xf32> to vector<8x128xf32>
    %402 = arith.negf %401 : vector<8x128xf32>
    %403 = math.exp %402 : vector<8x128xf32>
    %cst_74 = arith.constant 1.000000e+00 : f32
    %404 = vector.broadcast %cst_74 : f32 to vector<8x128xf32>
    %405 = arith.addf %404, %403 : vector<8x128xf32>
    %406 = arith.divf %404, %405 : vector<8x128xf32>
    %407 = arith.mulf %398, %351 : vector<8x128xf32>
    %408 = arith.mulf %392, %400 : vector<8x128xf32>
    %409 = arith.addf %407, %408 : vector<8x128xf32>
    %410 = math.tanh %409 : vector<8x128xf32>
    %411 = arith.mulf %406, %410 : vector<8x128xf32>
    %c7_i32 = arith.constant 7 : i32
    %412 = arith.index_cast %c7_i32 : i32 to index
    %c0_75 = arith.constant 0 : index
    %c0_76 = arith.constant 0 : index
    %413 = vector.load %arg0[%412, %c0_75, %c0_76] : memref<8x8x512xf32, #tpu.memory_space<vmem>>, vector<1x8x512xf32>
    %414 = vector.shape_cast %413 : vector<1x8x512xf32> to vector<8x512xf32>
    %cst_77 = arith.constant dense<0.000000e+00> : vector<8x512xf32>
    %415 = tpu.matmul %383, %0, %cst_77 {dimension_numbers = #tpu.dot_dimension_numbers<[1], [0], [0], [1], [0, 0, 1, 1], [], []>} : vector<8x128xf32>, vector<128x512xf32>, vector<8x512xf32> -> vector<8x512xf32>
    %416 = arith.addf %414, %415 : vector<8x512xf32>
    %417 = vector.extract_strided_slice %416 {offsets = [0, 0], sizes = [8, 128], strides = [1, 1]} : vector<8x512xf32> to vector<8x128xf32>
    %418 = arith.negf %417 : vector<8x128xf32>
    %419 = math.exp %418 : vector<8x128xf32>
    %cst_78 = arith.constant 1.000000e+00 : f32
    %420 = vector.broadcast %cst_78 : f32 to vector<8x128xf32>
    %421 = arith.addf %420, %419 : vector<8x128xf32>
    %422 = arith.divf %420, %421 : vector<8x128xf32>
    %423 = vector.extract_strided_slice %416 {offsets = [0, 128], sizes = [8, 128], strides = [1, 1]} : vector<8x512xf32> to vector<8x128xf32>
    %424 = arith.negf %423 : vector<8x128xf32>
    %425 = math.exp %424 : vector<8x128xf32>
    %cst_79 = arith.constant 1.000000e+00 : f32
    %426 = vector.broadcast %cst_79 : f32 to vector<8x128xf32>
    %427 = arith.addf %426, %425 : vector<8x128xf32>
    %428 = arith.divf %426, %427 : vector<8x128xf32>
    %429 = vector.extract_strided_slice %416 {offsets = [0, 256], sizes = [8, 128], strides = [1, 1]} : vector<8x512xf32> to vector<8x128xf32>
    %430 = math.tanh %429 : vector<8x128xf32>
    %431 = vector.extract_strided_slice %416 {offsets = [0, 384], sizes = [8, 128], strides = [1, 1]} : vector<8x512xf32> to vector<8x128xf32>
    %432 = arith.negf %431 : vector<8x128xf32>
    %433 = math.exp %432 : vector<8x128xf32>
    %cst_80 = arith.constant 1.000000e+00 : f32
    %434 = vector.broadcast %cst_80 : f32 to vector<8x128xf32>
    %435 = arith.addf %434, %433 : vector<8x128xf32>
    %436 = arith.divf %434, %435 : vector<8x128xf32>
    %437 = arith.mulf %428, %381 : vector<8x128xf32>
    %438 = arith.mulf %422, %430 : vector<8x128xf32>
    %439 = arith.addf %437, %438 : vector<8x128xf32>
    %440 = math.tanh %439 : vector<8x128xf32>
    %441 = arith.mulf %436, %440 : vector<8x128xf32>
    %442 = tpu.concatenate %441, %411 in 1 : vector<8x128xf32>, vector<8x128xf32> -> vector<8x256xf32>
    %cst_81 = arith.constant dense<0.000000e+00> : vector<8x512xf32>
    %443 = tpu.matmul %442, %1, %cst_81 {dimension_numbers = #tpu.dot_dimension_numbers<[1], [0], [0], [1], [0, 0, 1, 1], [], []>} : vector<8x256xf32>, vector<256x512xf32>, vector<8x512xf32> -> vector<8x512xf32>
    %444 = arith.addf %443, %4 : vector<8x512xf32>
    %445 = vector.extract_strided_slice %444 {offsets = [0, 0], sizes = [8, 128], strides = [1, 1]} : vector<8x512xf32> to vector<8x128xf32>
    %446 = arith.negf %445 : vector<8x128xf32>
    %447 = math.exp %446 : vector<8x128xf32>
    %cst_82 = arith.constant 1.000000e+00 : f32
    %448 = vector.broadcast %cst_82 : f32 to vector<8x128xf32>
    %449 = arith.addf %448, %447 : vector<8x128xf32>
    %450 = arith.divf %448, %449 : vector<8x128xf32>
    %451 = vector.extract_strided_slice %444 {offsets = [0, 128], sizes = [8, 128], strides = [1, 1]} : vector<8x512xf32> to vector<8x128xf32>
    %452 = arith.negf %451 : vector<8x128xf32>
    %453 = math.exp %452 : vector<8x128xf32>
    %cst_83 = arith.constant 1.000000e+00 : f32
    %454 = vector.broadcast %cst_83 : f32 to vector<8x128xf32>
    %455 = arith.addf %454, %453 : vector<8x128xf32>
    %456 = arith.divf %454, %455 : vector<8x128xf32>
    %457 = vector.extract_strided_slice %444 {offsets = [0, 256], sizes = [8, 128], strides = [1, 1]} : vector<8x512xf32> to vector<8x128xf32>
    %458 = math.tanh %457 : vector<8x128xf32>
    %459 = vector.extract_strided_slice %444 {offsets = [0, 384], sizes = [8, 128], strides = [1, 1]} : vector<8x512xf32> to vector<8x128xf32>
    %460 = arith.negf %459 : vector<8x128xf32>
    %461 = math.exp %460 : vector<8x128xf32>
    %cst_84 = arith.constant 1.000000e+00 : f32
    %462 = vector.broadcast %cst_84 : f32 to vector<8x128xf32>
    %463 = arith.addf %462, %461 : vector<8x128xf32>
    %464 = arith.divf %462, %463 : vector<8x128xf32>
    %465 = arith.mulf %456, %409 : vector<8x128xf32>
    %466 = arith.mulf %450, %458 : vector<8x128xf32>
    %467 = arith.addf %465, %466 : vector<8x128xf32>
    %468 = math.tanh %467 : vector<8x128xf32>
    %469 = arith.mulf %464, %468 : vector<8x128xf32>
    %c8_i32 = arith.constant 8 : i32
    %c0_85 = arith.constant 0 : index
    %c0_86 = arith.constant 0 : index
    %470 = vector.load %arg4[%c0_85, %c0_86] : memref<128x1xf32, #tpu.memory_space<vmem>>, vector<128x1xf32>
    %cst_87 = arith.constant dense<0.000000e+00> : vector<8x1xf32>
    %471 = tpu.matmul %469, %470, %cst_87 {dimension_numbers = #tpu.dot_dimension_numbers<[1], [0], [0], [1], [0, 0, 1, 1], [], []>} : vector<8x128xf32>, vector<128x1xf32>, vector<8x1xf32> -> vector<8x1xf32>
    %c0_88 = arith.constant 0 : index
    %c0_89 = arith.constant 0 : index
    %472 = vector.load %arg5[%c0_88, %c0_89] : memref<1x1xf32, #tpu.memory_space<vmem>>, vector<1x1xf32>
    %473 = vector.broadcast %472 : vector<1x1xf32> to vector<8x1xf32>
    %474 = arith.addf %471, %473 : vector<8x1xf32>
    %c0_90 = arith.constant 0 : index
    %c0_91 = arith.constant 0 : index
    %475 = vector.load %arg6[%c0_90, %c0_91] : memref<8x1xf32, #tpu.memory_space<vmem>>, vector<8x1xf32>
    tpu.vector_store %arg6[%c0_90, %c0_91], %474 {strides = array<i32>} : memref<8x1xf32, #tpu.memory_space<vmem>>, vector<8x1xf32>,
    return
  }
}

</mosaic_0001>

<llo_original>
// kernel: tpu_custom_call.1
$region0: #{tpu_custom_call.1}
  #allocation0 [shape = 'u32[]', space=smem, size = 0x4, offset = 0x4, fixed_abs, tag = 'smem constant byte address 0x4 - core index']
  #allocation1 [shape = 'u32[144,128]{1,0:T(1,128)}', space=vmem, size = 0x12000, scoped, tag = 'internal scratch']
  #allocation2 [shape = 'f32[1,1]{1,0:T(1,128)S(1)}', space=vmem, size = 0x200, scoped, tag = 'scoped memory for tpu_custom_call.1']
  %s0 = inlined_call_operand.hbm [shape: f32[8,8,512], index: 0, kind: input, shape index: {}]
  %s1 = inlined_call_operand.hbm [shape: f32[128,512], index: 1, kind: input, shape index: {}]
  %s2 = inlined_call_operand.hbm [shape: f32[256,512], index: 2, kind: input, shape index: {}]
  %s3 = inlined_call_operand.vmem [shape: f32[1,512], index: 3, kind: input, shape index: {}]
  %s4 = inlined_call_operand.vmem [shape: f32[128,1], index: 4, kind: input, shape index: {}]
  %s5 = inlined_call_operand.<no memory space> [shape: f32[1,1], index: 5, kind: input, shape index: {}]
  %s6 = inlined_call_operand.vmem [shape: f32[8,1], index: 6, kind: output, shape index: {}]
  %s7 = sld [smem:[#allocation0]]
  $region46: #{tpu_custom_call.1} parent=0
    _
  %s9 = ssub.s32 1, %s7
  %s10 = scalar_select 0, %s9, %s7
  %v11 = vstv %s5
  %12 = vst [vmem:[#allocation2] sm:$0x1] %v11
  $region1: #{tpu_custom_call.1} parent=0
    #allocation3 [shape = 'u8[131072]{0}', space=vmem, size = 0x20000, scoped, tag = 'input window, operand 0, single buffered']
    #allocation4 [shape = 's32[1]{0}', space=sflag, size = 0x4, scoped, tag = 'scoped memory for tpu_custom_call.1']
    #allocation5 [shape = 'u8[262144]{0}', space=vmem, size = 0x40000, scoped, tag = 'input window, operand 1, single buffered']
    #allocation6 [shape = 's32[1]{0}', space=sflag, size = 0x4, scoped, tag = 'scoped memory for tpu_custom_call.1']
    #allocation7 [shape = 'u8[524288]{0}', space=vmem, size = 0x80000, scoped, tag = 'input window, operand 2, single buffered']
    %13 = vsyncpa [#allocation4], 0
    %14 = vsyncpa [#allocation6], 0
    // Predicated region
    $region2: #{tpu_custom_call.1} parent=1 // pred_check
      _
    $region3: #{tpu_custom_call.1} parent=1 // pred_check_branch
      %16 = sbr.rel (0) target = $region5
    $region4: #{tpu_custom_call.1} parent=1 // pred_region
      %s18 = ssub.s32 4096, 4096
      %19 = vsyncadd [#allocation4], %s18
      %s20 = sshll.u32 [#allocation3], 4
      %s21 = int_to_ptr.vmem [resolvable:$true] %s20
      %26 = dma.hbm_to_vmem [thread:$0]  %s0, 4096, %s21, [#allocation4], 512, 512, 32
    $region5: #{tpu_custom_call.1} parent=1 // pred_fallthru
      _
    // Predicated region
    $region6: #{tpu_custom_call.1} parent=1 // pred_check
      _
    $region7: #{tpu_custom_call.1} parent=1 // pred_check_branch
      %28 = sbr.rel (0) target = $region9
    $region8: #{tpu_custom_call.1} parent=1 // pred_region
      %s30 = ssub.s32 8192, 8192
      %31 = vsyncadd [#allocation6], %s30
      %s32 = sshll.u32 [#allocation5], 4
      %s33 = int_to_ptr.vmem [resolvable:$true] %s32
      %38 = dma.hbm_to_vmem [thread:$0]  %s1, 8192, %s33, [#allocation6], 512, 512, 32
    $region9: #{tpu_custom_call.1} parent=1 // pred_fallthru
      _
    // Predicated region
    $region10: #{tpu_custom_call.1} parent=1 // pred_check
      _
    $region11: #{tpu_custom_call.1} parent=1 // pred_check_branch
      %40 = sbr.rel (0) target = $region13
    $region12: #{tpu_custom_call.1} parent=1 // pred_region
      %s42 = ssub.s32 16384, 16384
      %43 = vsyncadd [#allocation6], %s42
      %s44 = sshll.u32 [#allocation7], 4
      %s45 = int_to_ptr.vmem [resolvable:$true] %s44
      %50 = dma.hbm_to_vmem [thread:$0]  %s2, 16384, %s45, [#allocation6], 512, 512, 32
    $region13: #{tpu_custom_call.1} parent=1 // pred_fallthru
      _
    // Predicated region
    $region14: #{tpu_custom_call.1} parent=1 // pred_check
      _
    $region15: #{tpu_custom_call.1} parent=1 // pred_check_branch
      %52 = sbr.rel (0) target = $region17
    $region16: #{tpu_custom_call.1} parent=1 // pred_region
      _
    $region17: #{tpu_custom_call.1} parent=1 // pred_fallthru
      _
    // Predicated region
    $region18: #{tpu_custom_call.1} parent=1 // pred_check
      _
    $region19: #{tpu_custom_call.1} parent=1 // pred_check_branch
      %54 = sbr.rel (0) target = $region21
    $region20: #{tpu_custom_call.1} parent=1 // pred_region
      _
    $region21: #{tpu_custom_call.1} parent=1 // pred_fallthru
      _
    // Predicated region
    $region22: #{tpu_custom_call.1} parent=1 // pred_check
      _
    $region23: #{tpu_custom_call.1} parent=1 // pred_check_branch
      %56 = sbr.rel (0) target = $region25
    $region24: #{tpu_custom_call.1} parent=1 // pred_region
      _
    $region25: #{tpu_custom_call.1} parent=1 // pred_fallthru
      _
    // Predicated region
    $region26: #{tpu_custom_call.1} parent=1 // pred_check
      _
    $region27: #{tpu_custom_call.1} parent=1 // pred_check_branch
      %58 = sbr.rel (0) target = $region29
    $region28: #{tpu_custom_call.1} parent=1 // pred_region
      %59 = dma.done [#allocation4], 4096
    $region29: #{tpu_custom_call.1} parent=1 // pred_fallthru
      _
    // Predicated region
    $region30: #{tpu_custom_call.1} parent=1 // pred_check
      _
    $region31: #{tpu_custom_call.1} parent=1 // pred_check_branch
      %61 = sbr.rel (0) target = $region33
    $region32: #{tpu_custom_call.1} parent=1 // pred_region
      %62 = dma.done [#allocation6], 8192
    $region33: #{tpu_custom_call.1} parent=1 // pred_fallthru
      _
    // Predicated region
    $region34: #{tpu_custom_call.1} parent=1 // pred_check
      _
    $region35: #{tpu_custom_call.1} parent=1 // pred_check_branch
      %64 = sbr.rel (0) target = $region37
    $region36: #{tpu_custom_call.1} parent=1 // pred_region
      %65 = dma.done [#allocation6], 16384
    $region37: #{tpu_custom_call.1} parent=1 // pred_fallthru
      _
    %v66 = vld [vmem:[#allocation5] sm:$0xff]
    %v67 = vld [vmem:[#allocation5 + $0x8] sm:$0xff]
    %v68 = vld [vmem:[#allocation5 + $0x10] sm:$0xff]
    %v69 = vld [vmem:[#allocation5 + $0x18] sm:$0xff]
    %v70 = vld [vmem:[#allocation5 + $0x20] sm:$0xff]
    %v71 = vld [vmem:[#allocation5 + $0x28] sm:$0xff]
    %v72 = vld [vmem:[#allocation5 + $0x30] sm:$0xff]
    %v73 = vld [vmem:[#allocation5 + $0x38] sm:$0xff]
    %v74 = vld [vmem:[#allocation5 + $0x40] sm:$0xff]
    %v75 = vld [vmem:[#allocation5 + $0x48] sm:$0xff]
    %v76 = vld [vmem:[#allocation5 + $0x50] sm:$0xff]
    %v77 = vld [vmem:[#allocation5 + $0x58] sm:$0xff]
    %v78 = vld [vmem:[#allocation5 + $0x60] sm:$0xff]
    %v79 = vld [vmem:[#allocation5 + $0x68] sm:$0xff]
    %v80 = vld [vmem:[#allocation5 + $0x70] sm:$0xff]
    %v81 = vld [vmem:[#allocation5 + $0x78] sm:$0xff]
    %v82 = vld [vmem:[#allocation5 + $0x80] sm:$0xff]
    %v83 = vld [vmem:[#allocation5 + $0x88] sm:$0xff]
    %v84 = vld [vmem:[#allocation5 + $0x90] sm:$0xff]
    %v85 = vld [vmem:[#allocation5 + $0x98] sm:$0xff]
    %v86 = vld [vmem:[#allocation5 + $0xa0] sm:$0xff]
    %v87 = vld [vmem:[#allocation5 + $0xa8] sm:$0xff]
    %v88 = vld [vmem:[#allocation5 + $0xb0] sm:$0xff]
    %v89 = vld [vmem:[#allocation5 + $0xb8] sm:$0xff]
    %v90 = vld [vmem:[#allocation5 + $0xc0] sm:$0xff]
    %v91 = vld [vmem:[#allocation5 + $0xc8] sm:$0xff]
    %v92 = vld [vmem:[#allocation5 + $0xd0] sm:$0xff]
    %v93 = vld [vmem:[#allocation5 + $0xd8] sm:$0xff]
    %v94 = vld [vmem:[#allocation5 + $0xe0] sm:$0xff]
    %v95 = vld [vmem:[#allocation5 + $0xe8] sm:$0xff]
    %v96 = vld [vmem:[#allocation5 + $0xf0] sm:$0xff]
    %v97 = vld [vmem:[#allocation5 + $0xf8] sm:$0xff]
    %v98 = vld [vmem:[#allocation5 + $0x100] sm:$0xff]
    %v99 = vld [vmem:[#allocation5 + $0x108] sm:$0xff]
    %v100 = vld [vmem:[#allocation5 + $0x110] sm:$0xff]
    %v101 = vld [vmem:[#allocation5 + $0x118] sm:$0xff]
    %v102 = vld [vmem:[#allocation5 + $0x120] sm:$0xff]
    %v103 = vld [vmem:[#allocation5 + $0x128] sm:$0xff]
    %v104 = vld [vmem:[#allocation5 + $0x130] sm:$0xff]
    %v105 = vld [vmem:[#allocation5 + $0x138] sm:$0xff]
    %v106 = vld [vmem:[#allocation5 + $0x140] sm:$0xff]
    %v107 = vld [vmem:[#allocation5 + $0x148] sm:$0xff]
    %v108 = vld [vmem:[#allocation5 + $0x150] sm:$0xff]
    %v109 = vld [vmem:[#allocation5 + $0x158] sm:$0xff]
    %v110 = vld [vmem:[#allocation5 + $0x160] sm:$0xff]
    %v111 = vld [vmem:[#allocation5 + $0x168] sm:$0xff]
    %v112 = vld [vmem:[#allocation5 + $0x170] sm:$0xff]
    %v113 = vld [vmem:[#allocation5 + $0x178] sm:$0xff]
    %v114 = vld [vmem:[#allocation5 + $0x180] sm:$0xff]
    %v115 = vld [vmem:[#allocation5 + $0x188] sm:$0xff]
    %v116 = vld [vmem:[#allocation5 + $0x190] sm:$0xff]
    %v117 = vld [vmem:[#allocation5 + $0x198] sm:$0xff]
    %v118 = vld [vmem:[#allocation5 + $0x1a0] sm:$0xff]
    %v119 = vld [vmem:[#allocation5 + $0x1a8] sm:$0xff]
    %v120 = vld [vmem:[#allocation5 + $0x1b0] sm:$0xff]
    %v121 = vld [vmem:[#allocation5 + $0x1b8] sm:$0xff]
    %v122 = vld [vmem:[#allocation5 + $0x1c0] sm:$0xff]
    %v123 = vld [vmem:[#allocation5 + $0x1c8] sm:$0xff]
    %v124 = vld [vmem:[#allocation5 + $0x1d0] sm:$0xff]
    %v125 = vld [vmem:[#allocation5 + $0x1d8] sm:$0xff]
    %v126 = vld [vmem:[#allocation5 + $0x1e0] sm:$0xff]
    %v127 = vld [vmem:[#allocation5 + $0x1e8] sm:$0xff]
    %v128 = vld [vmem:[#allocation5 + $0x1f0] sm:$0xff]
    %v129 = vld [vmem:[#allocation5 + $0x1f8] sm:$0xff]
    %v130 = vld [vmem:[#allocation7] sm:$0xff]
    %v131 = vld [vmem:[#allocation7 + $0x8] sm:$0xff]
    %v132 = vld [vmem:[#allocation7 + $0x10] sm:$0xff]
    %v133 = vld [vmem:[#allocation7 + $0x18] sm:$0xff]
    %v134 = vld [vmem:[#allocation7 + $0x20] sm:$0xff]
    %v135 = vld [vmem:[#allocation7 + $0x28] sm:$0xff]
    %v136 = vld [vmem:[#allocation7 + $0x30] sm:$0xff]
    %v137 = vld [vmem:[#allocation7 + $0x38] sm:$0xff]
    %v138 = vld [vmem:[#allocation7 + $0x40] sm:$0xff]
    %v139 = vld [vmem:[#allocation7 + $0x48] sm:$0xff]
    %v140 = vld [vmem:[#allocation7 + $0x50] sm:$0xff]
    %v141 = vld [vmem:[#allocation7 + $0x58] sm:$0xff]
    %v142 = vld [vmem:[#allocation7 + $0x60] sm:$0xff]
    %v143 = vld [vmem:[#allocation7 + $0x68] sm:$0xff]
    %v144 = vld [vmem:[#allocation7 + $0x70] sm:$0xff]
    %v145 = vld [vmem:[#allocation7 + $0x78] sm:$0xff]
    %v146 = vld [vmem:[#allocation7 + $0x80] sm:$0xff]
    %v147 = vld [vmem:[#allocation7 + $0x88] sm:$0xff]
    %v148 = vld [vmem:[#allocation7 + $0x90] sm:$0xff]
    %v149 = vld [vmem:[#allocation7 + $0x98] sm:$0xff]
    %v150 = vld [vmem:[#allocation7 + $0xa0] sm:$0xff]
    %v151 = vld [vmem:[#allocation7 + $0xa8] sm:$0xff]
    %v152 = vld [vmem:[#allocation7 + $0xb0] sm:$0xff]
    %v153 = vld [vmem:[#allocation7 + $0xb8] sm:$0xff]
    %v154 = vld [vmem:[#allocation7 + $0xc0] sm:$0xff]
    %v155 = vld [vmem:[#allocation7 + $0xc8] sm:$0xff]
    %v156 = vld [vmem:[#allocation7 + $0xd0] sm:$0xff]
    %v157 = vld [vmem:[#allocation7 + $0xd8] sm:$0xff]
    %v158 = vld [vmem:[#allocation7 + $0xe0] sm:$0xff]
    %v159 = vld [vmem:[#allocation7 + $0xe8] sm:$0xff]
    %v160 = vld [vmem:[#allocation7 + $0xf0] sm:$0xff]
    %v161 = vld [vmem:[#allocation7 + $0xf8] sm:$0xff]
    %v162 = vld [vmem:[#allocation7 + $0x100] sm:$0xff]
    %v163 = vld [vmem:[#allocation7 + $0x108] sm:$0xff]
    %v164 = vld [vmem:[#allocation7 + $0x110] sm:$0xff]
    %v165 = vld [vmem:[#allocation7 + $0x118] sm:$0xff]
    %v166 = vld [vmem:[#allocation7 + $0x120] sm:$0xff]
    %v167 = vld [vmem:[#allocation7 + $0x128] sm:$0xff]
    %v168 = vld [vmem:[#allocation7 + $0x130] sm:$0xff]
    %v169 = vld [vmem:[#allocation7 + $0x138] sm:$0xff]
    %v170 = vld [vmem:[#allocation7 + $0x140] sm:$0xff]
    %v171 = vld [vmem:[#allocation7 + $0x148] sm:$0xff]
    %v172 = vld [vmem:[#allocation7 + $0x150] sm:$0xff]
    %v173 = vld [vmem:[#allocation7 + $0x158] sm:$0xff]
    %v174 = vld [vmem:[#allocation7 + $0x160] sm:$0xff]
    %v175 = vld [vmem:[#allocation7 + $0x168] sm:$0xff]
    %v176 = vld [vmem:[#allocation7 + $0x170] sm:$0xff]
    %v177 = vld [vmem:[#allocation7 + $0x178] sm:$0xff]
    %v178 = vld [vmem:[#allocation7 + $0x180] sm:$0xff]
    %v179 = vld [vmem:[#allocation7 + $0x188] sm:$0xff]
    %v180 = vld [vmem:[#allocation7 + $0x190] sm:$0xff]
    %v181 = vld [vmem:[#allocation7 + $0x198] sm:$0xff]
    %v182 = vld [vmem:[#allocation7 + $0x1a0] sm:$0xff]
    %v183 = vld [vmem:[#allocation7 + $0x1a8] sm:$0xff]
    %v184 = vld [vmem:[#allocation7 + $0x1b0] sm:$0xff]
    %v185 = vld [vmem:[#allocation7 + $0x1b8] sm:$0xff]
    %v186 = vld [vmem:[#allocation7 + $0x1c0] sm:$0xff]
    %v187 = vld [vmem:[#allocation7 + $0x1c8] sm:$0xff]
    %v188 = vld [vmem:[#allocation7 + $0x1d0] sm:$0xff]
    %v189 = vld [vmem:[#allocation7 + $0x1d8] sm:$0xff]
    %v190 = vld [vmem:[#allocation7 + $0x1e0] sm:$0xff]
    %v191 = vld [vmem:[#allocation7 + $0x1e8] sm:$0xff]
    %v192 = vld [vmem:[#allocation7 + $0x1f0] sm:$0xff]
    %v193 = vld [vmem:[#allocation7 + $0x1f8] sm:$0xff]
    %v194 = vld [vmem:[#allocation7 + $0x200] sm:$0xff]
    %v195 = vld [vmem:[#allocation7 + $0x208] sm:$0xff]
    %v196 = vld [vmem:[#allocation7 + $0x210] sm:$0xff]
    %v197 = vld [vmem:[#allocation7 + $0x218] sm:$0xff]
    %v198 = vld [vmem:[#allocation7 + $0x220] sm:$0xff]
    %v199 = vld [vmem:[#allocation7 + $0x228] sm:$0xff]
    %v200 = vld [vmem:[#allocation7 + $0x230] sm:$0xff]
    %v201 = vld [vmem:[#allocation7 + $0x238] sm:$0xff]
    %v202 = vld [vmem:[#allocation7 + $0x240] sm:$0xff]
    %v203 = vld [vmem:[#allocation7 + $0x248] sm:$0xff]
    %v204 = vld [vmem:[#allocation7 + $0x250] sm:$0xff]
    %v205 = vld [vmem:[#allocation7 + $0x258] sm:$0xff]
    %v206 = vld [vmem:[#allocation7 + $0x260] sm:$0xff]
    %v207 = vld [vmem:[#allocation7 + $0x268] sm:$0xff]
    %v208 = vld [vmem:[#allocation7 + $0x270] sm:$0xff]
    %v209 = vld [vmem:[#allocation7 + $0x278] sm:$0xff]
    %v210 = vld [vmem:[#allocation7 + $0x280] sm:$0xff]
    %v211 = vld [vmem:[#allocation7 + $0x288] sm:$0xff]
    %v212 = vld [vmem:[#allocation7 + $0x290] sm:$0xff]
    %v213 = vld [vmem:[#allocation7 + $0x298] sm:$0xff]
    %v214 = vld [vmem:[#allocation7 + $0x2a0] sm:$0xff]
    %v215 = vld [vmem:[#allocation7 + $0x2a8] sm:$0xff]
    %v216 = vld [vmem:[#allocation7 + $0x2b0] sm:$0xff]
    %v217 = vld [vmem:[#allocation7 + $0x2b8] sm:$0xff]
    %v218 = vld [vmem:[#allocation7 + $0x2c0] sm:$0xff]
    %v219 = vld [vmem:[#allocation7 + $0x2c8] sm:$0xff]
    %v220 = vld [vmem:[#allocation7 + $0x2d0] sm:$0xff]
    %v221 = vld [vmem:[#allocation7 + $0x2d8] sm:$0xff]
    %v222 = vld [vmem:[#allocation7 + $0x2e0] sm:$0xff]
    %v223 = vld [vmem:[#allocation7 + $0x2e8] sm:$0xff]
    %v224 = vld [vmem:[#allocation7 + $0x2f0] sm:$0xff]
    %v225 = vld [vmem:[#allocation7 + $0x2f8] sm:$0xff]
    %v226 = vld [vmem:[#allocation7 + $0x300] sm:$0xff]
    %v227 = vld [vmem:[#allocation7 + $0x308] sm:$0xff]
    %v228 = vld [vmem:[#allocation7 + $0x310] sm:$0xff]
    %v229 = vld [vmem:[#allocation7 + $0x318] sm:$0xff]
    %v230 = vld [vmem:[#allocation7 + $0x320] sm:$0xff]
    %v231 = vld [vmem:[#allocation7 + $0x328] sm:$0xff]
    %v232 = vld [vmem:[#allocation7 + $0x330] sm:$0xff]
    %v233 = vld [vmem:[#allocation7 + $0x338] sm:$0xff]
    %v234 = vld [vmem:[#allocation7 + $0x340] sm:$0xff]
    %v235 = vld [vmem:[#allocation7 + $0x348] sm:$0xff]
    %v236 = vld [vmem:[#allocation7 + $0x350] sm:$0xff]
    %v237 = vld [vmem:[#allocation7 + $0x358] sm:$0xff]
    %v238 = vld [vmem:[#allocation7 + $0x360] sm:$0xff]
    %v239 = vld [vmem:[#allocation7 + $0x368] sm:$0xff]
    %v240 = vld [vmem:[#allocation7 + $0x370] sm:$0xff]
    %v241 = vld [vmem:[#allocation7 + $0x378] sm:$0xff]
    %v242 = vld [vmem:[#allocation7 + $0x380] sm:$0xff]
    %v243 = vld [vmem:[#allocation7 + $0x388] sm:$0xff]
    %v244 = vld [vmem:[#allocation7 + $0x390] sm:$0xff]
    %v245 = vld [vmem:[#allocation7 + $0x398] sm:$0xff]
    %v246 = vld [vmem:[#allocation7 + $0x3a0] sm:$0xff]
    %v247 = vld [vmem:[#allocation7 + $0x3a8] sm:$0xff]
    %v248 = vld [vmem:[#allocation7 + $0x3b0] sm:$0xff]
    %v249 = vld [vmem:[#allocation7 + $0x3b8] sm:$0xff]
    %v250 = vld [vmem:[#allocation7 + $0x3c0] sm:$0xff]
    %v251 = vld [vmem:[#allocation7 + $0x3c8] sm:$0xff]
    %v252 = vld [vmem:[#allocation7 + $0x3d0] sm:$0xff]
    %v253 = vld [vmem:[#allocation7 + $0x3d8] sm:$0xff]
    %v254 = vld [vmem:[#allocation7 + $0x3e0] sm:$0xff]
    %v255 = vld [vmem:[#allocation7 + $0x3e8] sm:$0xff]
    %v256 = vld [vmem:[#allocation7 + $0x3f0] sm:$0xff]
    %v257 = vld [vmem:[#allocation7 + $0x3f8] sm:$0xff]
    %v258 = vld [vmem:[%s3] sm:$0xf]
    %v260 = vlaneseq
    %v261 = vshrl.u32 %v260, 7
    %v262 = vsub.s32 0, %v261
    %v263 = vrot.slane %v258, %v262
    %v264 = vlaneseq
    %v265 = vshrl.u32 %v264, 7
    %v266 = vsub.s32 1, %v265
    %v267 = vrot.slane %v258, %v266
    %v268 = vlaneseq
    %v269 = vshrl.u32 %v268, 7
    %v270 = vsub.s32 2, %v269
    %v271 = vrot.slane %v258, %v270
    %v272 = vlaneseq
    %v273 = vshrl.u32 %v272, 7
    %v274 = vsub.s32 3, %v273
    %v275 = vrot.slane %v258, %v274
    %v280 = vld [vmem:[#allocation3] sm:$0xff]
    %v281 = vld [vmem:[#allocation3 + $0x8] sm:$0xff]
    %v282 = vld [vmem:[#allocation3 + $0x10] sm:$0xff]
    %v283 = vld [vmem:[#allocation3 + $0x18] sm:$0xff]
    %284 = vmatprep.subr.mxu0 %v127
    %285 = vmatpush1.msra.mxu0 %v126
    %286 = vmatprep.subr.mxu0 %v123
    %287 = vmatpush1.msra.mxu0 %v122
    %288 = vmatprep.subr.mxu0 %v119
    %289 = vmatpush1.msra.mxu0 %v118
    %290 = vmatprep.subr.mxu0 %v115
    %291 = vmatpush1.msra.mxu0 %v114
    %292 = vmatprep.subr.mxu0 %v111
    %293 = vmatpush1.msra.mxu0 %v110
    %294 = vmatprep.subr.mxu0 %v107
    %295 = vmatpush1.msra.mxu0 %v106
    %296 = vmatprep.subr.mxu0 %v103
    %297 = vmatpush1.msra.mxu0 %v102
    %298 = vmatprep.subr.mxu0 %v99
    %299 = vmatpush1.msra.mxu0 %v98
    %300 = vmatprep.subr.mxu0 %v95
    %301 = vmatpush1.msra.mxu0 %v94
    %302 = vmatprep.subr.mxu0 %v91
    %303 = vmatpush1.msra.mxu0 %v90
    %304 = vmatprep.subr.mxu0 %v87
    %305 = vmatpush1.msra.mxu0 %v86
    %306 = vmatprep.subr.mxu0 %v83
    %307 = vmatpush1.msra.mxu0 %v82
    %308 = vmatprep.subr.mxu0 %v79
    %309 = vmatpush1.msra.mxu0 %v78
    %310 = vmatprep.subr.mxu0 %v75
    %311 = vmatpush1.msra.mxu0 %v74
    %312 = vmatprep.subr.mxu0 %v71
    %313 = vmatpush1.msra.mxu0 %v70
    %314 = vmatprep.subr.mxu0 %v67
    %315 = vmatpush1.msra.mxu0 %v66
    %316 = vmatprep.subr.mxu0 0.0
    %317 = vmatpush2.msra.mxu0 0.0
    %318 = vmatprep.subr.mxu0 0.0
    %319 = vmatpush2.msra.mxu0 0.0
    %320 = vmatprep.subr.mxu0 0.0
    %321 = vmatpush2.msra.mxu0 0.0
    %322 = vmatprep.subr.mxu0 0.0
    %323 = vmatpush2.msra.mxu0 0.0
    %324 = vmatprep.subr.mxu0 0.0
    %325 = vmatpush2.msra.mxu0 0.0
    %326 = vmatprep.subr.mxu0 0.0
    %327 = vmatpush2.msra.mxu0 0.0
    %328 = vmatprep.subr.mxu0 0.0
    %329 = vmatpush2.msra.mxu0 0.0
    %330 = vmatprep.subr.mxu0 0.0
    %331 = vmatpush2.msra.mxu0 0.0
    %332 = vmatprep.subr.mxu0 0.0
    %333 = vmatpush2.msra.mxu0 0.0
    %334 = vmatprep.subr.mxu0 0.0
    %335 = vmatpush2.msra.mxu0 0.0
    %336 = vmatprep.subr.mxu0 0.0
    %337 = vmatpush2.msra.mxu0 0.0
    %338 = vmatprep.subr.mxu0 0.0
    %339 = vmatpush2.msra.mxu0 0.0
    %340 = vmatprep.subr.mxu0 0.0
    %341 = vmatpush2.msra.mxu0 0.0
    %342 = vmatprep.subr.mxu0 0.0
    %343 = vmatpush2.msra.mxu0 0.0
    %344 = vmatprep.subr.mxu0 0.0
    %345 = vmatpush2.msra.mxu0 0.0
    %346 = vmatprep.subr.mxu0 0.0
    %347 = vmatpush2.msra.mxu0 0.0
    %348 = vmatprep.mubr.f32.mxu0 0.0
    %349 = vmatmul.mubr.f32.gmra.mxu0 0.0
    %v350 = vpop.f32.mrf.mxu0
    %v351 = vadd.f32 0.0, %v350
    %v352 = vpop.f32.mrf.mxu0
    %v353 = vadd.f32 0.0, %v352
    %354 = vdwg.mxu0
    %355 = vmatprep.subr.mxu0 %v129
    %356 = vmatpush1.msra.mxu0 %v128
    %357 = vmatprep.subr.mxu0 %v125
    %358 = vmatpush1.msra.mxu0 %v124
    %359 = vmatprep.subr.mxu0 %v121
    %360 = vmatpush1.msra.mxu0 %v120
    %361 = vmatprep.subr.mxu0 %v117
    %362 = vmatpush1.msra.mxu0 %v116
    %363 = vmatprep.subr.mxu0 %v113
    %364 = vmatpush1.msra.mxu0 %v112
    %365 = vmatprep.subr.mxu0 %v109
    %366 = vmatpush1.msra.mxu0 %v108
    %367 = vmatprep.subr.mxu0 %v105
    %368 = vmatpush1.msra.mxu0 %v104
    %369 = vmatprep.subr.mxu0 %v101
    %370 = vmatpush1.msra.mxu0 %v100
    %371 = vmatprep.subr.mxu0 %v97
    %372 = vmatpush1.msra.mxu0 %v96
    %373 = vmatprep.subr.mxu0 %v93
    %374 = vmatpush1.msra.mxu0 %v92
    %375 = vmatprep.subr.mxu0 %v89
    %376 = vmatpush1.msra.mxu0 %v88
    %377 = vmatprep.subr.mxu0 %v85
    %378 = vmatpush1.msra.mxu0 %v84
    %379 = vmatprep.subr.mxu0 %v81
    %380 = vmatpush1.msra.mxu0 %v80
    %381 = vmatprep.subr.mxu0 %v77
    %382 = vmatpush1.msra.mxu0 %v76
    %383 = vmatprep.subr.mxu0 %v73
    %384 = vmatpush1.msra.mxu0 %v72
    %385 = vmatprep.subr.mxu0 %v69
    %386 = vmatpush1.msra.mxu0 %v68
    %387 = vmatprep.subr.mxu0 0.0
    %388 = vmatpush2.msra.mxu0 0.0
    %389 = vmatprep.subr.mxu0 0.0
    %390 = vmatpush2.msra.mxu0 0.0
    %391 = vmatprep.subr.mxu0 0.0
    %392 = vmatpush2.msra.mxu0 0.0
    %393 = vmatprep.subr.mxu0 0.0
    %394 = vmatpush2.msra.mxu0 0.0
    %395 = vmatprep.subr.mxu0 0.0
    %396 = vmatpush2.msra.mxu0 0.0
    %397 = vmatprep.subr.mxu0 0.0
    %398 = vmatpush2.msra.mxu0 0.0
    %399 = vmatprep.subr.mxu0 0.0
    %400 = vmatpush2.msra.mxu0 0.0
    %401 = vmatprep.subr.mxu0 0.0
    %402 = vmatpush2.msra.mxu0 0.0
    %403 = vmatprep.subr.mxu0 0.0
    %404 = vmatpush2.msra.mxu0 0.0
    %405 = vmatprep.subr.mxu0 0.0
    %406 = vmatpush2.msra.mxu0 0.0
    %407 = vmatprep.subr.mxu0 0.0
    %408 = vmatpush2.msra.mxu0 0.0
    %409 = vmatprep.subr.mxu0 0.0
    %410 = vmatpush2.msra.mxu0 0.0
    %411 = vmatprep.subr.mxu0 0.0
    %412 = vmatpush2.msra.mxu0 0.0
    %413 = vmatprep.subr.mxu0 0.0
    %414 = vmatpush2.msra.mxu0 0.0
    %415 = vmatprep.subr.mxu0 0.0
    %416 = vmatpush2.msra.mxu0 0.0
    %417 = vmatprep.subr.mxu0 0.0
    %418 = vmatpush2.msra.mxu0 0.0
    %419 = vmatprep.mubr.f32.mxu0 0.0
    %420 = vmatmul.mubr.f32.gmra.mxu0 0.0
    %v421 = vpop.f32.mrf.mxu0
    %v422 = vadd.f32 0.0, %v421
    %v423 = vpop.f32.mrf.mxu0
    %v424 = vadd.f32 0.0, %v423
    %425 = vdwg.mxu0
    %v426 = vadd.f32 %v280, %v351
    %v427 = vadd.f32 %v281, %v353
    %v428 = vadd.f32 %v282, %v422
    %v429 = vadd.f32 %v283, %v424
    %v430 = vxor.u32 %v426, 2147483648
    %v431 = vmul.f32 %v430, 1.442695
    %v432 = vpow.pop %v431
    %v433 = vadd.f32 %v432, 1.0
    %v434 = vrcp.pop %v433
    %v435 = vmul.f32 1.0, %v434
    %v436 = vxor.u32 %v427, 2147483648
    %v437 = vmul.f32 %v436, 1.442695
    %v438 = vpow.pop %v437
    %v439 = vadd.f32 %v438, 1.0
    %v440 = vrcp.pop %v439
    %v441 = vmul.f32 1.0, %v440
    %v442 = vtanh.pop %v428
    %v443 = vxor.u32 %v429, 2147483648
    %v444 = vmul.f32 %v443, 1.442695
    %v445 = vpow.pop %v444
    %v446 = vadd.f32 %v445, 1.0
    %v447 = vrcp.pop %v446
    %v448 = vmul.f32 1.0, %v447
    %v449 = vmul.f32 %v441, 0.0
    %v450 = vmul.f32 %v435, %v442
    %v451 = vadd.f32 %v449, %v450
    %v452 = vtanh.pop %v451
    %v453 = vmul.f32 %v448, %v452
    %454 = vmatprep.subr.mxu0 %v191
    %455 = vmatpush1.msra.mxu0 %v190
    %456 = vmatprep.subr.mxu0 %v187
    %457 = vmatpush1.msra.mxu0 %v186
    %458 = vmatprep.subr.mxu0 %v183
    %459 = vmatpush1.msra.mxu0 %v182
    %460 = vmatprep.subr.mxu0 %v179
    %461 = vmatpush1.msra.mxu0 %v178
    %462 = vmatprep.subr.mxu0 %v175
    %463 = vmatpush1.msra.mxu0 %v174
    %464 = vmatprep.subr.mxu0 %v171
    %465 = vmatpush1.msra.mxu0 %v170
    %466 = vmatprep.subr.mxu0 %v167
    %467 = vmatpush1.msra.mxu0 %v166
    %468 = vmatprep.subr.mxu0 %v163
    %469 = vmatpush1.msra.mxu0 %v162
    %470 = vmatprep.subr.mxu0 %v159
    %471 = vmatpush1.msra.mxu0 %v158
    %472 = vmatprep.subr.mxu0 %v155
    %473 = vmatpush1.msra.mxu0 %v154
    %474 = vmatprep.subr.mxu0 %v151
    %475 = vmatpush1.msra.mxu0 %v150
    %476 = vmatprep.subr.mxu0 %v147
    %477 = vmatpush1.msra.mxu0 %v146
    %478 = vmatprep.subr.mxu0 %v143
    %479 = vmatpush1.msra.mxu0 %v142
    %480 = vmatprep.subr.mxu0 %v139
    %481 = vmatpush1.msra.mxu0 %v138
    %482 = vmatprep.subr.mxu0 %v135
    %483 = vmatpush1.msra.mxu0 %v134
    %484 = vmatprep.subr.mxu0 %v131
    %485 = vmatpush1.msra.mxu0 %v130
    %486 = vmatprep.subr.mxu0 %v255
    %487 = vmatpush2.msra.mxu0 %v254
    %488 = vmatprep.subr.mxu0 %v251
    %489 = vmatpush2.msra.mxu0 %v250
    %490 = vmatprep.subr.mxu0 %v247
    %491 = vmatpush2.msra.mxu0 %v246
    %492 = vmatprep.subr.mxu0 %v243
    %493 = vmatpush2.msra.mxu0 %v242
    %494 = vmatprep.subr.mxu0 %v239
    %495 = vmatpush2.msra.mxu0 %v238
    %496 = vmatprep.subr.mxu0 %v235
    %497 = vmatpush2.msra.mxu0 %v234
    %498 = vmatprep.subr.mxu0 %v231
    %499 = vmatpush2.msra.mxu0 %v230
    %500 = vmatprep.subr.mxu0 %v227
    %501 = vmatpush2.msra.mxu0 %v226
    %502 = vmatprep.subr.mxu0 %v223
    %503 = vmatpush2.msra.mxu0 %v222
    %504 = vmatprep.subr.mxu0 %v219
    %505 = vmatpush2.msra.mxu0 %v218
    %506 = vmatprep.subr.mxu0 %v215
    %507 = vmatpush2.msra.mxu0 %v214
    %508 = vmatprep.subr.mxu0 %v211
    %509 = vmatpush2.msra.mxu0 %v210
    %510 = vmatprep.subr.mxu0 %v207
    %511 = vmatpush2.msra.mxu0 %v206
    %512 = vmatprep.subr.mxu0 %v203
    %513 = vmatpush2.msra.mxu0 %v202
    %514 = vmatprep.subr.mxu0 %v199
    %515 = vmatpush2.msra.mxu0 %v198
    %516 = vmatprep.subr.mxu0 %v195
    %517 = vmatpush2.msra.mxu0 %v194
    %518 = vmatprep.mubr.f32.mxu0 0.0
    %519 = vmatmul.mubr.f32.gmra.mxu0 %v453
    %v520 = vpop.f32.mrf.mxu0
    %v521 = vadd.f32 %v263, %v520
    %v522 = vpop.f32.mrf.mxu0
    %v523 = vadd.f32 %v267, %v522
    %524 = vdwg.mxu0
    %525 = vmatprep.subr.mxu0 %v193
    %526 = vmatpush1.msra.mxu0 %v192
    %527 = vmatprep.subr.mxu0 %v189
    %528 = vmatpush1.msra.mxu0 %v188
    %529 = vmatprep.subr.mxu0 %v185
    %530 = vmatpush1.msra.mxu0 %v184
    %531 = vmatprep.subr.mxu0 %v181
    %532 = vmatpush1.msra.mxu0 %v180
    %533 = vmatprep.subr.mxu0 %v177
    %534 = vmatpush1.msra.mxu0 %v176
    %535 = vmatprep.subr.mxu0 %v173
    %536 = vmatpush1.msra.mxu0 %v172
    %537 = vmatprep.subr.mxu0 %v169
    %538 = vmatpush1.msra.mxu0 %v168
    %539 = vmatprep.subr.mxu0 %v165
    %540 = vmatpush1.msra.mxu0 %v164
    %541 = vmatprep.subr.mxu0 %v161
    %542 = vmatpush1.msra.mxu0 %v160
    %543 = vmatprep.subr.mxu0 %v157
    %544 = vmatpush1.msra.mxu0 %v156
    %545 = vmatprep.subr.mxu0 %v153
    %546 = vmatpush1.msra.mxu0 %v152
    %547 = vmatprep.subr.mxu0 %v149
    %548 = vmatpush1.msra.mxu0 %v148
    %549 = vmatprep.subr.mxu0 %v145
    %550 = vmatpush1.msra.mxu0 %v144
    %551 = vmatprep.subr.mxu0 %v141
    %552 = vmatpush1.msra.mxu0 %v140
    %553 = vmatprep.subr.mxu0 %v137
    %554 = vmatpush1.msra.mxu0 %v136
    %555 = vmatprep.subr.mxu0 %v133
    %556 = vmatpush1.msra.mxu0 %v132
    %557 = vmatprep.subr.mxu0 %v257
    %558 = vmatpush2.msra.mxu0 %v256
    %559 = vmatprep.subr.mxu0 %v253
    %560 = vmatpush2.msra.mxu0 %v252
    %561 = vmatprep.subr.mxu0 %v249
    %562 = vmatpush2.msra.mxu0 %v248
    %563 = vmatprep.subr.mxu0 %v245
    %564 = vmatpush2.msra.mxu0 %v244
    %565 = vmatprep.subr.mxu0 %v241
    %566 = vmatpush2.msra.mxu0 %v240
    %567 = vmatprep.subr.mxu0 %v237
    %568 = vmatpush2.msra.mxu0 %v236
    %569 = vmatprep.subr.mxu0 %v233
    %570 = vmatpush2.msra.mxu0 %v232
    %571 = vmatprep.subr.mxu0 %v229
    %572 = vmatpush2.msra.mxu0 %v228
    %573 = vmatprep.subr.mxu0 %v225
    %574 = vmatpush2.msra.mxu0 %v224
    %575 = vmatprep.subr.mxu0 %v221
    %576 = vmatpush2.msra.mxu0 %v220
    %577 = vmatprep.subr.mxu0 %v217
    %578 = vmatpush2.msra.mxu0 %v216
    %579 = vmatprep.subr.mxu0 %v213
    %580 = vmatpush2.msra.mxu0 %v212
    %581 = vmatprep.subr.mxu0 %v209
    %582 = vmatpush2.msra.mxu0 %v208
    %583 = vmatprep.subr.mxu0 %v205
    %584 = vmatpush2.msra.mxu0 %v204
    %585 = vmatprep.subr.mxu0 %v201
    %586 = vmatpush2.msra.mxu0 %v200
    %587 = vmatprep.subr.mxu0 %v197
    %588 = vmatpush2.msra.mxu0 %v196
    %589 = vmatprep.mubr.f32.mxu0 0.0
    %590 = vmatmul.mubr.f32.gmra.mxu0 %v453
    %v591 = vpop.f32.mrf.mxu0
    %v592 = vadd.f32 %v271, %v591
    %v593 = vpop.f32.mrf.mxu0
    %v594 = vadd.f32 %v275, %v593
    %595 = vdwg.mxu0
    %v596 = vxor.u32 %v521, 2147483648
    %v597 = vmul.f32 %v596, 1.442695
    %v598 = vpow.pop %v597
    %v599 = vadd.f32 %v598, 1.0
    %v600 = vrcp.pop %v599
    %v601 = vmul.f32 1.0, %v600
    %v602 = vxor.u32 %v523, 2147483648
    %v603 = vmul.f32 %v602, 1.442695
    %v604 = vpow.pop %v603
    %v605 = vadd.f32 %v604, 1.0
    %v606 = vrcp.pop %v605
    %v607 = vmul.f32 1.0, %v606
    %v608 = vtanh.pop %v592
    %v609 = vxor.u32 %v594, 2147483648
    %v610 = vmul.f32 %v609, 1.442695
    %v611 = vpow.pop %v610
    %v612 = vadd.f32 %v611, 1.0
    %v613 = vrcp.pop %v612
    %v614 = vmul.f32 1.0, %v613
    %v615 = vmul.f32 %v607, 0.0
    %v616 = vmul.f32 %v601, %v608
    %v617 = vadd.f32 %v615, %v616
    %v618 = vtanh.pop %v617
    %v619 = vmul.f32 %v614, %v618
    %s620 = scalar_lea.vmem [#allocation3], 32
    %v621 = vld [vmem:[%s620] sm:$0xff]
    %v622 = vld [vmem:[%s620 + $0x8] sm:$0xff]
    %v623 = vld [vmem:[%s620 + $0x10] sm:$0xff]
    %v624 = vld [vmem:[%s620 + $0x18] sm:$0xff]
    %625 = vmatprep.subr.mxu0 %v127
    %626 = vmatpush1.msra.mxu0 %v126
    %627 = vmatprep.subr.mxu0 %v123
    %628 = vmatpush1.msra.mxu0 %v122
    %629 = vmatprep.subr.mxu0 %v119
    %630 = vmatpush1.msra.mxu0 %v118
    %631 = vmatprep.subr.mxu0 %v115
    %632 = vmatpush1.msra.mxu0 %v114
    %633 = vmatprep.subr.mxu0 %v111
    %634 = vmatpush1.msra.mxu0 %v110
    %635 = vmatprep.subr.mxu0 %v107
    %636 = vmatpush1.msra.mxu0 %v106
    %637 = vmatprep.subr.mxu0 %v103
    %638 = vmatpush1.msra.mxu0 %v102
    %639 = vmatprep.subr.mxu0 %v99
    %640 = vmatpush1.msra.mxu0 %v98
    %641 = vmatprep.subr.mxu0 %v95
    %642 = vmatpush1.msra.mxu0 %v94
    %643 = vmatprep.subr.mxu0 %v91
    %644 = vmatpush1.msra.mxu0 %v90
    %645 = vmatprep.subr.mxu0 %v87
    %646 = vmatpush1.msra.mxu0 %v86
    %647 = vmatprep.subr.mxu0 %v83
    %648 = vmatpush1.msra.mxu0 %v82
    %649 = vmatprep.subr.mxu0 %v79
    %650 = vmatpush1.msra.mxu0 %v78
    %651 = vmatprep.subr.mxu0 %v75
    %652 = vmatpush1.msra.mxu0 %v74
    %653 = vmatprep.subr.mxu0 %v71
    %654 = vmatpush1.msra.mxu0 %v70
    %655 = vmatprep.subr.mxu0 %v67
    %656 = vmatpush1.msra.mxu0 %v66
    %657 = vmatprep.subr.mxu0 0.0
    %658 = vmatpush2.msra.mxu0 0.0
    %659 = vmatprep.subr.mxu0 0.0
    %660 = vmatpush2.msra.mxu0 0.0
    %661 = vmatprep.subr.mxu0 0.0
    %662 = vmatpush2.msra.mxu0 0.0
    %663 = vmatprep.subr.mxu0 0.0
    %664 = vmatpush2.msra.mxu0 0.0
    %665 = vmatprep.subr.mxu0 0.0
    %666 = vmatpush2.msra.mxu0 0.0
    %667 = vmatprep.subr.mxu0 0.0
    %668 = vmatpush2.msra.mxu0 0.0
    %669 = vmatprep.subr.mxu0 0.0
    %670 = vmatpush2.msra.mxu0 0.0
    %671 = vmatprep.subr.mxu0 0.0
    %672 = vmatpush2.msra.mxu0 0.0
    %673 = vmatprep.subr.mxu0 0.0
    %674 = vmatpush2.msra.mxu0 0.0
    %675 = vmatprep.subr.mxu0 0.0
    %676 = vmatpush2.msra.mxu0 0.0
    %677 = vmatprep.subr.mxu0 0.0
    %678 = vmatpush2.msra.mxu0 0.0
    %679 = vmatprep.subr.mxu0 0.0
    %680 = vmatpush2.msra.mxu0 0.0
    %681 = vmatprep.subr.mxu0 0.0
    %682 = vmatpush2.msra.mxu0 0.0
    %683 = vmatprep.subr.mxu0 0.0
    %684 = vmatpush2.msra.mxu0 0.0
    %685 = vmatprep.subr.mxu0 0.0
    %686 = vmatpush2.msra.mxu0 0.0
    %687 = vmatprep.subr.mxu0 0.0
    %688 = vmatpush2.msra.mxu0 0.0
    %689 = vmatprep.mubr.f32.mxu0 0.0
    %690 = vmatmul.mubr.f32.gmra.mxu0 %v453
    %v691 = vpop.f32.mrf.mxu0
    %v692 = vadd.f32 0.0, %v691
    %v693 = vpop.f32.mrf.mxu0
    %v694 = vadd.f32 0.0, %v693
    %695 = vdwg.mxu0
    %696 = vmatprep.subr.mxu0 %v129
    %697 = vmatpush1.msra.mxu0 %v128
    %698 = vmatprep.subr.mxu0 %v125
    %699 = vmatpush1.msra.mxu0 %v124
    %700 = vmatprep.subr.mxu0 %v121
    %701 = vmatpush1.msra.mxu0 %v120
    %702 = vmatprep.subr.mxu0 %v117
    %703 = vmatpush1.msra.mxu0 %v116
    %704 = vmatprep.subr.mxu0 %v113
    %705 = vmatpush1.msra.mxu0 %v112
    %706 = vmatprep.subr.mxu0 %v109
    %707 = vmatpush1.msra.mxu0 %v108
    %708 = vmatprep.subr.mxu0 %v105
    %709 = vmatpush1.msra.mxu0 %v104
    %710 = vmatprep.subr.mxu0 %v101
    %711 = vmatpush1.msra.mxu0 %v100
    %712 = vmatprep.subr.mxu0 %v97
    %713 = vmatpush1.msra.mxu0 %v96
    %714 = vmatprep.subr.mxu0 %v93
    %715 = vmatpush1.msra.mxu0 %v92
    %716 = vmatprep.subr.mxu0 %v89
    %717 = vmatpush1.msra.mxu0 %v88
    %718 = vmatprep.subr.mxu0 %v85
    %719 = vmatpush1.msra.mxu0 %v84
    %720 = vmatprep.subr.mxu0 %v81
    %721 = vmatpush1.msra.mxu0 %v80
    %722 = vmatprep.subr.mxu0 %v77
    %723 = vmatpush1.msra.mxu0 %v76
    %724 = vmatprep.subr.mxu0 %v73
    %725 = vmatpush1.msra.mxu0 %v72
    %726 = vmatprep.subr.mxu0 %v69
    %727 = vmatpush1.msra.mxu0 %v68
    %728 = vmatprep.subr.mxu0 0.0
    %729 = vmatpush2.msra.mxu0 0.0
    %730 = vmatprep.subr.mxu0 0.0
    %731 = vmatpush2.msra.mxu0 0.0
    %732 = vmatprep.subr.mxu0 0.0
    %733 = vmatpush2.msra.mxu0 0.0
    %734 = vmatprep.subr.mxu0 0.0
    %735 = vmatpush2.msra.mxu0 0.0
    %736 = vmatprep.subr.mxu0 0.0
    %737 = vmatpush2.msra.mxu0 0.0
    %738 = vmatprep.subr.mxu0 0.0
    %739 = vmatpush2.msra.mxu0 0.0
    %740 = vmatprep.subr.mxu0 0.0
    %741 = vmatpush2.msra.mxu0 0.0
    %742 = vmatprep.subr.mxu0 0.0
    %743 = vmatpush2.msra.mxu0 0.0
    %744 = vmatprep.subr.mxu0 0.0
    %745 = vmatpush2.msra.mxu0 0.0
    %746 = vmatprep.subr.mxu0 0.0
    %747 = vmatpush2.msra.mxu0 0.0
    %748 = vmatprep.subr.mxu0 0.0
    %749 = vmatpush2.msra.mxu0 0.0
    %750 = vmatprep.subr.mxu0 0.0
    %751 = vmatpush2.msra.mxu0 0.0
    %752 = vmatprep.subr.mxu0 0.0
    %753 = vmatpush2.msra.mxu0 0.0
    %754 = vmatprep.subr.mxu0 0.0
    %755 = vmatpush2.msra.mxu0 0.0
    %756 = vmatprep.subr.mxu0 0.0
    %757 = vmatpush2.msra.mxu0 0.0
    %758 = vmatprep.subr.mxu0 0.0
    %759 = vmatpush2.msra.mxu0 0.0
    %760 = vmatprep.mubr.f32.mxu0 0.0
    %761 = vmatmul.mubr.f32.gmra.mxu0 %v453
    %v762 = vpop.f32.mrf.mxu0
    %v763 = vadd.f32 0.0, %v762
    %v764 = vpop.f32.mrf.mxu0
    %v765 = vadd.f32 0.0, %v764
    %766 = vdwg.mxu0
    %v767 = vadd.f32 %v621, %v692
    %v768 = vadd.f32 %v622, %v694
    %v769 = vadd.f32 %v623, %v763
    %v770 = vadd.f32 %v624, %v765
    %v771 = vxor.u32 %v767, 2147483648
    %v772 = vmul.f32 %v771, 1.442695
    %v773 = vpow.pop %v772
    %v774 = vadd.f32 %v773, 1.0
    %v775 = vrcp.pop %v774
    %v776 = vmul.f32 1.0, %v775
    %v777 = vxor.u32 %v768, 2147483648
    %v778 = vmul.f32 %v777, 1.442695
    %v779 = vpow.pop %v778
    %v780 = vadd.f32 %v779, 1.0
    %v781 = vrcp.pop %v780
    %v782 = vmul.f32 1.0, %v781
    %v783 = vtanh.pop %v769
    %v784 = vxor.u32 %v770, 2147483648
    %v785 = vmul.f32 %v784, 1.442695
    %v786 = vpow.pop %v785
    %v787 = vadd.f32 %v786, 1.0
    %v788 = vrcp.pop %v787
    %v789 = vmul.f32 1.0, %v788
    %v790 = vmul.f32 %v782, %v451
    %v791 = vmul.f32 %v776, %v783
    %v792 = vadd.f32 %v790, %v791
    %v793 = vtanh.pop %v792
    %v794 = vmul.f32 %v789, %v793
    %795 = vmatprep.subr.mxu0 %v191
    %796 = vmatpush1.msra.mxu0 %v190
    %797 = vmatprep.subr.mxu0 %v187
    %798 = vmatpush1.msra.mxu0 %v186
    %799 = vmatprep.subr.mxu0 %v183
    %800 = vmatpush1.msra.mxu0 %v182
    %801 = vmatprep.subr.mxu0 %v179
    %802 = vmatpush1.msra.mxu0 %v178
    %803 = vmatprep.subr.mxu0 %v175
    %804 = vmatpush1.msra.mxu0 %v174
    %805 = vmatprep.subr.mxu0 %v171
    %806 = vmatpush1.msra.mxu0 %v170
    %807 = vmatprep.subr.mxu0 %v167
    %808 = vmatpush1.msra.mxu0 %v166
    %809 = vmatprep.subr.mxu0 %v163
    %810 = vmatpush1.msra.mxu0 %v162
    %811 = vmatprep.subr.mxu0 %v159
    %812 = vmatpush1.msra.mxu0 %v158
    %813 = vmatprep.subr.mxu0 %v155
    %814 = vmatpush1.msra.mxu0 %v154
    %815 = vmatprep.subr.mxu0 %v151
    %816 = vmatpush1.msra.mxu0 %v150
    %817 = vmatprep.subr.mxu0 %v147
    %818 = vmatpush1.msra.mxu0 %v146
    %819 = vmatprep.subr.mxu0 %v143
    %820 = vmatpush1.msra.mxu0 %v142
    %821 = vmatprep.subr.mxu0 %v139
    %822 = vmatpush1.msra.mxu0 %v138
    %823 = vmatprep.subr.mxu0 %v135
    %824 = vmatpush1.msra.mxu0 %v134
    %825 = vmatprep.subr.mxu0 %v131
    %826 = vmatpush1.msra.mxu0 %v130
    %827 = vmatprep.subr.mxu0 %v255
    %828 = vmatpush2.msra.mxu0 %v254
    %829 = vmatprep.subr.mxu0 %v251
    %830 = vmatpush2.msra.mxu0 %v250
    %831 = vmatprep.subr.mxu0 %v247
    %832 = vmatpush2.msra.mxu0 %v246
    %833 = vmatprep.subr.mxu0 %v243
    %834 = vmatpush2.msra.mxu0 %v242
    %835 = vmatprep.subr.mxu0 %v239
    %836 = vmatpush2.msra.mxu0 %v238
    %837 = vmatprep.subr.mxu0 %v235
    %838 = vmatpush2.msra.mxu0 %v234
    %839 = vmatprep.subr.mxu0 %v231
    %840 = vmatpush2.msra.mxu0 %v230
    %841 = vmatprep.subr.mxu0 %v227
    %842 = vmatpush2.msra.mxu0 %v226
    %843 = vmatprep.subr.mxu0 %v223
    %844 = vmatpush2.msra.mxu0 %v222
    %845 = vmatprep.subr.mxu0 %v219
    %846 = vmatpush2.msra.mxu0 %v218
    %847 = vmatprep.subr.mxu0 %v215
    %848 = vmatpush2.msra.mxu0 %v214
    %849 = vmatprep.subr.mxu0 %v211
    %850 = vmatpush2.msra.mxu0 %v210
    %851 = vmatprep.subr.mxu0 %v207
    %852 = vmatpush2.msra.mxu0 %v206
    %853 = vmatprep.subr.mxu0 %v203
    %854 = vmatpush2.msra.mxu0 %v202
    %855 = vmatprep.subr.mxu0 %v199
    %856 = vmatpush2.msra.mxu0 %v198
    %857 = vmatprep.subr.mxu0 %v195
    %858 = vmatpush2.msra.mxu0 %v194
    %859 = vmatprep.mubr.f32.mxu0 %v619
    %860 = vmatmul.mubr.f32.gmra.mxu0 %v794
    %v861 = vpop.f32.mrf.mxu0
    %v862 = vadd.f32 %v263, %v861
    %v863 = vpop.f32.mrf.mxu0
    %v864 = vadd.f32 %v267, %v863
    %865 = vdwg.mxu0
    %866 = vmatprep.subr.mxu0 %v193
    %867 = vmatpush1.msra.mxu0 %v192
    %868 = vmatprep.subr.mxu0 %v189
    %869 = vmatpush1.msra.mxu0 %v188
    %870 = vmatprep.subr.mxu0 %v185
    %871 = vmatpush1.msra.mxu0 %v184
    %872 = vmatprep.subr.mxu0 %v181
    %873 = vmatpush1.msra.mxu0 %v180
    %874 = vmatprep.subr.mxu0 %v177
    %875 = vmatpush1.msra.mxu0 %v176
    %876 = vmatprep.subr.mxu0 %v173
    %877 = vmatpush1.msra.mxu0 %v172
    %878 = vmatprep.subr.mxu0 %v169
    %879 = vmatpush1.msra.mxu0 %v168
    %880 = vmatprep.subr.mxu0 %v165
    %881 = vmatpush1.msra.mxu0 %v164
    %882 = vmatprep.subr.mxu0 %v161
    %883 = vmatpush1.msra.mxu0 %v160
    %884 = vmatprep.subr.mxu0 %v157
    %885 = vmatpush1.msra.mxu0 %v156
    %886 = vmatprep.subr.mxu0 %v153
    %887 = vmatpush1.msra.mxu0 %v152
    %888 = vmatprep.subr.mxu0 %v149
    %889 = vmatpush1.msra.mxu0 %v148
    %890 = vmatprep.subr.mxu0 %v145
    %891 = vmatpush1.msra.mxu0 %v144
    %892 = vmatprep.subr.mxu0 %v141
    %893 = vmatpush1.msra.mxu0 %v140
    %894 = vmatprep.subr.mxu0 %v137
    %895 = vmatpush1.msra.mxu0 %v136
    %896 = vmatprep.subr.mxu0 %v133
    %897 = vmatpush1.msra.mxu0 %v132
    %898 = vmatprep.subr.mxu0 %v257
    %899 = vmatpush2.msra.mxu0 %v256
    %900 = vmatprep.subr.mxu0 %v253
    %901 = vmatpush2.msra.mxu0 %v252
    %902 = vmatprep.subr.mxu0 %v249
    %903 = vmatpush2.msra.mxu0 %v248
    %904 = vmatprep.subr.mxu0 %v245
    %905 = vmatpush2.msra.mxu0 %v244
    %906 = vmatprep.subr.mxu0 %v241
    %907 = vmatpush2.msra.mxu0 %v240
    %908 = vmatprep.subr.mxu0 %v237
    %909 = vmatpush2.msra.mxu0 %v236
    %910 = vmatprep.subr.mxu0 %v233
    %911 = vmatpush2.msra.mxu0 %v232
    %912 = vmatprep.subr.mxu0 %v229
    %913 = vmatpush2.msra.mxu0 %v228
    %914 = vmatprep.subr.mxu0 %v225
    %915 = vmatpush2.msra.mxu0 %v224
    %916 = vmatprep.subr.mxu0 %v221
    %917 = vmatpush2.msra.mxu0 %v220
    %918 = vmatprep.subr.mxu0 %v217
    %919 = vmatpush2.msra.mxu0 %v216
    %920 = vmatprep.subr.mxu0 %v213
    %921 = vmatpush2.msra.mxu0 %v212
    %922 = vmatprep.subr.mxu0 %v209
    %923 = vmatpush2.msra.mxu0 %v208
    %924 = vmatprep.subr.mxu0 %v205
    %925 = vmatpush2.msra.mxu0 %v204
    %926 = vmatprep.subr.mxu0 %v201
    %927 = vmatpush2.msra.mxu0 %v200
    %928 = vmatprep.subr.mxu0 %v197
    %929 = vmatpush2.msra.mxu0 %v196
    %930 = vmatprep.mubr.f32.mxu0 %v619
    %931 = vmatmul.mubr.f32.gmra.mxu0 %v794
    %v932 = vpop.f32.mrf.mxu0
    %v933 = vadd.f32 %v271, %v932
    %v934 = vpop.f32.mrf.mxu0
    %v935 = vadd.f32 %v275, %v934
    %936 = vdwg.mxu0
    %v937 = vxor.u32 %v862, 2147483648
    %v938 = vmul.f32 %v937, 1.442695
    %v939 = vpow.pop %v938
    %v940 = vadd.f32 %v939, 1.0
    %v941 = vrcp.pop %v940
    %v942 = vmul.f32 1.0, %v941
    %v943 = vxor.u32 %v864, 2147483648
    %v944 = vmul.f32 %v943, 1.442695
    %v945 = vpow.pop %v944
    %v946 = vadd.f32 %v945, 1.0
    %v947 = vrcp.pop %v946
    %v948 = vmul.f32 1.0, %v947
    %v949 = vtanh.pop %v933
    %v950 = vxor.u32 %v935, 2147483648
    %v951 = vmul.f32 %v950, 1.442695
    %v952 = vpow.pop %v951
    %v953 = vadd.f32 %v952, 1.0
    %v954 = vrcp.pop %v953
    %v955 = vmul.f32 1.0, %v954
    %v956 = vmul.f32 %v948, %v617
    %v957 = vmul.f32 %v942, %v949
    %v958 = vadd.f32 %v956, %v957
    %v959 = vtanh.pop %v958
    %v960 = vmul.f32 %v955, %v959
    %s961 = scalar_lea.vmem [#allocation3], 64
    %v962 = vld [vmem:[%s961] sm:$0xff]
    %v963 = vld [vmem:[%s961 + $0x8] sm:$0xff]
    %v964 = vld [vmem:[%s961 + $0x10] sm:$0xff]
    %v965 = vld [vmem:[%s961 + $0x18] sm:$0xff]
    %966 = vmatprep.subr.mxu0 %v127
    %967 = vmatpush1.msra.mxu0 %v126
    %968 = vmatprep.subr.mxu0 %v123
    %969 = vmatpush1.msra.mxu0 %v122
    %970 = vmatprep.subr.mxu0 %v119
    %971 = vmatpush1.msra.mxu0 %v118
    %972 = vmatprep.subr.mxu0 %v115
    %973 = vmatpush1.msra.mxu0 %v114
    %974 = vmatprep.subr.mxu0 %v111
    %975 = vmatpush1.msra.mxu0 %v110
    %976 = vmatprep.subr.mxu0 %v107
    %977 = vmatpush1.msra.mxu0 %v106
    %978 = vmatprep.subr.mxu0 %v103
    %979 = vmatpush1.msra.mxu0 %v102
    %980 = vmatprep.subr.mxu0 %v99
    %981 = vmatpush1.msra.mxu0 %v98
    %982 = vmatprep.subr.mxu0 %v95
    %983 = vmatpush1.msra.mxu0 %v94
    %984 = vmatprep.subr.mxu0 %v91
    %985 = vmatpush1.msra.mxu0 %v90
    %986 = vmatprep.subr.mxu0 %v87
    %987 = vmatpush1.msra.mxu0 %v86
    %988 = vmatprep.subr.mxu0 %v83
    %989 = vmatpush1.msra.mxu0 %v82
    %990 = vmatprep.subr.mxu0 %v79
    %991 = vmatpush1.msra.mxu0 %v78
    %992 = vmatprep.subr.mxu0 %v75
    %993 = vmatpush1.msra.mxu0 %v74
    %994 = vmatprep.subr.mxu0 %v71
    %995 = vmatpush1.msra.mxu0 %v70
    %996 = vmatprep.subr.mxu0 %v67
    %997 = vmatpush1.msra.mxu0 %v66
    %998 = vmatprep.subr.mxu0 0.0
    %999 = vmatpush2.msra.mxu0 0.0
    %1000 = vmatprep.subr.mxu0 0.0
    %1001 = vmatpush2.msra.mxu0 0.0
    %1002 = vmatprep.subr.mxu0 0.0
    %1003 = vmatpush2.msra.mxu0 0.0
    %1004 = vmatprep.subr.mxu0 0.0
    %1005 = vmatpush2.msra.mxu0 0.0
    %1006 = vmatprep.subr.mxu0 0.0
    %1007 = vmatpush2.msra.mxu0 0.0
    %1008 = vmatprep.subr.mxu0 0.0
    %1009 = vmatpush2.msra.mxu0 0.0
    %1010 = vmatprep.subr.mxu0 0.0
    %1011 = vmatpush2.msra.mxu0 0.0
    %1012 = vmatprep.subr.mxu0 0.0
    %1013 = vmatpush2.msra.mxu0 0.0
    %1014 = vmatprep.subr.mxu0 0.0
    %1015 = vmatpush2.msra.mxu0 0.0
    %1016 = vmatprep.subr.mxu0 0.0
    %1017 = vmatpush2.msra.mxu0 0.0
    %1018 = vmatprep.subr.mxu0 0.0
    %1019 = vmatpush2.msra.mxu0 0.0
    %1020 = vmatprep.subr.mxu0 0.0
    %1021 = vmatpush2.msra.mxu0 0.0
    %1022 = vmatprep.subr.mxu0 0.0
    %1023 = vmatpush2.msra.mxu0 0.0
    %1024 = vmatprep.subr.mxu0 0.0
    %1025 = vmatpush2.msra.mxu0 0.0
    %1026 = vmatprep.subr.mxu0 0.0
    %1027 = vmatpush2.msra.mxu0 0.0
    %1028 = vmatprep.subr.mxu0 0.0
    %1029 = vmatpush2.msra.mxu0 0.0
    %1030 = vmatprep.mubr.f32.mxu0 0.0
    %1031 = vmatmul.mubr.f32.gmra.mxu0 %v794
    %v1032 = vpop.f32.mrf.mxu0
    %v1033 = vadd.f32 0.0, %v1032
    %v1034 = vpop.f32.mrf.mxu0
    %v1035 = vadd.f32 0.0, %v1034
    %1036 = vdwg.mxu0
    %1037 = vmatprep.subr.mxu0 %v129
    %1038 = vmatpush1.msra.mxu0 %v128
    %1039 = vmatprep.subr.mxu0 %v125
    %1040 = vmatpush1.msra.mxu0 %v124
    %1041 = vmatprep.subr.mxu0 %v121
    %1042 = vmatpush1.msra.mxu0 %v120
    %1043 = vmatprep.subr.mxu0 %v117
    %1044 = vmatpush1.msra.mxu0 %v116
    %1045 = vmatprep.subr.mxu0 %v113
    %1046 = vmatpush1.msra.mxu0 %v112
    %1047 = vmatprep.subr.mxu0 %v109
    %1048 = vmatpush1.msra.mxu0 %v108
    %1049 = vmatprep.subr.mxu0 %v105
    %1050 = vmatpush1.msra.mxu0 %v104
    %1051 = vmatprep.subr.mxu0 %v101
    %1052 = vmatpush1.msra.mxu0 %v100
    %1053 = vmatprep.subr.mxu0 %v97
    %1054 = vmatpush1.msra.mxu0 %v96
    %1055 = vmatprep.subr.mxu0 %v93
    %1056 = vmatpush1.msra.mxu0 %v92
    %1057 = vmatprep.subr.mxu0 %v89
    %1058 = vmatpush1.msra.mxu0 %v88
    %1059 = vmatprep.subr.mxu0 %v85
    %1060 = vmatpush1.msra.mxu0 %v84
    %1061 = vmatprep.subr.mxu0 %v81
    %1062 = vmatpush1.msra.mxu0 %v80
    %1063 = vmatprep.subr.mxu0 %v77
    %1064 = vmatpush1.msra.mxu0 %v76
    %1065 = vmatprep.subr.mxu0 %v73
    %1066 = vmatpush1.msra.mxu0 %v72
    %1067 = vmatprep.subr.mxu0 %v69
    %1068 = vmatpush1.msra.mxu0 %v68
    %1069 = vmatprep.subr.mxu0 0.0
    %1070 = vmatpush2.msra.mxu0 0.0
    %1071 = vmatprep.subr.mxu0 0.0
    %1072 = vmatpush2.msra.mxu0 0.0
    %1073 = vmatprep.subr.mxu0 0.0
    %1074 = vmatpush2.msra.mxu0 0.0
    %1075 = vmatprep.subr.mxu0 0.0
    %1076 = vmatpush2.msra.mxu0 0.0
    %1077 = vmatprep.subr.mxu0 0.0
    %1078 = vmatpush2.msra.mxu0 0.0
    %1079 = vmatprep.subr.mxu0 0.0
    %1080 = vmatpush2.msra.mxu0 0.0
    %1081 = vmatprep.subr.mxu0 0.0
    %1082 = vmatpush2.msra.mxu0 0.0
    %1083 = vmatprep.subr.mxu0 0.0
    %1084 = vmatpush2.msra.mxu0 0.0
    %1085 = vmatprep.subr.mxu0 0.0
    %1086 = vmatpush2.msra.mxu0 0.0
    %1087 = vmatprep.subr.mxu0 0.0
    %1088 = vmatpush2.msra.mxu0 0.0
    %1089 = vmatprep.subr.mxu0 0.0
    %1090 = vmatpush2.msra.mxu0 0.0
    %1091 = vmatprep.subr.mxu0 0.0
    %1092 = vmatpush2.msra.mxu0 0.0
    %1093 = vmatprep.subr.mxu0 0.0
    %1094 = vmatpush2.msra.mxu0 0.0
    %1095 = vmatprep.subr.mxu0 0.0
    %1096 = vmatpush2.msra.mxu0 0.0
    %1097 = vmatprep.subr.mxu0 0.0
    %1098 = vmatpush2.msra.mxu0 0.0
    %1099 = vmatprep.subr.mxu0 0.0
    %1100 = vmatpush2.msra.mxu0 0.0
    %1101 = vmatprep.mubr.f32.mxu0 0.0
    %1102 = vmatmul.mubr.f32.gmra.mxu0 %v794
    %v1103 = vpop.f32.mrf.mxu0
    %v1104 = vadd.f32 0.0, %v1103
    %v1105 = vpop.f32.mrf.mxu0
    %v1106 = vadd.f32 0.0, %v1105
    %1107 = vdwg.mxu0
    %v1108 = vadd.f32 %v962, %v1033
    %v1109 = vadd.f32 %v963, %v1035
    %v1110 = vadd.f32 %v964, %v1104
    %v1111 = vadd.f32 %v965, %v1106
    %v1112 = vxor.u32 %v1108, 2147483648
    %v1113 = vmul.f32 %v1112, 1.442695
    %v1114 = vpow.pop %v1113
    %v1115 = vadd.f32 %v1114, 1.0
    %v1116 = vrcp.pop %v1115
    %v1117 = vmul.f32 1.0, %v1116
    %v1118 = vxor.u32 %v1109, 2147483648
    %v1119 = vmul.f32 %v1118, 1.442695
    %v1120 = vpow.pop %v1119
    %v1121 = vadd.f32 %v1120, 1.0
    %v1122 = vrcp.pop %v1121
    %v1123 = vmul.f32 1.0, %v1122
    %v1124 = vtanh.pop %v1110
    %v1125 = vxor.u32 %v1111, 2147483648
    %v1126 = vmul.f32 %v1125, 1.442695
    %v1127 = vpow.pop %v1126
    %v1128 = vadd.f32 %v1127, 1.0
    %v1129 = vrcp.pop %v1128
    %v1130 = vmul.f32 1.0, %v1129
    %v1131 = vmul.f32 %v1123, %v792
    %v1132 = vmul.f32 %v1117, %v1124
    %v1133 = vadd.f32 %v1131, %v1132
    %v1134 = vtanh.pop %v1133
    %v1135 = vmul.f32 %v1130, %v1134
    %1136 = vmatprep.subr.mxu0 %v191
    %1137 = vmatpush1.msra.mxu0 %v190
    %1138 = vmatprep.subr.mxu0 %v187
    %1139 = vmatpush1.msra.mxu0 %v186
    %1140 = vmatprep.subr.mxu0 %v183
    %1141 = vmatpush1.msra.mxu0 %v182
    %1142 = vmatprep.subr.mxu0 %v179
    %1143 = vmatpush1.msra.mxu0 %v178
    %1144 = vmatprep.subr.mxu0 %v175
    %1145 = vmatpush1.msra.mxu0 %v174
    %1146 = vmatprep.subr.mxu0 %v171
    %1147 = vmatpush1.msra.mxu0 %v170
    %1148 = vmatprep.subr.mxu0 %v167
    %1149 = vmatpush1.msra.mxu0 %v166
    %1150 = vmatprep.subr.mxu0 %v163
    %1151 = vmatpush1.msra.mxu0 %v162
    %1152 = vmatprep.subr.mxu0 %v159
    %1153 = vmatpush1.msra.mxu0 %v158
    %1154 = vmatprep.subr.mxu0 %v155
    %1155 = vmatpush1.msra.mxu0 %v154
    %1156 = vmatprep.subr.mxu0 %v151
    %1157 = vmatpush1.msra.mxu0 %v150
    %1158 = vmatprep.subr.mxu0 %v147
    %1159 = vmatpush1.msra.mxu0 %v146
    %1160 = vmatprep.subr.mxu0 %v143
    %1161 = vmatpush1.msra.mxu0 %v142
    %1162 = vmatprep.subr.mxu0 %v139
    %1163 = vmatpush1.msra.mxu0 %v138
    %1164 = vmatprep.subr.mxu0 %v135
    %1165 = vmatpush1.msra.mxu0 %v134
    %1166 = vmatprep.subr.mxu0 %v131
    %1167 = vmatpush1.msra.mxu0 %v130
    %1168 = vmatprep.subr.mxu0 %v255
    %1169 = vmatpush2.msra.mxu0 %v254
    %1170 = vmatprep.subr.mxu0 %v251
    %1171 = vmatpush2.msra.mxu0 %v250
    %1172 = vmatprep.subr.mxu0 %v247
    %1173 = vmatpush2.msra.mxu0 %v246
    %1174 = vmatprep.subr.mxu0 %v243
    %1175 = vmatpush2.msra.mxu0 %v242
    %1176 = vmatprep.subr.mxu0 %v239
    %1177 = vmatpush2.msra.mxu0 %v238
    %1178 = vmatprep.subr.mxu0 %v235
    %1179 = vmatpush2.msra.mxu0 %v234
    %1180 = vmatprep.subr.mxu0 %v231
    %1181 = vmatpush2.msra.mxu0 %v230
    %1182 = vmatprep.subr.mxu0 %v227
    %1183 = vmatpush2.msra.mxu0 %v226
    %1184 = vmatprep.subr.mxu0 %v223
    %1185 = vmatpush2.msra.mxu0 %v222
    %1186 = vmatprep.subr.mxu0 %v219
    %1187 = vmatpush2.msra.mxu0 %v218
    %1188 = vmatprep.subr.mxu0 %v215
    %1189 = vmatpush2.msra.mxu0 %v214
    %1190 = vmatprep.subr.mxu0 %v211
    %1191 = vmatpush2.msra.mxu0 %v210
    %1192 = vmatprep.subr.mxu0 %v207
    %1193 = vmatpush2.msra.mxu0 %v206
    %1194 = vmatprep.subr.mxu0 %v203
    %1195 = vmatpush2.msra.mxu0 %v202
    %1196 = vmatprep.subr.mxu0 %v199
    %1197 = vmatpush2.msra.mxu0 %v198
    %1198 = vmatprep.subr.mxu0 %v195
    %1199 = vmatpush2.msra.mxu0 %v194
    %1200 = vmatprep.mubr.f32.mxu0 %v960
    %1201 = vmatmul.mubr.f32.gmra.mxu0 %v1135
    %v1202 = vpop.f32.mrf.mxu0
    %v1203 = vadd.f32 %v263, %v1202
    %v1204 = vpop.f32.mrf.mxu0
    %v1205 = vadd.f32 %v267, %v1204
    %1206 = vdwg.mxu0
    %1207 = vmatprep.subr.mxu0 %v193
    %1208 = vmatpush1.msra.mxu0 %v192
    %1209 = vmatprep.subr.mxu0 %v189
    %1210 = vmatpush1.msra.mxu0 %v188
    %1211 = vmatprep.subr.mxu0 %v185
    %1212 = vmatpush1.msra.mxu0 %v184
    %1213 = vmatprep.subr.mxu0 %v181
    %1214 = vmatpush1.msra.mxu0 %v180
    %1215 = vmatprep.subr.mxu0 %v177
    %1216 = vmatpush1.msra.mxu0 %v176
    %1217 = vmatprep.subr.mxu0 %v173
    %1218 = vmatpush1.msra.mxu0 %v172
    %1219 = vmatprep.subr.mxu0 %v169
    %1220 = vmatpush1.msra.mxu0 %v168
    %1221 = vmatprep.subr.mxu0 %v165
    %1222 = vmatpush1.msra.mxu0 %v164
    %1223 = vmatprep.subr.mxu0 %v161
    %1224 = vmatpush1.msra.mxu0 %v160
    %1225 = vmatprep.subr.mxu0 %v157
    %1226 = vmatpush1.msra.mxu0 %v156
    %1227 = vmatprep.subr.mxu0 %v153
    %1228 = vmatpush1.msra.mxu0 %v152
    %1229 = vmatprep.subr.mxu0 %v149
    %1230 = vmatpush1.msra.mxu0 %v148
    %1231 = vmatprep.subr.mxu0 %v145
    %1232 = vmatpush1.msra.mxu0 %v144
    %1233 = vmatprep.subr.mxu0 %v141
    %1234 = vmatpush1.msra.mxu0 %v140
    %1235 = vmatprep.subr.mxu0 %v137
    %1236 = vmatpush1.msra.mxu0 %v136
    %1237 = vmatprep.subr.mxu0 %v133
    %1238 = vmatpush1.msra.mxu0 %v132
    %1239 = vmatprep.subr.mxu0 %v257
    %1240 = vmatpush2.msra.mxu0 %v256
    %1241 = vmatprep.subr.mxu0 %v253
    %1242 = vmatpush2.msra.mxu0 %v252
    %1243 = vmatprep.subr.mxu0 %v249
    %1244 = vmatpush2.msra.mxu0 %v248
    %1245 = vmatprep.subr.mxu0 %v245
    %1246 = vmatpush2.msra.mxu0 %v244
    %1247 = vmatprep.subr.mxu0 %v241
    %1248 = vmatpush2.msra.mxu0 %v240
    %1249 = vmatprep.subr.mxu0 %v237
    %1250 = vmatpush2.msra.mxu0 %v236
    %1251 = vmatprep.subr.mxu0 %v233
    %1252 = vmatpush2.msra.mxu0 %v232
    %1253 = vmatprep.subr.mxu0 %v229
    %1254 = vmatpush2.msra.mxu0 %v228
    %1255 = vmatprep.subr.mxu0 %v225
    %1256 = vmatpush2.msra.mxu0 %v224
    %1257 = vmatprep.subr.mxu0 %v221
    %1258 = vmatpush2.msra.mxu0 %v220
    %1259 = vmatprep.subr.mxu0 %v217
    %1260 = vmatpush2.msra.mxu0 %v216
    %1261 = vmatprep.subr.mxu0 %v213
    %1262 = vmatpush2.msra.mxu0 %v212
    %1263 = vmatprep.subr.mxu0 %v209
    %1264 = vmatpush2.msra.mxu0 %v208
    %1265 = vmatprep.subr.mxu0 %v205
    %1266 = vmatpush2.msra.mxu0 %v204
    %1267 = vmatprep.subr.mxu0 %v201
    %1268 = vmatpush2.msra.mxu0 %v200
    %1269 = vmatprep.subr.mxu0 %v197
    %1270 = vmatpush2.msra.mxu0 %v196
    %1271 = vmatprep.mubr.f32.mxu0 %v960
    %1272 = vmatmul.mubr.f32.gmra.mxu0 %v1135
    %v1273 = vpop.f32.mrf.mxu0
    %v1274 = vadd.f32 %v271, %v1273
    %v1275 = vpop.f32.mrf.mxu0
    %v1276 = vadd.f32 %v275, %v1275
    %1277 = vdwg.mxu0
    %v1278 = vxor.u32 %v1203, 2147483648
    %v1279 = vmul.f32 %v1278, 1.442695
    %v1280 = vpow.pop %v1279
    %v1281 = vadd.f32 %v1280, 1.0
    %v1282 = vrcp.pop %v1281
    %v1283 = vmul.f32 1.0, %v1282
    %v1284 = vxor.u32 %v1205, 2147483648
    %v1285 = vmul.f32 %v1284, 1.442695
    %v1286 = vpow.pop %v1285
    %v1287 = vadd.f32 %v1286, 1.0
    %v1288 = vrcp.pop %v1287
    %v1289 = vmul.f32 1.0, %v1288
    %v1290 = vtanh.pop %v1274
    %v1291 = vxor.u32 %v1276, 2147483648
    %v1292 = vmul.f32 %v1291, 1.442695
    %v1293 = vpow.pop %v1292
    %v1294 = vadd.f32 %v1293, 1.0
    %v1295 = vrcp.pop %v1294
    %v1296 = vmul.f32 1.0, %v1295
    %v1297 = vmul.f32 %v1289, %v958
    %v1298 = vmul.f32 %v1283, %v1290
    %v1299 = vadd.f32 %v1297, %v1298
    %v1300 = vtanh.pop %v1299
    %v1301 = vmul.f32 %v1296, %v1300
    %s1302 = scalar_lea.vmem [#allocation3], 96
    %v1303 = vld [vmem:[%s1302] sm:$0xff]
    %v1304 = vld [vmem:[%s1302 + $0x8] sm:$0xff]
    %v1305 = vld [vmem:[%s1302 + $0x10] sm:$0xff]
    %v1306 = vld [vmem:[%s1302 + $0x18] sm:$0xff]
    %1307 = vmatprep.subr.mxu0 %v127
    %1308 = vmatpush1.msra.mxu0 %v126
    %1309 = vmatprep.subr.mxu0 %v123
    %1310 = vmatpush1.msra.mxu0 %v122
    %1311 = vmatprep.subr.mxu0 %v119
    %1312 = vmatpush1.msra.mxu0 %v118
    %1313 = vmatprep.subr.mxu0 %v115
    %1314 = vmatpush1.msra.mxu0 %v114
    %1315 = vmatprep.subr.mxu0 %v111
    %1316 = vmatpush1.msra.mxu0 %v110
    %1317 = vmatprep.subr.mxu0 %v107
    %1318 = vmatpush1.msra.mxu0 %v106
    %1319 = vmatprep.subr.mxu0 %v103
    %1320 = vmatpush1.msra.mxu0 %v102
    %1321 = vmatprep.subr.mxu0 %v99
    %1322 = vmatpush1.msra.mxu0 %v98
    %1323 = vmatprep.subr.mxu0 %v95
    %1324 = vmatpush1.msra.mxu0 %v94
    %1325 = vmatprep.subr.mxu0 %v91
    %1326 = vmatpush1.msra.mxu0 %v90
    %1327 = vmatprep.subr.mxu0 %v87
    %1328 = vmatpush1.msra.mxu0 %v86
    %1329 = vmatprep.subr.mxu0 %v83
    %1330 = vmatpush1.msra.mxu0 %v82
    %1331 = vmatprep.subr.mxu0 %v79
    %1332 = vmatpush1.msra.mxu0 %v78
    %1333 = vmatprep.subr.mxu0 %v75
    %1334 = vmatpush1.msra.mxu0 %v74
    %1335 = vmatprep.subr.mxu0 %v71
    %1336 = vmatpush1.msra.mxu0 %v70
    %1337 = vmatprep.subr.mxu0 %v67
    %1338 = vmatpush1.msra.mxu0 %v66
    %1339 = vmatprep.subr.mxu0 0.0
    %1340 = vmatpush2.msra.mxu0 0.0
    %1341 = vmatprep.subr.mxu0 0.0
    %1342 = vmatpush2.msra.mxu0 0.0
    %1343 = vmatprep.subr.mxu0 0.0
    %1344 = vmatpush2.msra.mxu0 0.0
    %1345 = vmatprep.subr.mxu0 0.0
    %1346 = vmatpush2.msra.mxu0 0.0
    %1347 = vmatprep.subr.mxu0 0.0
    %1348 = vmatpush2.msra.mxu0 0.0
    %1349 = vmatprep.subr.mxu0 0.0
    %1350 = vmatpush2.msra.mxu0 0.0
    %1351 = vmatprep.subr.mxu0 0.0
    %1352 = vmatpush2.msra.mxu0 0.0
    %1353 = vmatprep.subr.mxu0 0.0
    %1354 = vmatpush2.msra.mxu0 0.0
    %1355 = vmatprep.subr.mxu0 0.0
    %1356 = vmatpush2.msra.mxu0 0.0
    %1357 = vmatprep.subr.mxu0 0.0
    %1358 = vmatpush2.msra.mxu0 0.0
    %1359 = vmatprep.subr.mxu0 0.0
    %1360 = vmatpush2.msra.mxu0 0.0
    %1361 = vmatprep.subr.mxu0 0.0
    %1362 = vmatpush2.msra.mxu0 0.0
    %1363 = vmatprep.subr.mxu0 0.0
    %1364 = vmatpush2.msra.mxu0 0.0
    %1365 = vmatprep.subr.mxu0 0.0
    %1366 = vmatpush2.msra.mxu0 0.0
    %1367 = vmatprep.subr.mxu0 0.0
    %1368 = vmatpush2.msra.mxu0 0.0
    %1369 = vmatprep.subr.mxu0 0.0
    %1370 = vmatpush2.msra.mxu0 0.0
    %1371 = vmatprep.mubr.f32.mxu0 0.0
    %1372 = vmatmul.mubr.f32.gmra.mxu0 %v1135
    %v1373 = vpop.f32.mrf.mxu0
    %v1374 = vadd.f32 0.0, %v1373
    %v1375 = vpop.f32.mrf.mxu0
    %v1376 = vadd.f32 0.0, %v1375
    %1377 = vdwg.mxu0
    %1378 = vmatprep.subr.mxu0 %v129
    %1379 = vmatpush1.msra.mxu0 %v128
    %1380 = vmatprep.subr.mxu0 %v125
    %1381 = vmatpush1.msra.mxu0 %v124
    %1382 = vmatprep.subr.mxu0 %v121
    %1383 = vmatpush1.msra.mxu0 %v120
    %1384 = vmatprep.subr.mxu0 %v117
    %1385 = vmatpush1.msra.mxu0 %v116
    %1386 = vmatprep.subr.mxu0 %v113
    %1387 = vmatpush1.msra.mxu0 %v112
    %1388 = vmatprep.subr.mxu0 %v109
    %1389 = vmatpush1.msra.mxu0 %v108
    %1390 = vmatprep.subr.mxu0 %v105
    %1391 = vmatpush1.msra.mxu0 %v104
    %1392 = vmatprep.subr.mxu0 %v101
    %1393 = vmatpush1.msra.mxu0 %v100
    %1394 = vmatprep.subr.mxu0 %v97
    %1395 = vmatpush1.msra.mxu0 %v96
    %1396 = vmatprep.subr.mxu0 %v93
    %1397 = vmatpush1.msra.mxu0 %v92
    %1398 = vmatprep.subr.mxu0 %v89
    %1399 = vmatpush1.msra.mxu0 %v88
    %1400 = vmatprep.subr.mxu0 %v85
    %1401 = vmatpush1.msra.mxu0 %v84
    %1402 = vmatprep.subr.mxu0 %v81
    %1403 = vmatpush1.msra.mxu0 %v80
    %1404 = vmatprep.subr.mxu0 %v77
    %1405 = vmatpush1.msra.mxu0 %v76
    %1406 = vmatprep.subr.mxu0 %v73
    %1407 = vmatpush1.msra.mxu0 %v72
    %1408 = vmatprep.subr.mxu0 %v69
    %1409 = vmatpush1.msra.mxu0 %v68
    %1410 = vmatprep.subr.mxu0 0.0
    %1411 = vmatpush2.msra.mxu0 0.0
    %1412 = vmatprep.subr.mxu0 0.0
    %1413 = vmatpush2.msra.mxu0 0.0
    %1414 = vmatprep.subr.mxu0 0.0
    %1415 = vmatpush2.msra.mxu0 0.0
    %1416 = vmatprep.subr.mxu0 0.0
    %1417 = vmatpush2.msra.mxu0 0.0
    %1418 = vmatprep.subr.mxu0 0.0
    %1419 = vmatpush2.msra.mxu0 0.0
    %1420 = vmatprep.subr.mxu0 0.0
    %1421 = vmatpush2.msra.mxu0 0.0
    %1422 = vmatprep.subr.mxu0 0.0
    %1423 = vmatpush2.msra.mxu0 0.0
    %1424 = vmatprep.subr.mxu0 0.0
    %1425 = vmatpush2.msra.mxu0 0.0
    %1426 = vmatprep.subr.mxu0 0.0
    %1427 = vmatpush2.msra.mxu0 0.0
    %1428 = vmatprep.subr.mxu0 0.0
    %1429 = vmatpush2.msra.mxu0 0.0
    %1430 = vmatprep.subr.mxu0 0.0
    %1431 = vmatpush2.msra.mxu0 0.0
    %1432 = vmatprep.subr.mxu0 0.0
    %1433 = vmatpush2.msra.mxu0 0.0
    %1434 = vmatprep.subr.mxu0 0.0
    %1435 = vmatpush2.msra.mxu0 0.0
    %1436 = vmatprep.subr.mxu0 0.0
    %1437 = vmatpush2.msra.mxu0 0.0
    %1438 = vmatprep.subr.mxu0 0.0
    %1439 = vmatpush2.msra.mxu0 0.0
    %1440 = vmatprep.subr.mxu0 0.0
    %1441 = vmatpush2.msra.mxu0 0.0
    %1442 = vmatprep.mubr.f32.mxu0 0.0
    %1443 = vmatmul.mubr.f32.gmra.mxu0 %v1135
    %v1444 = vpop.f32.mrf.mxu0
    %v1445 = vadd.f32 0.0, %v1444
    %v1446 = vpop.f32.mrf.mxu0
    %v1447 = vadd.f32 0.0, %v1446
    %1448 = vdwg.mxu0
    %v1449 = vadd.f32 %v1303, %v1374
    %v1450 = vadd.f32 %v1304, %v1376
    %v1451 = vadd.f32 %v1305, %v1445
    %v1452 = vadd.f32 %v1306, %v1447
    %v1453 = vxor.u32 %v1449, 2147483648
    %v1454 = vmul.f32 %v1453, 1.442695
    %v1455 = vpow.pop %v1454
    %v1456 = vadd.f32 %v1455, 1.0
    %v1457 = vrcp.pop %v1456
    %v1458 = vmul.f32 1.0, %v1457
    %v1459 = vxor.u32 %v1450, 2147483648
    %v1460 = vmul.f32 %v1459, 1.442695
    %v1461 = vpow.pop %v1460
    %v1462 = vadd.f32 %v1461, 1.0
    %v1463 = vrcp.pop %v1462
    %v1464 = vmul.f32 1.0, %v1463
    %v1465 = vtanh.pop %v1451
    %v1466 = vxor.u32 %v1452, 2147483648
    %v1467 = vmul.f32 %v1466, 1.442695
    %v1468 = vpow.pop %v1467
    %v1469 = vadd.f32 %v1468, 1.0
    %v1470 = vrcp.pop %v1469
    %v1471 = vmul.f32 1.0, %v1470
    %v1472 = vmul.f32 %v1464, %v1133
    %v1473 = vmul.f32 %v1458, %v1465
    %v1474 = vadd.f32 %v1472, %v1473
    %v1475 = vtanh.pop %v1474
    %v1476 = vmul.f32 %v1471, %v1475
    %1477 = vmatprep.subr.mxu0 %v191
    %1478 = vmatpush1.msra.mxu0 %v190
    %1479 = vmatprep.subr.mxu0 %v187
    %1480 = vmatpush1.msra.mxu0 %v186
    %1481 = vmatprep.subr.mxu0 %v183
    %1482 = vmatpush1.msra.mxu0 %v182
    %1483 = vmatprep.subr.mxu0 %v179
    %1484 = vmatpush1.msra.mxu0 %v178
    %1485 = vmatprep.subr.mxu0 %v175
    %1486 = vmatpush1.msra.mxu0 %v174
    %1487 = vmatprep.subr.mxu0 %v171
    %1488 = vmatpush1.msra.mxu0 %v170
    %1489 = vmatprep.subr.mxu0 %v167
    %1490 = vmatpush1.msra.mxu0 %v166
    %1491 = vmatprep.subr.mxu0 %v163
    %1492 = vmatpush1.msra.mxu0 %v162
    %1493 = vmatprep.subr.mxu0 %v159
    %1494 = vmatpush1.msra.mxu0 %v158
    %1495 = vmatprep.subr.mxu0 %v155
    %1496 = vmatpush1.msra.mxu0 %v154
    %1497 = vmatprep.subr.mxu0 %v151
    %1498 = vmatpush1.msra.mxu0 %v150
    %1499 = vmatprep.subr.mxu0 %v147
    %1500 = vmatpush1.msra.mxu0 %v146
    %1501 = vmatprep.subr.mxu0 %v143
    %1502 = vmatpush1.msra.mxu0 %v142
    %1503 = vmatprep.subr.mxu0 %v139
    %1504 = vmatpush1.msra.mxu0 %v138
    %1505 = vmatprep.subr.mxu0 %v135
    %1506 = vmatpush1.msra.mxu0 %v134
    %1507 = vmatprep.subr.mxu0 %v131
    %1508 = vmatpush1.msra.mxu0 %v130
    %1509 = vmatprep.subr.mxu0 %v255
    %1510 = vmatpush2.msra.mxu0 %v254
    %1511 = vmatprep.subr.mxu0 %v251
    %1512 = vmatpush2.msra.mxu0 %v250
    %1513 = vmatprep.subr.mxu0 %v247
    %1514 = vmatpush2.msra.mxu0 %v246
    %1515 = vmatprep.subr.mxu0 %v243
    %1516 = vmatpush2.msra.mxu0 %v242
    %1517 = vmatprep.subr.mxu0 %v239
    %1518 = vmatpush2.msra.mxu0 %v238
    %1519 = vmatprep.subr.mxu0 %v235
    %1520 = vmatpush2.msra.mxu0 %v234
    %1521 = vmatprep.subr.mxu0 %v231
    %1522 = vmatpush2.msra.mxu0 %v230
    %1523 = vmatprep.subr.mxu0 %v227
    %1524 = vmatpush2.msra.mxu0 %v226
    %1525 = vmatprep.subr.mxu0 %v223
    %1526 = vmatpush2.msra.mxu0 %v222
    %1527 = vmatprep.subr.mxu0 %v219
    %1528 = vmatpush2.msra.mxu0 %v218
    %1529 = vmatprep.subr.mxu0 %v215
    %1530 = vmatpush2.msra.mxu0 %v214
    %1531 = vmatprep.subr.mxu0 %v211
    %1532 = vmatpush2.msra.mxu0 %v210
    %1533 = vmatprep.subr.mxu0 %v207
    %1534 = vmatpush2.msra.mxu0 %v206
    %1535 = vmatprep.subr.mxu0 %v203
    %1536 = vmatpush2.msra.mxu0 %v202
    %1537 = vmatprep.subr.mxu0 %v199
    %1538 = vmatpush2.msra.mxu0 %v198
    %1539 = vmatprep.subr.mxu0 %v195
    %1540 = vmatpush2.msra.mxu0 %v194
    %1541 = vmatprep.mubr.f32.mxu0 %v1301
    %1542 = vmatmul.mubr.f32.gmra.mxu0 %v1476
    %v1543 = vpop.f32.mrf.mxu0
    %v1544 = vadd.f32 %v263, %v1543
    %v1545 = vpop.f32.mrf.mxu0
    %v1546 = vadd.f32 %v267, %v1545
    %1547 = vdwg.mxu0
    %1548 = vmatprep.subr.mxu0 %v193
    %1549 = vmatpush1.msra.mxu0 %v192
    %1550 = vmatprep.subr.mxu0 %v189
    %1551 = vmatpush1.msra.mxu0 %v188
    %1552 = vmatprep.subr.mxu0 %v185
    %1553 = vmatpush1.msra.mxu0 %v184
    %1554 = vmatprep.subr.mxu0 %v181
    %1555 = vmatpush1.msra.mxu0 %v180
    %1556 = vmatprep.subr.mxu0 %v177
    %1557 = vmatpush1.msra.mxu0 %v176
    %1558 = vmatprep.subr.mxu0 %v173
    %1559 = vmatpush1.msra.mxu0 %v172
    %1560 = vmatprep.subr.mxu0 %v169
    %1561 = vmatpush1.msra.mxu0 %v168
    %1562 = vmatprep.subr.mxu0 %v165
    %1563 = vmatpush1.msra.mxu0 %v164
    %1564 = vmatprep.subr.mxu0 %v161
    %1565 = vmatpush1.msra.mxu0 %v160
    %1566 = vmatprep.subr.mxu0 %v157
    %1567 = vmatpush1.msra.mxu0 %v156
    %1568 = vmatprep.subr.mxu0 %v153
    %1569 = vmatpush1.msra.mxu0 %v152
    %1570 = vmatprep.subr.mxu0 %v149
    %1571 = vmatpush1.msra.mxu0 %v148
    %1572 = vmatprep.subr.mxu0 %v145
    %1573 = vmatpush1.msra.mxu0 %v144
    %1574 = vmatprep.subr.mxu0 %v141
    %1575 = vmatpush1.msra.mxu0 %v140
    %1576 = vmatprep.subr.mxu0 %v137
    %1577 = vmatpush1.msra.mxu0 %v136
    %1578 = vmatprep.subr.mxu0 %v133
    %1579 = vmatpush1.msra.mxu0 %v132
    %1580 = vmatprep.subr.mxu0 %v257
    %1581 = vmatpush2.msra.mxu0 %v256
    %1582 = vmatprep.subr.mxu0 %v253
    %1583 = vmatpush2.msra.mxu0 %v252
    %1584 = vmatprep.subr.mxu0 %v249
    %1585 = vmatpush2.msra.mxu0 %v248
    %1586 = vmatprep.subr.mxu0 %v245
    %1587 = vmatpush2.msra.mxu0 %v244
    %1588 = vmatprep.subr.mxu0 %v241
    %1589 = vmatpush2.msra.mxu0 %v240
    %1590 = vmatprep.subr.mxu0 %v237
    %1591 = vmatpush2.msra.mxu0 %v236
    %1592 = vmatprep.subr.mxu0 %v233
    %1593 = vmatpush2.msra.mxu0 %v232
    %1594 = vmatprep.subr.mxu0 %v229
    %1595 = vmatpush2.msra.mxu0 %v228
    %1596 = vmatprep.subr.mxu0 %v225
    %1597 = vmatpush2.msra.mxu0 %v224
    %1598 = vmatprep.subr.mxu0 %v221
    %1599 = vmatpush2.msra.mxu0 %v220
    %1600 = vmatprep.subr.mxu0 %v217
    %1601 = vmatpush2.msra.mxu0 %v216
    %1602 = vmatprep.subr.mxu0 %v213
    %1603 = vmatpush2.msra.mxu0 %v212
    %1604 = vmatprep.subr.mxu0 %v209
    %1605 = vmatpush2.msra.mxu0 %v208
    %1606 = vmatprep.subr.mxu0 %v205
    %1607 = vmatpush2.msra.mxu0 %v204
    %1608 = vmatprep.subr.mxu0 %v201
    %1609 = vmatpush2.msra.mxu0 %v200
    %1610 = vmatprep.subr.mxu0 %v197
    %1611 = vmatpush2.msra.mxu0 %v196
    %1612 = vmatprep.mubr.f32.mxu0 %v1301
    %1613 = vmatmul.mubr.f32.gmra.mxu0 %v1476
    %v1614 = vpop.f32.mrf.mxu0
    %v1615 = vadd.f32 %v271, %v1614
    %v1616 = vpop.f32.mrf.mxu0
    %v1617 = vadd.f32 %v275, %v1616
    %1618 = vdwg.mxu0
    %v1619 = vxor.u32 %v1544, 2147483648
    %v1620 = vmul.f32 %v1619, 1.442695
    %v1621 = vpow.pop %v1620
    %v1622 = vadd.f32 %v1621, 1.0
    %v1623 = vrcp.pop %v1622
    %v1624 = vmul.f32 1.0, %v1623
    %v1625 = vxor.u32 %v1546, 2147483648
    %v1626 = vmul.f32 %v1625, 1.442695
    %v1627 = vpow.pop %v1626
    %v1628 = vadd.f32 %v1627, 1.0
    %v1629 = vrcp.pop %v1628
    %v1630 = vmul.f32 1.0, %v1629
    %v1631 = vtanh.pop %v1615
    %v1632 = vxor.u32 %v1617, 2147483648
    %v1633 = vmul.f32 %v1632, 1.442695
    %v1634 = vpow.pop %v1633
    %v1635 = vadd.f32 %v1634, 1.0
    %v1636 = vrcp.pop %v1635
    %v1637 = vmul.f32 1.0, %v1636
    %v1638 = vmul.f32 %v1630, %v1299
    %v1639 = vmul.f32 %v1624, %v1631
    %v1640 = vadd.f32 %v1638, %v1639
    %v1641 = vtanh.pop %v1640
    %v1642 = vmul.f32 %v1637, %v1641
    %s1643 = scalar_lea.vmem [#allocation3], 128
    %v1644 = vld [vmem:[%s1643] sm:$0xff]
    %v1645 = vld [vmem:[%s1643 + $0x8] sm:$0xff]
    %v1646 = vld [vmem:[%s1643 + $0x10] sm:$0xff]
    %v1647 = vld [vmem:[%s1643 + $0x18] sm:$0xff]
    %1648 = vmatprep.subr.mxu0 %v127
    %1649 = vmatpush1.msra.mxu0 %v126
    %1650 = vmatprep.subr.mxu0 %v123
    %1651 = vmatpush1.msra.mxu0 %v122
    %1652 = vmatprep.subr.mxu0 %v119
    %1653 = vmatpush1.msra.mxu0 %v118
    %1654 = vmatprep.subr.mxu0 %v115
    %1655 = vmatpush1.msra.mxu0 %v114
    %1656 = vmatprep.subr.mxu0 %v111
    %1657 = vmatpush1.msra.mxu0 %v110
    %1658 = vmatprep.subr.mxu0 %v107
    %1659 = vmatpush1.msra.mxu0 %v106
    %1660 = vmatprep.subr.mxu0 %v103
    %1661 = vmatpush1.msra.mxu0 %v102
    %1662 = vmatprep.subr.mxu0 %v99
    %1663 = vmatpush1.msra.mxu0 %v98
    %1664 = vmatprep.subr.mxu0 %v95
    %1665 = vmatpush1.msra.mxu0 %v94
    %1666 = vmatprep.subr.mxu0 %v91
    %1667 = vmatpush1.msra.mxu0 %v90
    %1668 = vmatprep.subr.mxu0 %v87
    %1669 = vmatpush1.msra.mxu0 %v86
    %1670 = vmatprep.subr.mxu0 %v83
    %1671 = vmatpush1.msra.mxu0 %v82
    %1672 = vmatprep.subr.mxu0 %v79
    %1673 = vmatpush1.msra.mxu0 %v78
    %1674 = vmatprep.subr.mxu0 %v75
    %1675 = vmatpush1.msra.mxu0 %v74
    %1676 = vmatprep.subr.mxu0 %v71
    %1677 = vmatpush1.msra.mxu0 %v70
    %1678 = vmatprep.subr.mxu0 %v67
    %1679 = vmatpush1.msra.mxu0 %v66
    %1680 = vmatprep.subr.mxu0 0.0
    %1681 = vmatpush2.msra.mxu0 0.0
    %1682 = vmatprep.subr.mxu0 0.0
    %1683 = vmatpush2.msra.mxu0 0.0
    %1684 = vmatprep.subr.mxu0 0.0
    %1685 = vmatpush2.msra.mxu0 0.0
    %1686 = vmatprep.subr.mxu0 0.0
    %1687 = vmatpush2.msra.mxu0 0.0
    %1688 = vmatprep.subr.mxu0 0.0
    %1689 = vmatpush2.msra.mxu0 0.0
    %1690 = vmatprep.subr.mxu0 0.0
    %1691 = vmatpush2.msra.mxu0 0.0
    %1692 = vmatprep.subr.mxu0 0.0
    %1693 = vmatpush2.msra.mxu0 0.0
    %1694 = vmatprep.subr.mxu0 0.0
    %1695 = vmatpush2.msra.mxu0 0.0
    %1696 = vmatprep.subr.mxu0 0.0
    %1697 = vmatpush2.msra.mxu0 0.0
    %1698 = vmatprep.subr.mxu0 0.0
    %1699 = vmatpush2.msra.mxu0 0.0
    %1700 = vmatprep.subr.mxu0 0.0
    %1701 = vmatpush2.msra.mxu0 0.0
    %1702 = vmatprep.subr.mxu0 0.0
    %1703 = vmatpush2.msra.mxu0 0.0
    %1704 = vmatprep.subr.mxu0 0.0
    %1705 = vmatpush2.msra.mxu0 0.0
    %1706 = vmatprep.subr.mxu0 0.0
    %1707 = vmatpush2.msra.mxu0 0.0
    %1708 = vmatprep.subr.mxu0 0.0
    %1709 = vmatpush2.msra.mxu0 0.0
    %1710 = vmatprep.subr.mxu0 0.0
    %1711 = vmatpush2.msra.mxu0 0.0
    %1712 = vmatprep.mubr.f32.mxu0 0.0
    %1713 = vmatmul.mubr.f32.gmra.mxu0 %v1476
    %v1714 = vpop.f32.mrf.mxu0
    %v1715 = vadd.f32 0.0, %v1714
    %v1716 = vpop.f32.mrf.mxu0
    %v1717 = vadd.f32 0.0, %v1716
    %1718 = vdwg.mxu0
    %1719 = vmatprep.subr.mxu0 %v129
    %1720 = vmatpush1.msra.mxu0 %v128
    %1721 = vmatprep.subr.mxu0 %v125
    %1722 = vmatpush1.msra.mxu0 %v124
    %1723 = vmatprep.subr.mxu0 %v121
    %1724 = vmatpush1.msra.mxu0 %v120
    %1725 = vmatprep.subr.mxu0 %v117
    %1726 = vmatpush1.msra.mxu0 %v116
    %1727 = vmatprep.subr.mxu0 %v113
    %1728 = vmatpush1.msra.mxu0 %v112
    %1729 = vmatprep.subr.mxu0 %v109
    %1730 = vmatpush1.msra.mxu0 %v108
    %1731 = vmatprep.subr.mxu0 %v105
    %1732 = vmatpush1.msra.mxu0 %v104
    %1733 = vmatprep.subr.mxu0 %v101
    %1734 = vmatpush1.msra.mxu0 %v100
    %1735 = vmatprep.subr.mxu0 %v97
    %1736 = vmatpush1.msra.mxu0 %v96
    %1737 = vmatprep.subr.mxu0 %v93
    %1738 = vmatpush1.msra.mxu0 %v92
    %1739 = vmatprep.subr.mxu0 %v89
    %1740 = vmatpush1.msra.mxu0 %v88
    %1741 = vmatprep.subr.mxu0 %v85
    %1742 = vmatpush1.msra.mxu0 %v84
    %1743 = vmatprep.subr.mxu0 %v81
    %1744 = vmatpush1.msra.mxu0 %v80
    %1745 = vmatprep.subr.mxu0 %v77
    %1746 = vmatpush1.msra.mxu0 %v76
    %1747 = vmatprep.subr.mxu0 %v73
    %1748 = vmatpush1.msra.mxu0 %v72
    %1749 = vmatprep.subr.mxu0 %v69
    %1750 = vmatpush1.msra.mxu0 %v68
    %1751 = vmatprep.subr.mxu0 0.0
    %1752 = vmatpush2.msra.mxu0 0.0
    %1753 = vmatprep.subr.mxu0 0.0
    %1754 = vmatpush2.msra.mxu0 0.0
    %1755 = vmatprep.subr.mxu0 0.0
    %1756 = vmatpush2.msra.mxu0 0.0
    %1757 = vmatprep.subr.mxu0 0.0
    %1758 = vmatpush2.msra.mxu0 0.0
    %1759 = vmatprep.subr.mxu0 0.0
    %1760 = vmatpush2.msra.mxu0 0.0
    %1761 = vmatprep.subr.mxu0 0.0
    %1762 = vmatpush2.msra.mxu0 0.0
    %1763 = vmatprep.subr.mxu0 0.0
    %1764 = vmatpush2.msra.mxu0 0.0
    %1765 = vmatprep.subr.mxu0 0.0
    %1766 = vmatpush2.msra.mxu0 0.0
    %1767 = vmatprep.subr.mxu0 0.0
    %1768 = vmatpush2.msra.mxu0 0.0
    %1769 = vmatprep.subr.mxu0 0.0
    %1770 = vmatpush2.msra.mxu0 0.0
    %1771 = vmatprep.subr.mxu0 0.0
    %1772 = vmatpush2.msra.mxu0 0.0
    %1773 = vmatprep.subr.mxu0 0.0
    %1774 = vmatpush2.msra.mxu0 0.0
    %1775 = vmatprep.subr.mxu0 0.0
    %1776 = vmatpush2.msra.mxu0 0.0
    %1777 = vmatprep.subr.mxu0 0.0
    %1778 = vmatpush2.msra.mxu0 0.0
    %1779 = vmatprep.subr.mxu0 0.0
    %1780 = vmatpush2.msra.mxu0 0.0
    %1781 = vmatprep.subr.mxu0 0.0
    %1782 = vmatpush2.msra.mxu0 0.0
    %1783 = vmatprep.mubr.f32.mxu0 0.0
    %1784 = vmatmul.mubr.f32.gmra.mxu0 %v1476
    %v1785 = vpop.f32.mrf.mxu0
    %v1786 = vadd.f32 0.0, %v1785
    %v1787 = vpop.f32.mrf.mxu0
    %v1788 = vadd.f32 0.0, %v1787
    %1789 = vdwg.mxu0
    %v1790 = vadd.f32 %v1644, %v1715
    %v1791 = vadd.f32 %v1645, %v1717
    %v1792 = vadd.f32 %v1646, %v1786
    %v1793 = vadd.f32 %v1647, %v1788
    %v1794 = vxor.u32 %v1790, 2147483648
    %v1795 = vmul.f32 %v1794, 1.442695
    %v1796 = vpow.pop %v1795
    %v1797 = vadd.f32 %v1796, 1.0
    %v1798 = vrcp.pop %v1797
    %v1799 = vmul.f32 1.0, %v1798
    %v1800 = vxor.u32 %v1791, 2147483648
    %v1801 = vmul.f32 %v1800, 1.442695
    %v1802 = vpow.pop %v1801
    %v1803 = vadd.f32 %v1802, 1.0
    %v1804 = vrcp.pop %v1803
    %v1805 = vmul.f32 1.0, %v1804
    %v1806 = vtanh.pop %v1792
    %v1807 = vxor.u32 %v1793, 2147483648
    %v1808 = vmul.f32 %v1807, 1.442695
    %v1809 = vpow.pop %v1808
    %v1810 = vadd.f32 %v1809, 1.0
    %v1811 = vrcp.pop %v1810
    %v1812 = vmul.f32 1.0, %v1811
    %v1813 = vmul.f32 %v1805, %v1474
    %v1814 = vmul.f32 %v1799, %v1806
    %v1815 = vadd.f32 %v1813, %v1814
    %v1816 = vtanh.pop %v1815
    %v1817 = vmul.f32 %v1812, %v1816
    %1818 = vmatprep.subr.mxu0 %v191
    %1819 = vmatpush1.msra.mxu0 %v190
    %1820 = vmatprep.subr.mxu0 %v187
    %1821 = vmatpush1.msra.mxu0 %v186
    %1822 = vmatprep.subr.mxu0 %v183
    %1823 = vmatpush1.msra.mxu0 %v182
    %1824 = vmatprep.subr.mxu0 %v179
    %1825 = vmatpush1.msra.mxu0 %v178
    %1826 = vmatprep.subr.mxu0 %v175
    %1827 = vmatpush1.msra.mxu0 %v174
    %1828 = vmatprep.subr.mxu0 %v171
    %1829 = vmatpush1.msra.mxu0 %v170
    %1830 = vmatprep.subr.mxu0 %v167
    %1831 = vmatpush1.msra.mxu0 %v166
    %1832 = vmatprep.subr.mxu0 %v163
    %1833 = vmatpush1.msra.mxu0 %v162
    %1834 = vmatprep.subr.mxu0 %v159
    %1835 = vmatpush1.msra.mxu0 %v158
    %1836 = vmatprep.subr.mxu0 %v155
    %1837 = vmatpush1.msra.mxu0 %v154
    %1838 = vmatprep.subr.mxu0 %v151
    %1839 = vmatpush1.msra.mxu0 %v150
    %1840 = vmatprep.subr.mxu0 %v147
    %1841 = vmatpush1.msra.mxu0 %v146
    %1842 = vmatprep.subr.mxu0 %v143
    %1843 = vmatpush1.msra.mxu0 %v142
    %1844 = vmatprep.subr.mxu0 %v139
    %1845 = vmatpush1.msra.mxu0 %v138
    %1846 = vmatprep.subr.mxu0 %v135
    %1847 = vmatpush1.msra.mxu0 %v134
    %1848 = vmatprep.subr.mxu0 %v131
    %1849 = vmatpush1.msra.mxu0 %v130
    %1850 = vmatprep.subr.mxu0 %v255
    %1851 = vmatpush2.msra.mxu0 %v254
    %1852 = vmatprep.subr.mxu0 %v251
    %1853 = vmatpush2.msra.mxu0 %v250
    %1854 = vmatprep.subr.mxu0 %v247
    %1855 = vmatpush2.msra.mxu0 %v246
    %1856 = vmatprep.subr.mxu0 %v243
    %1857 = vmatpush2.msra.mxu0 %v242
    %1858 = vmatprep.subr.mxu0 %v239
    %1859 = vmatpush2.msra.mxu0 %v238
    %1860 = vmatprep.subr.mxu0 %v235
    %1861 = vmatpush2.msra.mxu0 %v234
    %1862 = vmatprep.subr.mxu0 %v231
    %1863 = vmatpush2.msra.mxu0 %v230
    %1864 = vmatprep.subr.mxu0 %v227
    %1865 = vmatpush2.msra.mxu0 %v226
    %1866 = vmatprep.subr.mxu0 %v223
    %1867 = vmatpush2.msra.mxu0 %v222
    %1868 = vmatprep.subr.mxu0 %v219
    %1869 = vmatpush2.msra.mxu0 %v218
    %1870 = vmatprep.subr.mxu0 %v215
    %1871 = vmatpush2.msra.mxu0 %v214
    %1872 = vmatprep.subr.mxu0 %v211
    %1873 = vmatpush2.msra.mxu0 %v210
    %1874 = vmatprep.subr.mxu0 %v207
    %1875 = vmatpush2.msra.mxu0 %v206
    %1876 = vmatprep.subr.mxu0 %v203
    %1877 = vmatpush2.msra.mxu0 %v202
    %1878 = vmatprep.subr.mxu0 %v199
    %1879 = vmatpush2.msra.mxu0 %v198
    %1880 = vmatprep.subr.mxu0 %v195
    %1881 = vmatpush2.msra.mxu0 %v194
    %1882 = vmatprep.mubr.f32.mxu0 %v1642
    %1883 = vmatmul.mubr.f32.gmra.mxu0 %v1817
    %v1884 = vpop.f32.mrf.mxu0
    %v1885 = vadd.f32 %v263, %v1884
    %v1886 = vpop.f32.mrf.mxu0
    %v1887 = vadd.f32 %v267, %v1886
    %1888 = vdwg.mxu0
    %1889 = vmatprep.subr.mxu0 %v193
    %1890 = vmatpush1.msra.mxu0 %v192
    %1891 = vmatprep.subr.mxu0 %v189
    %1892 = vmatpush1.msra.mxu0 %v188
    %1893 = vmatprep.subr.mxu0 %v185
    %1894 = vmatpush1.msra.mxu0 %v184
    %1895 = vmatprep.subr.mxu0 %v181
    %1896 = vmatpush1.msra.mxu0 %v180
    %1897 = vmatprep.subr.mxu0 %v177
    %1898 = vmatpush1.msra.mxu0 %v176
    %1899 = vmatprep.subr.mxu0 %v173
    %1900 = vmatpush1.msra.mxu0 %v172
    %1901 = vmatprep.subr.mxu0 %v169
    %1902 = vmatpush1.msra.mxu0 %v168
    %1903 = vmatprep.subr.mxu0 %v165
    %1904 = vmatpush1.msra.mxu0 %v164
    %1905 = vmatprep.subr.mxu0 %v161
    %1906 = vmatpush1.msra.mxu0 %v160
    %1907 = vmatprep.subr.mxu0 %v157
    %1908 = vmatpush1.msra.mxu0 %v156
    %1909 = vmatprep.subr.mxu0 %v153
    %1910 = vmatpush1.msra.mxu0 %v152
    %1911 = vmatprep.subr.mxu0 %v149
    %1912 = vmatpush1.msra.mxu0 %v148
    %1913 = vmatprep.subr.mxu0 %v145
    %1914 = vmatpush1.msra.mxu0 %v144
    %1915 = vmatprep.subr.mxu0 %v141
    %1916 = vmatpush1.msra.mxu0 %v140
    %1917 = vmatprep.subr.mxu0 %v137
    %1918 = vmatpush1.msra.mxu0 %v136
    %1919 = vmatprep.subr.mxu0 %v133
    %1920 = vmatpush1.msra.mxu0 %v132
    %1921 = vmatprep.subr.mxu0 %v257
    %1922 = vmatpush2.msra.mxu0 %v256
    %1923 = vmatprep.subr.mxu0 %v253
    %1924 = vmatpush2.msra.mxu0 %v252
    %1925 = vmatprep.subr.mxu0 %v249
    %1926 = vmatpush2.msra.mxu0 %v248
    %1927 = vmatprep.subr.mxu0 %v245
    %1928 = vmatpush2.msra.mxu0 %v244
    %1929 = vmatprep.subr.mxu0 %v241
    %1930 = vmatpush2.msra.mxu0 %v240
    %1931 = vmatprep.subr.mxu0 %v237
    %1932 = vmatpush2.msra.mxu0 %v236
    %1933 = vmatprep.subr.mxu0 %v233
    %1934 = vmatpush2.msra.mxu0 %v232
    %1935 = vmatprep.subr.mxu0 %v229
    %1936 = vmatpush2.msra.mxu0 %v228
    %1937 = vmatprep.subr.mxu0 %v225
    %1938 = vmatpush2.msra.mxu0 %v224
    %1939 = vmatprep.subr.mxu0 %v221
    %1940 = vmatpush2.msra.mxu0 %v220
    %1941 = vmatprep.subr.mxu0 %v217
    %1942 = vmatpush2.msra.mxu0 %v216
    %1943 = vmatprep.subr.mxu0 %v213
    %1944 = vmatpush2.msra.mxu0 %v212
    %1945 = vmatprep.subr.mxu0 %v209
    %1946 = vmatpush2.msra.mxu0 %v208
    %1947 = vmatprep.subr.mxu0 %v205
    %1948 = vmatpush2.msra.mxu0 %v204
    %1949 = vmatprep.subr.mxu0 %v201
    %1950 = vmatpush2.msra.mxu0 %v200
    %1951 = vmatprep.subr.mxu0 %v197
    %1952 = vmatpush2.msra.mxu0 %v196
    %1953 = vmatprep.mubr.f32.mxu0 %v1642
    %1954 = vmatmul.mubr.f32.gmra.mxu0 %v1817
    %v1955 = vpop.f32.mrf.mxu0
    %v1956 = vadd.f32 %v271, %v1955
    %v1957 = vpop.f32.mrf.mxu0
    %v1958 = vadd.f32 %v275, %v1957
    %1959 = vdwg.mxu0
    %v1960 = vxor.u32 %v1885, 2147483648
    %v1961 = vmul.f32 %v1960, 1.442695
    %v1962 = vpow.pop %v1961
    %v1963 = vadd.f32 %v1962, 1.0
    %v1964 = vrcp.pop %v1963
    %v1965 = vmul.f32 1.0, %v1964
    %v1966 = vxor.u32 %v1887, 2147483648
    %v1967 = vmul.f32 %v1966, 1.442695
    %v1968 = vpow.pop %v1967
    %v1969 = vadd.f32 %v1968, 1.0
    %v1970 = vrcp.pop %v1969
    %v1971 = vmul.f32 1.0, %v1970
    %v1972 = vtanh.pop %v1956
    %v1973 = vxor.u32 %v1958, 2147483648
    %v1974 = vmul.f32 %v1973, 1.442695
    %v1975 = vpow.pop %v1974
    %v1976 = vadd.f32 %v1975, 1.0
    %v1977 = vrcp.pop %v1976
    %v1978 = vmul.f32 1.0, %v1977
    %v1979 = vmul.f32 %v1971, %v1640
    %v1980 = vmul.f32 %v1965, %v1972
    %v1981 = vadd.f32 %v1979, %v1980
    %v1982 = vtanh.pop %v1981
    %v1983 = vmul.f32 %v1978, %v1982
    %s1984 = scalar_lea.vmem [#allocation3], 160
    %v1985 = vld [vmem:[%s1984] sm:$0xff]
    %v1986 = vld [vmem:[%s1984 + $0x8] sm:$0xff]
    %v1987 = vld [vmem:[%s1984 + $0x10] sm:$0xff]
    %v1988 = vld [vmem:[%s1984 + $0x18] sm:$0xff]
    %1989 = vmatprep.subr.mxu0 %v127
    %1990 = vmatpush1.msra.mxu0 %v126
    %1991 = vmatprep.subr.mxu0 %v123
    %1992 = vmatpush1.msra.mxu0 %v122
    %1993 = vmatprep.subr.mxu0 %v119
    %1994 = vmatpush1.msra.mxu0 %v118
    %1995 = vmatprep.subr.mxu0 %v115
    %1996 = vmatpush1.msra.mxu0 %v114
    %1997 = vmatprep.subr.mxu0 %v111
    %1998 = vmatpush1.msra.mxu0 %v110
    %1999 = vmatprep.subr.mxu0 %v107
    %2000 = vmatpush1.msra.mxu0 %v106
    %2001 = vmatprep.subr.mxu0 %v103
    %2002 = vmatpush1.msra.mxu0 %v102
    %2003 = vmatprep.subr.mxu0 %v99
    %2004 = vmatpush1.msra.mxu0 %v98
    %2005 = vmatprep.subr.mxu0 %v95
    %2006 = vmatpush1.msra.mxu0 %v94
    %2007 = vmatprep.subr.mxu0 %v91
    %2008 = vmatpush1.msra.mxu0 %v90
    %2009 = vmatprep.subr.mxu0 %v87
    %2010 = vmatpush1.msra.mxu0 %v86
    %2011 = vmatprep.subr.mxu0 %v83
    %2012 = vmatpush1.msra.mxu0 %v82
    %2013 = vmatprep.subr.mxu0 %v79
    %2014 = vmatpush1.msra.mxu0 %v78
    %2015 = vmatprep.subr.mxu0 %v75
    %2016 = vmatpush1.msra.mxu0 %v74
    %2017 = vmatprep.subr.mxu0 %v71
    %2018 = vmatpush1.msra.mxu0 %v70
    %2019 = vmatprep.subr.mxu0 %v67
    %2020 = vmatpush1.msra.mxu0 %v66
    %2021 = vmatprep.subr.mxu0 0.0
    %2022 = vmatpush2.msra.mxu0 0.0
    %2023 = vmatprep.subr.mxu0 0.0
    %2024 = vmatpush2.msra.mxu0 0.0
    %2025 = vmatprep.subr.mxu0 0.0
    %2026 = vmatpush2.msra.mxu0 0.0
    %2027 = vmatprep.subr.mxu0 0.0
    %2028 = vmatpush2.msra.mxu0 0.0
    %2029 = vmatprep.subr.mxu0 0.0
    %2030 = vmatpush2.msra.mxu0 0.0
    %2031 = vmatprep.subr.mxu0 0.0
    %2032 = vmatpush2.msra.mxu0 0.0
    %2033 = vmatprep.subr.mxu0 0.0
    %2034 = vmatpush2.msra.mxu0 0.0
    %2035 = vmatprep.subr.mxu0 0.0
    %2036 = vmatpush2.msra.mxu0 0.0
    %2037 = vmatprep.subr.mxu0 0.0
    %2038 = vmatpush2.msra.mxu0 0.0
    %2039 = vmatprep.subr.mxu0 0.0
    %2040 = vmatpush2.msra.mxu0 0.0
    %2041 = vmatprep.subr.mxu0 0.0
    %2042 = vmatpush2.msra.mxu0 0.0
    %2043 = vmatprep.subr.mxu0 0.0
    %2044 = vmatpush2.msra.mxu0 0.0
    %2045 = vmatprep.subr.mxu0 0.0
    %2046 = vmatpush2.msra.mxu0 0.0
    %2047 = vmatprep.subr.mxu0 0.0
    %2048 = vmatpush2.msra.mxu0 0.0
    %2049 = vmatprep.subr.mxu0 0.0
    %2050 = vmatpush2.msra.mxu0 0.0
    %2051 = vmatprep.subr.mxu0 0.0
    %2052 = vmatpush2.msra.mxu0 0.0
    %2053 = vmatprep.mubr.f32.mxu0 0.0
    %2054 = vmatmul.mubr.f32.gmra.mxu0 %v1817
    %v2055 = vpop.f32.mrf.mxu0
    %v2056 = vadd.f32 0.0, %v2055
    %v2057 = vpop.f32.mrf.mxu0
    %v2058 = vadd.f32 0.0, %v2057
    %2059 = vdwg.mxu0
    %2060 = vmatprep.subr.mxu0 %v129
    %2061 = vmatpush1.msra.mxu0 %v128
    %2062 = vmatprep.subr.mxu0 %v125
    %2063 = vmatpush1.msra.mxu0 %v124
    %2064 = vmatprep.subr.mxu0 %v121
    %2065 = vmatpush1.msra.mxu0 %v120
    %2066 = vmatprep.subr.mxu0 %v117
    %2067 = vmatpush1.msra.mxu0 %v116
    %2068 = vmatprep.subr.mxu0 %v113
    %2069 = vmatpush1.msra.mxu0 %v112
    %2070 = vmatprep.subr.mxu0 %v109
    %2071 = vmatpush1.msra.mxu0 %v108
    %2072 = vmatprep.subr.mxu0 %v105
    %2073 = vmatpush1.msra.mxu0 %v104
    %2074 = vmatprep.subr.mxu0 %v101
    %2075 = vmatpush1.msra.mxu0 %v100
    %2076 = vmatprep.subr.mxu0 %v97
    %2077 = vmatpush1.msra.mxu0 %v96
    %2078 = vmatprep.subr.mxu0 %v93
    %2079 = vmatpush1.msra.mxu0 %v92
    %2080 = vmatprep.subr.mxu0 %v89
    %2081 = vmatpush1.msra.mxu0 %v88
    %2082 = vmatprep.subr.mxu0 %v85
    %2083 = vmatpush1.msra.mxu0 %v84
    %2084 = vmatprep.subr.mxu0 %v81
    %2085 = vmatpush1.msra.mxu0 %v80
    %2086 = vmatprep.subr.mxu0 %v77
    %2087 = vmatpush1.msra.mxu0 %v76
    %2088 = vmatprep.subr.mxu0 %v73
    %2089 = vmatpush1.msra.mxu0 %v72
    %2090 = vmatprep.subr.mxu0 %v69
    %2091 = vmatpush1.msra.mxu0 %v68
    %2092 = vmatprep.subr.mxu0 0.0
    %2093 = vmatpush2.msra.mxu0 0.0
    %2094 = vmatprep.subr.mxu0 0.0
    %2095 = vmatpush2.msra.mxu0 0.0
    %2096 = vmatprep.subr.mxu0 0.0
    %2097 = vmatpush2.msra.mxu0 0.0
    %2098 = vmatprep.subr.mxu0 0.0
    %2099 = vmatpush2.msra.mxu0 0.0
    %2100 = vmatprep.subr.mxu0 0.0
    %2101 = vmatpush2.msra.mxu0 0.0
    %2102 = vmatprep.subr.mxu0 0.0
    %2103 = vmatpush2.msra.mxu0 0.0
    %2104 = vmatprep.subr.mxu0 0.0
    %2105 = vmatpush2.msra.mxu0 0.0
    %2106 = vmatprep.subr.mxu0 0.0
    %2107 = vmatpush2.msra.mxu0 0.0
    %2108 = vmatprep.subr.mxu0 0.0
    %2109 = vmatpush2.msra.mxu0 0.0
    %2110 = vmatprep.subr.mxu0 0.0
    %2111 = vmatpush2.msra.mxu0 0.0
    %2112 = vmatprep.subr.mxu0 0.0
    %2113 = vmatpush2.msra.mxu0 0.0
    %2114 = vmatprep.subr.mxu0 0.0
    %2115 = vmatpush2.msra.mxu0 0.0
    %2116 = vmatprep.subr.mxu0 0.0
    %2117 = vmatpush2.msra.mxu0 0.0
    %2118 = vmatprep.subr.mxu0 0.0
    %2119 = vmatpush2.msra.mxu0 0.0
    %2120 = vmatprep.subr.mxu0 0.0
    %2121 = vmatpush2.msra.mxu0 0.0
    %2122 = vmatprep.subr.mxu0 0.0
    %2123 = vmatpush2.msra.mxu0 0.0
    %2124 = vmatprep.mubr.f32.mxu0 0.0
    %2125 = vmatmul.mubr.f32.gmra.mxu0 %v1817
    %v2126 = vpop.f32.mrf.mxu0
    %v2127 = vadd.f32 0.0, %v2126
    %v2128 = vpop.f32.mrf.mxu0
    %v2129 = vadd.f32 0.0, %v2128
    %2130 = vdwg.mxu0
    %v2131 = vadd.f32 %v1985, %v2056
    %v2132 = vadd.f32 %v1986, %v2058
    %v2133 = vadd.f32 %v1987, %v2127
    %v2134 = vadd.f32 %v1988, %v2129
    %v2135 = vxor.u32 %v2131, 2147483648
    %v2136 = vmul.f32 %v2135, 1.442695
    %v2137 = vpow.pop %v2136
    %v2138 = vadd.f32 %v2137, 1.0
    %v2139 = vrcp.pop %v2138
    %v2140 = vmul.f32 1.0, %v2139
    %v2141 = vxor.u32 %v2132, 2147483648
    %v2142 = vmul.f32 %v2141, 1.442695
    %v2143 = vpow.pop %v2142
    %v2144 = vadd.f32 %v2143, 1.0
    %v2145 = vrcp.pop %v2144
    %v2146 = vmul.f32 1.0, %v2145
    %v2147 = vtanh.pop %v2133
    %v2148 = vxor.u32 %v2134, 2147483648
    %v2149 = vmul.f32 %v2148, 1.442695
    %v2150 = vpow.pop %v2149
    %v2151 = vadd.f32 %v2150, 1.0
    %v2152 = vrcp.pop %v2151
    %v2153 = vmul.f32 1.0, %v2152
    %v2154 = vmul.f32 %v2146, %v1815
    %v2155 = vmul.f32 %v2140, %v2147
    %v2156 = vadd.f32 %v2154, %v2155
    %v2157 = vtanh.pop %v2156
    %v2158 = vmul.f32 %v2153, %v2157
    %2159 = vmatprep.subr.mxu0 %v191
    %2160 = vmatpush1.msra.mxu0 %v190
    %2161 = vmatprep.subr.mxu0 %v187
    %2162 = vmatpush1.msra.mxu0 %v186
    %2163 = vmatprep.subr.mxu0 %v183
    %2164 = vmatpush1.msra.mxu0 %v182
    %2165 = vmatprep.subr.mxu0 %v179
    %2166 = vmatpush1.msra.mxu0 %v178
    %2167 = vmatprep.subr.mxu0 %v175
    %2168 = vmatpush1.msra.mxu0 %v174
    %2169 = vmatprep.subr.mxu0 %v171
    %2170 = vmatpush1.msra.mxu0 %v170
    %2171 = vmatprep.subr.mxu0 %v167
    %2172 = vmatpush1.msra.mxu0 %v166
    %2173 = vmatprep.subr.mxu0 %v163
    %2174 = vmatpush1.msra.mxu0 %v162
    %2175 = vmatprep.subr.mxu0 %v159
    %2176 = vmatpush1.msra.mxu0 %v158
    %2177 = vmatprep.subr.mxu0 %v155
    %2178 = vmatpush1.msra.mxu0 %v154
    %2179 = vmatprep.subr.mxu0 %v151
    %2180 = vmatpush1.msra.mxu0 %v150
    %2181 = vmatprep.subr.mxu0 %v147
    %2182 = vmatpush1.msra.mxu0 %v146
    %2183 = vmatprep.subr.mxu0 %v143
    %2184 = vmatpush1.msra.mxu0 %v142
    %2185 = vmatprep.subr.mxu0 %v139
    %2186 = vmatpush1.msra.mxu0 %v138
    %2187 = vmatprep.subr.mxu0 %v135
    %2188 = vmatpush1.msra.mxu0 %v134
    %2189 = vmatprep.subr.mxu0 %v131
    %2190 = vmatpush1.msra.mxu0 %v130
    %2191 = vmatprep.subr.mxu0 %v255
    %2192 = vmatpush2.msra.mxu0 %v254
    %2193 = vmatprep.subr.mxu0 %v251
    %2194 = vmatpush2.msra.mxu0 %v250
    %2195 = vmatprep.subr.mxu0 %v247
    %2196 = vmatpush2.msra.mxu0 %v246
    %2197 = vmatprep.subr.mxu0 %v243
    %2198 = vmatpush2.msra.mxu0 %v242
    %2199 = vmatprep.subr.mxu0 %v239
    %2200 = vmatpush2.msra.mxu0 %v238
    %2201 = vmatprep.subr.mxu0 %v235
    %2202 = vmatpush2.msra.mxu0 %v234
    %2203 = vmatprep.subr.mxu0 %v231
    %2204 = vmatpush2.msra.mxu0 %v230
    %2205 = vmatprep.subr.mxu0 %v227
    %2206 = vmatpush2.msra.mxu0 %v226
    %2207 = vmatprep.subr.mxu0 %v223
    %2208 = vmatpush2.msra.mxu0 %v222
    %2209 = vmatprep.subr.mxu0 %v219
    %2210 = vmatpush2.msra.mxu0 %v218
    %2211 = vmatprep.subr.mxu0 %v215
    %2212 = vmatpush2.msra.mxu0 %v214
    %2213 = vmatprep.subr.mxu0 %v211
    %2214 = vmatpush2.msra.mxu0 %v210
    %2215 = vmatprep.subr.mxu0 %v207
    %2216 = vmatpush2.msra.mxu0 %v206
    %2217 = vmatprep.subr.mxu0 %v203
    %2218 = vmatpush2.msra.mxu0 %v202
    %2219 = vmatprep.subr.mxu0 %v199
    %2220 = vmatpush2.msra.mxu0 %v198
    %2221 = vmatprep.subr.mxu0 %v195
    %2222 = vmatpush2.msra.mxu0 %v194
    %2223 = vmatprep.mubr.f32.mxu0 %v1983
    %2224 = vmatmul.mubr.f32.gmra.mxu0 %v2158
    %v2225 = vpop.f32.mrf.mxu0
    %v2226 = vadd.f32 %v263, %v2225
    %v2227 = vpop.f32.mrf.mxu0
    %v2228 = vadd.f32 %v267, %v2227
    %2229 = vdwg.mxu0
    %2230 = vmatprep.subr.mxu0 %v193
    %2231 = vmatpush1.msra.mxu0 %v192
    %2232 = vmatprep.subr.mxu0 %v189
    %2233 = vmatpush1.msra.mxu0 %v188
    %2234 = vmatprep.subr.mxu0 %v185
    %2235 = vmatpush1.msra.mxu0 %v184
    %2236 = vmatprep.subr.mxu0 %v181
    %2237 = vmatpush1.msra.mxu0 %v180
    %2238 = vmatprep.subr.mxu0 %v177
    %2239 = vmatpush1.msra.mxu0 %v176
    %2240 = vmatprep.subr.mxu0 %v173
    %2241 = vmatpush1.msra.mxu0 %v172
    %2242 = vmatprep.subr.mxu0 %v169
    %2243 = vmatpush1.msra.mxu0 %v168
    %2244 = vmatprep.subr.mxu0 %v165
    %2245 = vmatpush1.msra.mxu0 %v164
    %2246 = vmatprep.subr.mxu0 %v161
    %2247 = vmatpush1.msra.mxu0 %v160
    %2248 = vmatprep.subr.mxu0 %v157
    %2249 = vmatpush1.msra.mxu0 %v156
    %2250 = vmatprep.subr.mxu0 %v153
    %2251 = vmatpush1.msra.mxu0 %v152
    %2252 = vmatprep.subr.mxu0 %v149
    %2253 = vmatpush1.msra.mxu0 %v148
    %2254 = vmatprep.subr.mxu0 %v145
    %2255 = vmatpush1.msra.mxu0 %v144
    %2256 = vmatprep.subr.mxu0 %v141
    %2257 = vmatpush1.msra.mxu0 %v140
    %2258 = vmatprep.subr.mxu0 %v137
    %2259 = vmatpush1.msra.mxu0 %v136
    %2260 = vmatprep.subr.mxu0 %v133
    %2261 = vmatpush1.msra.mxu0 %v132
    %2262 = vmatprep.subr.mxu0 %v257
    %2263 = vmatpush2.msra.mxu0 %v256
    %2264 = vmatprep.subr.mxu0 %v253
    %2265 = vmatpush2.msra.mxu0 %v252
    %2266 = vmatprep.subr.mxu0 %v249
    %2267 = vmatpush2.msra.mxu0 %v248
    %2268 = vmatprep.subr.mxu0 %v245
    %2269 = vmatpush2.msra.mxu0 %v244
    %2270 = vmatprep.subr.mxu0 %v241
    %2271 = vmatpush2.msra.mxu0 %v240
    %2272 = vmatprep.subr.mxu0 %v237
    %2273 = vmatpush2.msra.mxu0 %v236
    %2274 = vmatprep.subr.mxu0 %v233
    %2275 = vmatpush2.msra.mxu0 %v232
    %2276 = vmatprep.subr.mxu0 %v229
    %2277 = vmatpush2.msra.mxu0 %v228
    %2278 = vmatprep.subr.mxu0 %v225
    %2279 = vmatpush2.msra.mxu0 %v224
    %2280 = vmatprep.subr.mxu0 %v221
    %2281 = vmatpush2.msra.mxu0 %v220
    %2282 = vmatprep.subr.mxu0 %v217
    %2283 = vmatpush2.msra.mxu0 %v216
    %2284 = vmatprep.subr.mxu0 %v213
    %2285 = vmatpush2.msra.mxu0 %v212
    %2286 = vmatprep.subr.mxu0 %v209
    %2287 = vmatpush2.msra.mxu0 %v208
    %2288 = vmatprep.subr.mxu0 %v205
    %2289 = vmatpush2.msra.mxu0 %v204
    %2290 = vmatprep.subr.mxu0 %v201
    %2291 = vmatpush2.msra.mxu0 %v200
    %2292 = vmatprep.subr.mxu0 %v197
    %2293 = vmatpush2.msra.mxu0 %v196
    %2294 = vmatprep.mubr.f32.mxu0 %v1983
    %2295 = vmatmul.mubr.f32.gmra.mxu0 %v2158
    %v2296 = vpop.f32.mrf.mxu0
    %v2297 = vadd.f32 %v271, %v2296
    %v2298 = vpop.f32.mrf.mxu0
    %v2299 = vadd.f32 %v275, %v2298
    %2300 = vdwg.mxu0
    %v2301 = vxor.u32 %v2226, 2147483648
    %v2302 = vmul.f32 %v2301, 1.442695
    %v2303 = vpow.pop %v2302
    %v2304 = vadd.f32 %v2303, 1.0
    %v2305 = vrcp.pop %v2304
    %v2306 = vmul.f32 1.0, %v2305
    %v2307 = vxor.u32 %v2228, 2147483648
    %v2308 = vmul.f32 %v2307, 1.442695
    %v2309 = vpow.pop %v2308
    %v2310 = vadd.f32 %v2309, 1.0
    %v2311 = vrcp.pop %v2310
    %v2312 = vmul.f32 1.0, %v2311
    %v2313 = vtanh.pop %v2297
    %v2314 = vxor.u32 %v2299, 2147483648
    %v2315 = vmul.f32 %v2314, 1.442695
    %v2316 = vpow.pop %v2315
    %v2317 = vadd.f32 %v2316, 1.0
    %v2318 = vrcp.pop %v2317
    %v2319 = vmul.f32 1.0, %v2318
    %v2320 = vmul.f32 %v2312, %v1981
    %v2321 = vmul.f32 %v2306, %v2313
    %v2322 = vadd.f32 %v2320, %v2321
    %v2323 = vtanh.pop %v2322
    %v2324 = vmul.f32 %v2319, %v2323
    %s2325 = scalar_lea.vmem [#allocation3], 192
    %v2326 = vld [vmem:[%s2325] sm:$0xff]
    %v2327 = vld [vmem:[%s2325 + $0x8] sm:$0xff]
    %v2328 = vld [vmem:[%s2325 + $0x10] sm:$0xff]
    %v2329 = vld [vmem:[%s2325 + $0x18] sm:$0xff]
    %2330 = vmatprep.subr.mxu0 %v127
    %2331 = vmatpush1.msra.mxu0 %v126
    %2332 = vmatprep.subr.mxu0 %v123
    %2333 = vmatpush1.msra.mxu0 %v122
    %2334 = vmatprep.subr.mxu0 %v119
    %2335 = vmatpush1.msra.mxu0 %v118
    %2336 = vmatprep.subr.mxu0 %v115
    %2337 = vmatpush1.msra.mxu0 %v114
    %2338 = vmatprep.subr.mxu0 %v111
    %2339 = vmatpush1.msra.mxu0 %v110
    %2340 = vmatprep.subr.mxu0 %v107
    %2341 = vmatpush1.msra.mxu0 %v106
    %2342 = vmatprep.subr.mxu0 %v103
    %2343 = vmatpush1.msra.mxu0 %v102
    %2344 = vmatprep.subr.mxu0 %v99
    %2345 = vmatpush1.msra.mxu0 %v98
    %2346 = vmatprep.subr.mxu0 %v95
    %2347 = vmatpush1.msra.mxu0 %v94
    %2348 = vmatprep.subr.mxu0 %v91
    %2349 = vmatpush1.msra.mxu0 %v90
    %2350 = vmatprep.subr.mxu0 %v87
    %2351 = vmatpush1.msra.mxu0 %v86
    %2352 = vmatprep.subr.mxu0 %v83
    %2353 = vmatpush1.msra.mxu0 %v82
    %2354 = vmatprep.subr.mxu0 %v79
    %2355 = vmatpush1.msra.mxu0 %v78
    %2356 = vmatprep.subr.mxu0 %v75
    %2357 = vmatpush1.msra.mxu0 %v74
    %2358 = vmatprep.subr.mxu0 %v71
    %2359 = vmatpush1.msra.mxu0 %v70
    %2360 = vmatprep.subr.mxu0 %v67
    %2361 = vmatpush1.msra.mxu0 %v66
    %2362 = vmatprep.subr.mxu0 0.0
    %2363 = vmatpush2.msra.mxu0 0.0
    %2364 = vmatprep.subr.mxu0 0.0
    %2365 = vmatpush2.msra.mxu0 0.0
    %2366 = vmatprep.subr.mxu0 0.0
    %2367 = vmatpush2.msra.mxu0 0.0
    %2368 = vmatprep.subr.mxu0 0.0
    %2369 = vmatpush2.msra.mxu0 0.0
    %2370 = vmatprep.subr.mxu0 0.0
    %2371 = vmatpush2.msra.mxu0 0.0
    %2372 = vmatprep.subr.mxu0 0.0
    %2373 = vmatpush2.msra.mxu0 0.0
    %2374 = vmatprep.subr.mxu0 0.0
    %2375 = vmatpush2.msra.mxu0 0.0
    %2376 = vmatprep.subr.mxu0 0.0
    %2377 = vmatpush2.msra.mxu0 0.0
    %2378 = vmatprep.subr.mxu0 0.0
    %2379 = vmatpush2.msra.mxu0 0.0
    %2380 = vmatprep.subr.mxu0 0.0
    %2381 = vmatpush2.msra.mxu0 0.0
    %2382 = vmatprep.subr.mxu0 0.0
    %2383 = vmatpush2.msra.mxu0 0.0
    %2384 = vmatprep.subr.mxu0 0.0
    %2385 = vmatpush2.msra.mxu0 0.0
    %2386 = vmatprep.subr.mxu0 0.0
    %2387 = vmatpush2.msra.mxu0 0.0
    %2388 = vmatprep.subr.mxu0 0.0
    %2389 = vmatpush2.msra.mxu0 0.0
    %2390 = vmatprep.subr.mxu0 0.0
    %2391 = vmatpush2.msra.mxu0 0.0
    %2392 = vmatprep.subr.mxu0 0.0
    %2393 = vmatpush2.msra.mxu0 0.0
    %2394 = vmatprep.mubr.f32.mxu0 0.0
    %2395 = vmatmul.mubr.f32.gmra.mxu0 %v2158
    %v2396 = vpop.f32.mrf.mxu0
    %v2397 = vadd.f32 0.0, %v2396
    %v2398 = vpop.f32.mrf.mxu0
    %v2399 = vadd.f32 0.0, %v2398
    %2400 = vdwg.mxu0
    %2401 = vmatprep.subr.mxu0 %v129
    %2402 = vmatpush1.msra.mxu0 %v128
    %2403 = vmatprep.subr.mxu0 %v125
    %2404 = vmatpush1.msra.mxu0 %v124
    %2405 = vmatprep.subr.mxu0 %v121
    %2406 = vmatpush1.msra.mxu0 %v120
    %2407 = vmatprep.subr.mxu0 %v117
    %2408 = vmatpush1.msra.mxu0 %v116
    %2409 = vmatprep.subr.mxu0 %v113
    %2410 = vmatpush1.msra.mxu0 %v112
    %2411 = vmatprep.subr.mxu0 %v109
    %2412 = vmatpush1.msra.mxu0 %v108
    %2413 = vmatprep.subr.mxu0 %v105
    %2414 = vmatpush1.msra.mxu0 %v104
    %2415 = vmatprep.subr.mxu0 %v101
    %2416 = vmatpush1.msra.mxu0 %v100
    %2417 = vmatprep.subr.mxu0 %v97
    %2418 = vmatpush1.msra.mxu0 %v96
    %2419 = vmatprep.subr.mxu0 %v93
    %2420 = vmatpush1.msra.mxu0 %v92
    %2421 = vmatprep.subr.mxu0 %v89
    %2422 = vmatpush1.msra.mxu0 %v88
    %2423 = vmatprep.subr.mxu0 %v85
    %2424 = vmatpush1.msra.mxu0 %v84
    %2425 = vmatprep.subr.mxu0 %v81
    %2426 = vmatpush1.msra.mxu0 %v80
    %2427 = vmatprep.subr.mxu0 %v77
    %2428 = vmatpush1.msra.mxu0 %v76
    %2429 = vmatprep.subr.mxu0 %v73
    %2430 = vmatpush1.msra.mxu0 %v72
    %2431 = vmatprep.subr.mxu0 %v69
    %2432 = vmatpush1.msra.mxu0 %v68
    %2433 = vmatprep.subr.mxu0 0.0
    %2434 = vmatpush2.msra.mxu0 0.0
    %2435 = vmatprep.subr.mxu0 0.0
    %2436 = vmatpush2.msra.mxu0 0.0
    %2437 = vmatprep.subr.mxu0 0.0
    %2438 = vmatpush2.msra.mxu0 0.0
    %2439 = vmatprep.subr.mxu0 0.0
    %2440 = vmatpush2.msra.mxu0 0.0
    %2441 = vmatprep.subr.mxu0 0.0
    %2442 = vmatpush2.msra.mxu0 0.0
    %2443 = vmatprep.subr.mxu0 0.0
    %2444 = vmatpush2.msra.mxu0 0.0
    %2445 = vmatprep.subr.mxu0 0.0
    %2446 = vmatpush2.msra.mxu0 0.0
    %2447 = vmatprep.subr.mxu0 0.0
    %2448 = vmatpush2.msra.mxu0 0.0
    %2449 = vmatprep.subr.mxu0 0.0
    %2450 = vmatpush2.msra.mxu0 0.0
    %2451 = vmatprep.subr.mxu0 0.0
    %2452 = vmatpush2.msra.mxu0 0.0
    %2453 = vmatprep.subr.mxu0 0.0
    %2454 = vmatpush2.msra.mxu0 0.0
    %2455 = vmatprep.subr.mxu0 0.0
    %2456 = vmatpush2.msra.mxu0 0.0
    %2457 = vmatprep.subr.mxu0 0.0
    %2458 = vmatpush2.msra.mxu0 0.0
    %2459 = vmatprep.subr.mxu0 0.0
    %2460 = vmatpush2.msra.mxu0 0.0
    %2461 = vmatprep.subr.mxu0 0.0
    %2462 = vmatpush2.msra.mxu0 0.0
    %2463 = vmatprep.subr.mxu0 0.0
    %2464 = vmatpush2.msra.mxu0 0.0
    %2465 = vmatprep.mubr.f32.mxu0 0.0
    %2466 = vmatmul.mubr.f32.gmra.mxu0 %v2158
    %v2467 = vpop.f32.mrf.mxu0
    %v2468 = vadd.f32 0.0, %v2467
    %v2469 = vpop.f32.mrf.mxu0
    %v2470 = vadd.f32 0.0, %v2469
    %2471 = vdwg.mxu0
    %v2472 = vadd.f32 %v2326, %v2397
    %v2473 = vadd.f32 %v2327, %v2399
    %v2474 = vadd.f32 %v2328, %v2468
    %v2475 = vadd.f32 %v2329, %v2470
    %v2476 = vxor.u32 %v2472, 2147483648
    %v2477 = vmul.f32 %v2476, 1.442695
    %v2478 = vpow.pop %v2477
    %v2479 = vadd.f32 %v2478, 1.0
    %v2480 = vrcp.pop %v2479
    %v2481 = vmul.f32 1.0, %v2480
    %v2482 = vxor.u32 %v2473, 2147483648
    %v2483 = vmul.f32 %v2482, 1.442695
    %v2484 = vpow.pop %v2483
    %v2485 = vadd.f32 %v2484, 1.0
    %v2486 = vrcp.pop %v2485
    %v2487 = vmul.f32 1.0, %v2486
    %v2488 = vtanh.pop %v2474
    %v2489 = vxor.u32 %v2475, 2147483648
    %v2490 = vmul.f32 %v2489, 1.442695
    %v2491 = vpow.pop %v2490
    %v2492 = vadd.f32 %v2491, 1.0
    %v2493 = vrcp.pop %v2492
    %v2494 = vmul.f32 1.0, %v2493
    %v2495 = vmul.f32 %v2487, %v2156
    %v2496 = vmul.f32 %v2481, %v2488
    %v2497 = vadd.f32 %v2495, %v2496
    %v2498 = vtanh.pop %v2497
    %v2499 = vmul.f32 %v2494, %v2498
    %2500 = vmatprep.subr.mxu0 %v191
    %2501 = vmatpush1.msra.mxu0 %v190
    %2502 = vmatprep.subr.mxu0 %v187
    %2503 = vmatpush1.msra.mxu0 %v186
    %2504 = vmatprep.subr.mxu0 %v183
    %2505 = vmatpush1.msra.mxu0 %v182
    %2506 = vmatprep.subr.mxu0 %v179
    %2507 = vmatpush1.msra.mxu0 %v178
    %2508 = vmatprep.subr.mxu0 %v175
    %2509 = vmatpush1.msra.mxu0 %v174
    %2510 = vmatprep.subr.mxu0 %v171
    %2511 = vmatpush1.msra.mxu0 %v170
    %2512 = vmatprep.subr.mxu0 %v167
    %2513 = vmatpush1.msra.mxu0 %v166
    %2514 = vmatprep.subr.mxu0 %v163
    %2515 = vmatpush1.msra.mxu0 %v162
    %2516 = vmatprep.subr.mxu0 %v159
    %2517 = vmatpush1.msra.mxu0 %v158
    %2518 = vmatprep.subr.mxu0 %v155
    %2519 = vmatpush1.msra.mxu0 %v154
    %2520 = vmatprep.subr.mxu0 %v151
    %2521 = vmatpush1.msra.mxu0 %v150
    %2522 = vmatprep.subr.mxu0 %v147
    %2523 = vmatpush1.msra.mxu0 %v146
    %2524 = vmatprep.subr.mxu0 %v143
    %2525 = vmatpush1.msra.mxu0 %v142
    %2526 = vmatprep.subr.mxu0 %v139
    %2527 = vmatpush1.msra.mxu0 %v138
    %2528 = vmatprep.subr.mxu0 %v135
    %2529 = vmatpush1.msra.mxu0 %v134
    %2530 = vmatprep.subr.mxu0 %v131
    %2531 = vmatpush1.msra.mxu0 %v130
    %2532 = vmatprep.subr.mxu0 %v255
    %2533 = vmatpush2.msra.mxu0 %v254
    %2534 = vmatprep.subr.mxu0 %v251
    %2535 = vmatpush2.msra.mxu0 %v250
    %2536 = vmatprep.subr.mxu0 %v247
    %2537 = vmatpush2.msra.mxu0 %v246
    %2538 = vmatprep.subr.mxu0 %v243
    %2539 = vmatpush2.msra.mxu0 %v242
    %2540 = vmatprep.subr.mxu0 %v239
    %2541 = vmatpush2.msra.mxu0 %v238
    %2542 = vmatprep.subr.mxu0 %v235
    %2543 = vmatpush2.msra.mxu0 %v234
    %2544 = vmatprep.subr.mxu0 %v231
    %2545 = vmatpush2.msra.mxu0 %v230
    %2546 = vmatprep.subr.mxu0 %v227
    %2547 = vmatpush2.msra.mxu0 %v226
    %2548 = vmatprep.subr.mxu0 %v223
    %2549 = vmatpush2.msra.mxu0 %v222
    %2550 = vmatprep.subr.mxu0 %v219
    %2551 = vmatpush2.msra.mxu0 %v218
    %2552 = vmatprep.subr.mxu0 %v215
    %2553 = vmatpush2.msra.mxu0 %v214
    %2554 = vmatprep.subr.mxu0 %v211
    %2555 = vmatpush2.msra.mxu0 %v210
    %2556 = vmatprep.subr.mxu0 %v207
    %2557 = vmatpush2.msra.mxu0 %v206
    %2558 = vmatprep.subr.mxu0 %v203
    %2559 = vmatpush2.msra.mxu0 %v202
    %2560 = vmatprep.subr.mxu0 %v199
    %2561 = vmatpush2.msra.mxu0 %v198
    %2562 = vmatprep.subr.mxu0 %v195
    %2563 = vmatpush2.msra.mxu0 %v194
    %2564 = vmatprep.mubr.f32.mxu0 %v2324
    %2565 = vmatmul.mubr.f32.gmra.mxu0 %v2499
    %v2566 = vpop.f32.mrf.mxu0
    %v2567 = vadd.f32 %v263, %v2566
    %v2568 = vpop.f32.mrf.mxu0
    %v2569 = vadd.f32 %v267, %v2568
    %2570 = vdwg.mxu0
    %2571 = vmatprep.subr.mxu0 %v193
    %2572 = vmatpush1.msra.mxu0 %v192
    %2573 = vmatprep.subr.mxu0 %v189
    %2574 = vmatpush1.msra.mxu0 %v188
    %2575 = vmatprep.subr.mxu0 %v185
    %2576 = vmatpush1.msra.mxu0 %v184
    %2577 = vmatprep.subr.mxu0 %v181
    %2578 = vmatpush1.msra.mxu0 %v180
    %2579 = vmatprep.subr.mxu0 %v177
    %2580 = vmatpush1.msra.mxu0 %v176
    %2581 = vmatprep.subr.mxu0 %v173
    %2582 = vmatpush1.msra.mxu0 %v172
    %2583 = vmatprep.subr.mxu0 %v169
    %2584 = vmatpush1.msra.mxu0 %v168
    %2585 = vmatprep.subr.mxu0 %v165
    %2586 = vmatpush1.msra.mxu0 %v164
    %2587 = vmatprep.subr.mxu0 %v161
    %2588 = vmatpush1.msra.mxu0 %v160
    %2589 = vmatprep.subr.mxu0 %v157
    %2590 = vmatpush1.msra.mxu0 %v156
    %2591 = vmatprep.subr.mxu0 %v153
    %2592 = vmatpush1.msra.mxu0 %v152
    %2593 = vmatprep.subr.mxu0 %v149
    %2594 = vmatpush1.msra.mxu0 %v148
    %2595 = vmatprep.subr.mxu0 %v145
    %2596 = vmatpush1.msra.mxu0 %v144
    %2597 = vmatprep.subr.mxu0 %v141
    %2598 = vmatpush1.msra.mxu0 %v140
    %2599 = vmatprep.subr.mxu0 %v137
    %2600 = vmatpush1.msra.mxu0 %v136
    %2601 = vmatprep.subr.mxu0 %v133
    %2602 = vmatpush1.msra.mxu0 %v132
    %2603 = vmatprep.subr.mxu0 %v257
    %2604 = vmatpush2.msra.mxu0 %v256
    %2605 = vmatprep.subr.mxu0 %v253
    %2606 = vmatpush2.msra.mxu0 %v252
    %2607 = vmatprep.subr.mxu0 %v249
    %2608 = vmatpush2.msra.mxu0 %v248
    %2609 = vmatprep.subr.mxu0 %v245
    %2610 = vmatpush2.msra.mxu0 %v244
    %2611 = vmatprep.subr.mxu0 %v241
    %2612 = vmatpush2.msra.mxu0 %v240
    %2613 = vmatprep.subr.mxu0 %v237
    %2614 = vmatpush2.msra.mxu0 %v236
    %2615 = vmatprep.subr.mxu0 %v233
    %2616 = vmatpush2.msra.mxu0 %v232
    %2617 = vmatprep.subr.mxu0 %v229
    %2618 = vmatpush2.msra.mxu0 %v228
    %2619 = vmatprep.subr.mxu0 %v225
    %2620 = vmatpush2.msra.mxu0 %v224
    %2621 = vmatprep.subr.mxu0 %v221
    %2622 = vmatpush2.msra.mxu0 %v220
    %2623 = vmatprep.subr.mxu0 %v217
    %2624 = vmatpush2.msra.mxu0 %v216
    %2625 = vmatprep.subr.mxu0 %v213
    %2626 = vmatpush2.msra.mxu0 %v212
    %2627 = vmatprep.subr.mxu0 %v209
    %2628 = vmatpush2.msra.mxu0 %v208
    %2629 = vmatprep.subr.mxu0 %v205
    %2630 = vmatpush2.msra.mxu0 %v204
    %2631 = vmatprep.subr.mxu0 %v201
    %2632 = vmatpush2.msra.mxu0 %v200
    %2633 = vmatprep.subr.mxu0 %v197
    %2634 = vmatpush2.msra.mxu0 %v196
    %2635 = vmatprep.mubr.f32.mxu0 %v2324
    %2636 = vmatmul.mubr.f32.gmra.mxu0 %v2499
    %v2637 = vpop.f32.mrf.mxu0
    %v2638 = vadd.f32 %v271, %v2637
    %v2639 = vpop.f32.mrf.mxu0
    %v2640 = vadd.f32 %v275, %v2639
    %2641 = vdwg.mxu0
    %v2642 = vxor.u32 %v2567, 2147483648
    %v2643 = vmul.f32 %v2642, 1.442695
    %v2644 = vpow.pop %v2643
    %v2645 = vadd.f32 %v2644, 1.0
    %v2646 = vrcp.pop %v2645
    %v2647 = vmul.f32 1.0, %v2646
    %v2648 = vxor.u32 %v2569, 2147483648
    %v2649 = vmul.f32 %v2648, 1.442695
    %v2650 = vpow.pop %v2649
    %v2651 = vadd.f32 %v2650, 1.0
    %v2652 = vrcp.pop %v2651
    %v2653 = vmul.f32 1.0, %v2652
    %v2654 = vtanh.pop %v2638
    %v2655 = vxor.u32 %v2640, 2147483648
    %v2656 = vmul.f32 %v2655, 1.442695
    %v2657 = vpow.pop %v2656
    %v2658 = vadd.f32 %v2657, 1.0
    %v2659 = vrcp.pop %v2658
    %v2660 = vmul.f32 1.0, %v2659
    %v2661 = vmul.f32 %v2653, %v2322
    %v2662 = vmul.f32 %v2647, %v2654
    %v2663 = vadd.f32 %v2661, %v2662
    %v2664 = vtanh.pop %v2663
    %v2665 = vmul.f32 %v2660, %v2664
    %s2666 = scalar_lea.vmem [#allocation3], 224
    %v2667 = vld [vmem:[%s2666] sm:$0xff]
    %v2668 = vld [vmem:[%s2666 + $0x8] sm:$0xff]
    %v2669 = vld [vmem:[%s2666 + $0x10] sm:$0xff]
    %v2670 = vld [vmem:[%s2666 + $0x18] sm:$0xff]
    %2671 = vmatprep.subr.mxu0 %v127
    %2672 = vmatpush1.msra.mxu0 %v126
    %2673 = vmatprep.subr.mxu0 %v123
    %2674 = vmatpush1.msra.mxu0 %v122
    %2675 = vmatprep.subr.mxu0 %v119
    %2676 = vmatpush1.msra.mxu0 %v118
    %2677 = vmatprep.subr.mxu0 %v115
    %2678 = vmatpush1.msra.mxu0 %v114
    %2679 = vmatprep.subr.mxu0 %v111
    %2680 = vmatpush1.msra.mxu0 %v110
    %2681 = vmatprep.subr.mxu0 %v107
    %2682 = vmatpush1.msra.mxu0 %v106
    %2683 = vmatprep.subr.mxu0 %v103
    %2684 = vmatpush1.msra.mxu0 %v102
    %2685 = vmatprep.subr.mxu0 %v99
    %2686 = vmatpush1.msra.mxu0 %v98
    %2687 = vmatprep.subr.mxu0 %v95
    %2688 = vmatpush1.msra.mxu0 %v94
    %2689 = vmatprep.subr.mxu0 %v91
    %2690 = vmatpush1.msra.mxu0 %v90
    %2691 = vmatprep.subr.mxu0 %v87
    %2692 = vmatpush1.msra.mxu0 %v86
    %2693 = vmatprep.subr.mxu0 %v83
    %2694 = vmatpush1.msra.mxu0 %v82
    %2695 = vmatprep.subr.mxu0 %v79
    %2696 = vmatpush1.msra.mxu0 %v78
    %2697 = vmatprep.subr.mxu0 %v75
    %2698 = vmatpush1.msra.mxu0 %v74
    %2699 = vmatprep.subr.mxu0 %v71
    %2700 = vmatpush1.msra.mxu0 %v70
    %2701 = vmatprep.subr.mxu0 %v67
    %2702 = vmatpush1.msra.mxu0 %v66
    %2703 = vmatprep.subr.mxu0 0.0
    %2704 = vmatpush2.msra.mxu0 0.0
    %2705 = vmatprep.subr.mxu0 0.0
    %2706 = vmatpush2.msra.mxu0 0.0
    %2707 = vmatprep.subr.mxu0 0.0
    %2708 = vmatpush2.msra.mxu0 0.0
    %2709 = vmatprep.subr.mxu0 0.0
    %2710 = vmatpush2.msra.mxu0 0.0
    %2711 = vmatprep.subr.mxu0 0.0
    %2712 = vmatpush2.msra.mxu0 0.0
    %2713 = vmatprep.subr.mxu0 0.0
    %2714 = vmatpush2.msra.mxu0 0.0
    %2715 = vmatprep.subr.mxu0 0.0
    %2716 = vmatpush2.msra.mxu0 0.0
    %2717 = vmatprep.subr.mxu0 0.0
    %2718 = vmatpush2.msra.mxu0 0.0
    %2719 = vmatprep.subr.mxu0 0.0
    %2720 = vmatpush2.msra.mxu0 0.0
    %2721 = vmatprep.subr.mxu0 0.0
    %2722 = vmatpush2.msra.mxu0 0.0
    %2723 = vmatprep.subr.mxu0 0.0
    %2724 = vmatpush2.msra.mxu0 0.0
    %2725 = vmatprep.subr.mxu0 0.0
    %2726 = vmatpush2.msra.mxu0 0.0
    %2727 = vmatprep.subr.mxu0 0.0
    %2728 = vmatpush2.msra.mxu0 0.0
    %2729 = vmatprep.subr.mxu0 0.0
    %2730 = vmatpush2.msra.mxu0 0.0
    %2731 = vmatprep.subr.mxu0 0.0
    %2732 = vmatpush2.msra.mxu0 0.0
    %2733 = vmatprep.subr.mxu0 0.0
    %2734 = vmatpush2.msra.mxu0 0.0
    %2735 = vmatprep.mubr.f32.mxu0 0.0
    %2736 = vmatmul.mubr.f32.gmra.mxu0 %v2499
    %v2737 = vpop.f32.mrf.mxu0
    %v2738 = vadd.f32 0.0, %v2737
    %v2739 = vpop.f32.mrf.mxu0
    %v2740 = vadd.f32 0.0, %v2739
    %2741 = vdwg.mxu0
    %2742 = vmatprep.subr.mxu0 %v129
    %2743 = vmatpush1.msra.mxu0 %v128
    %2744 = vmatprep.subr.mxu0 %v125
    %2745 = vmatpush1.msra.mxu0 %v124
    %2746 = vmatprep.subr.mxu0 %v121
    %2747 = vmatpush1.msra.mxu0 %v120
    %2748 = vmatprep.subr.mxu0 %v117
    %2749 = vmatpush1.msra.mxu0 %v116
    %2750 = vmatprep.subr.mxu0 %v113
    %2751 = vmatpush1.msra.mxu0 %v112
    %2752 = vmatprep.subr.mxu0 %v109
    %2753 = vmatpush1.msra.mxu0 %v108
    %2754 = vmatprep.subr.mxu0 %v105
    %2755 = vmatpush1.msra.mxu0 %v104
    %2756 = vmatprep.subr.mxu0 %v101
    %2757 = vmatpush1.msra.mxu0 %v100
    %2758 = vmatprep.subr.mxu0 %v97
    %2759 = vmatpush1.msra.mxu0 %v96
    %2760 = vmatprep.subr.mxu0 %v93
    %2761 = vmatpush1.msra.mxu0 %v92
    %2762 = vmatprep.subr.mxu0 %v89
    %2763 = vmatpush1.msra.mxu0 %v88
    %2764 = vmatprep.subr.mxu0 %v85
    %2765 = vmatpush1.msra.mxu0 %v84
    %2766 = vmatprep.subr.mxu0 %v81
    %2767 = vmatpush1.msra.mxu0 %v80
    %2768 = vmatprep.subr.mxu0 %v77
    %2769 = vmatpush1.msra.mxu0 %v76
    %2770 = vmatprep.subr.mxu0 %v73
    %2771 = vmatpush1.msra.mxu0 %v72
    %2772 = vmatprep.subr.mxu0 %v69
    %2773 = vmatpush1.msra.mxu0 %v68
    %2774 = vmatprep.subr.mxu0 0.0
    %2775 = vmatpush2.msra.mxu0 0.0
    %2776 = vmatprep.subr.mxu0 0.0
    %2777 = vmatpush2.msra.mxu0 0.0
    %2778 = vmatprep.subr.mxu0 0.0
    %2779 = vmatpush2.msra.mxu0 0.0
    %2780 = vmatprep.subr.mxu0 0.0
    %2781 = vmatpush2.msra.mxu0 0.0
    %2782 = vmatprep.subr.mxu0 0.0
    %2783 = vmatpush2.msra.mxu0 0.0
    %2784 = vmatprep.subr.mxu0 0.0
    %2785 = vmatpush2.msra.mxu0 0.0
    %2786 = vmatprep.subr.mxu0 0.0
    %2787 = vmatpush2.msra.mxu0 0.0
    %2788 = vmatprep.subr.mxu0 0.0
    %2789 = vmatpush2.msra.mxu0 0.0
    %2790 = vmatprep.subr.mxu0 0.0
    %2791 = vmatpush2.msra.mxu0 0.0
    %2792 = vmatprep.subr.mxu0 0.0
    %2793 = vmatpush2.msra.mxu0 0.0
    %2794 = vmatprep.subr.mxu0 0.0
    %2795 = vmatpush2.msra.mxu0 0.0
    %2796 = vmatprep.subr.mxu0 0.0
    %2797 = vmatpush2.msra.mxu0 0.0
    %2798 = vmatprep.subr.mxu0 0.0
    %2799 = vmatpush2.msra.mxu0 0.0
    %2800 = vmatprep.subr.mxu0 0.0
    %2801 = vmatpush2.msra.mxu0 0.0
    %2802 = vmatprep.subr.mxu0 0.0
    %2803 = vmatpush2.msra.mxu0 0.0
    %2804 = vmatprep.subr.mxu0 0.0
    %2805 = vmatpush2.msra.mxu0 0.0
    %2806 = vmatprep.mubr.f32.mxu0 0.0
    %2807 = vmatmul.mubr.f32.gmra.mxu0 %v2499
    %v2808 = vpop.f32.mrf.mxu0
    %v2809 = vadd.f32 0.0, %v2808
    %v2810 = vpop.f32.mrf.mxu0
    %v2811 = vadd.f32 0.0, %v2810
    %2812 = vdwg.mxu0
    %v2813 = vadd.f32 %v2667, %v2738
    %v2814 = vadd.f32 %v2668, %v2740
    %v2815 = vadd.f32 %v2669, %v2809
    %v2816 = vadd.f32 %v2670, %v2811
    %v2817 = vxor.u32 %v2813, 2147483648
    %v2818 = vmul.f32 %v2817, 1.442695
    %v2819 = vpow.pop %v2818
    %v2820 = vadd.f32 %v2819, 1.0
    %v2821 = vrcp.pop %v2820
    %v2822 = vmul.f32 1.0, %v2821
    %v2823 = vxor.u32 %v2814, 2147483648
    %v2824 = vmul.f32 %v2823, 1.442695
    %v2825 = vpow.pop %v2824
    %v2826 = vadd.f32 %v2825, 1.0
    %v2827 = vrcp.pop %v2826
    %v2828 = vmul.f32 1.0, %v2827
    %v2829 = vtanh.pop %v2815
    %v2830 = vxor.u32 %v2816, 2147483648
    %v2831 = vmul.f32 %v2830, 1.442695
    %v2832 = vpow.pop %v2831
    %v2833 = vadd.f32 %v2832, 1.0
    %v2834 = vrcp.pop %v2833
    %v2835 = vmul.f32 1.0, %v2834
    %v2836 = vmul.f32 %v2828, %v2497
    %v2837 = vmul.f32 %v2822, %v2829
    %v2838 = vadd.f32 %v2836, %v2837
    %v2839 = vtanh.pop %v2838
    %v2840 = vmul.f32 %v2835, %v2839
    %2841 = vmatprep.subr.mxu0 %v191
    %2842 = vmatpush1.msra.mxu0 %v190
    %2843 = vmatprep.subr.mxu0 %v187
    %2844 = vmatpush1.msra.mxu0 %v186
    %2845 = vmatprep.subr.mxu0 %v183
    %2846 = vmatpush1.msra.mxu0 %v182
    %2847 = vmatprep.subr.mxu0 %v179
    %2848 = vmatpush1.msra.mxu0 %v178
    %2849 = vmatprep.subr.mxu0 %v175
    %2850 = vmatpush1.msra.mxu0 %v174
    %2851 = vmatprep.subr.mxu0 %v171
    %2852 = vmatpush1.msra.mxu0 %v170
    %2853 = vmatprep.subr.mxu0 %v167
    %2854 = vmatpush1.msra.mxu0 %v166
    %2855 = vmatprep.subr.mxu0 %v163
    %2856 = vmatpush1.msra.mxu0 %v162
    %2857 = vmatprep.subr.mxu0 %v159
    %2858 = vmatpush1.msra.mxu0 %v158
    %2859 = vmatprep.subr.mxu0 %v155
    %2860 = vmatpush1.msra.mxu0 %v154
    %2861 = vmatprep.subr.mxu0 %v151
    %2862 = vmatpush1.msra.mxu0 %v150
    %2863 = vmatprep.subr.mxu0 %v147
    %2864 = vmatpush1.msra.mxu0 %v146
    %2865 = vmatprep.subr.mxu0 %v143
    %2866 = vmatpush1.msra.mxu0 %v142
    %2867 = vmatprep.subr.mxu0 %v139
    %2868 = vmatpush1.msra.mxu0 %v138
    %2869 = vmatprep.subr.mxu0 %v135
    %2870 = vmatpush1.msra.mxu0 %v134
    %2871 = vmatprep.subr.mxu0 %v131
    %2872 = vmatpush1.msra.mxu0 %v130
    %2873 = vmatprep.subr.mxu0 %v255
    %2874 = vmatpush2.msra.mxu0 %v254
    %2875 = vmatprep.subr.mxu0 %v251
    %2876 = vmatpush2.msra.mxu0 %v250
    %2877 = vmatprep.subr.mxu0 %v247
    %2878 = vmatpush2.msra.mxu0 %v246
    %2879 = vmatprep.subr.mxu0 %v243
    %2880 = vmatpush2.msra.mxu0 %v242
    %2881 = vmatprep.subr.mxu0 %v239
    %2882 = vmatpush2.msra.mxu0 %v238
    %2883 = vmatprep.subr.mxu0 %v235
    %2884 = vmatpush2.msra.mxu0 %v234
    %2885 = vmatprep.subr.mxu0 %v231
    %2886 = vmatpush2.msra.mxu0 %v230
    %2887 = vmatprep.subr.mxu0 %v227
    %2888 = vmatpush2.msra.mxu0 %v226
    %2889 = vmatprep.subr.mxu0 %v223
    %2890 = vmatpush2.msra.mxu0 %v222
    %2891 = vmatprep.subr.mxu0 %v219
    %2892 = vmatpush2.msra.mxu0 %v218
    %2893 = vmatprep.subr.mxu0 %v215
    %2894 = vmatpush2.msra.mxu0 %v214
    %2895 = vmatprep.subr.mxu0 %v211
    %2896 = vmatpush2.msra.mxu0 %v210
    %2897 = vmatprep.subr.mxu0 %v207
    %2898 = vmatpush2.msra.mxu0 %v206
    %2899 = vmatprep.subr.mxu0 %v203
    %2900 = vmatpush2.msra.mxu0 %v202
    %2901 = vmatprep.subr.mxu0 %v199
    %2902 = vmatpush2.msra.mxu0 %v198
    %2903 = vmatprep.subr.mxu0 %v195
    %2904 = vmatpush2.msra.mxu0 %v194
    %2905 = vmatprep.mubr.f32.mxu0 %v2665
    %2906 = vmatmul.mubr.f32.gmra.mxu0 %v2840
    %v2907 = vpop.f32.mrf.mxu0
    %v2908 = vadd.f32 %v263, %v2907
    %v2909 = vpop.f32.mrf.mxu0
    %v2910 = vadd.f32 %v267, %v2909
    %2911 = vdwg.mxu0
    %2912 = vmatprep.subr.mxu0 %v193
    %2913 = vmatpush1.msra.mxu0 %v192
    %2914 = vmatprep.subr.mxu0 %v189
    %2915 = vmatpush1.msra.mxu0 %v188
    %2916 = vmatprep.subr.mxu0 %v185
    %2917 = vmatpush1.msra.mxu0 %v184
    %2918 = vmatprep.subr.mxu0 %v181
    %2919 = vmatpush1.msra.mxu0 %v180
    %2920 = vmatprep.subr.mxu0 %v177
    %2921 = vmatpush1.msra.mxu0 %v176
    %2922 = vmatprep.subr.mxu0 %v173
    %2923 = vmatpush1.msra.mxu0 %v172
    %2924 = vmatprep.subr.mxu0 %v169
    %2925 = vmatpush1.msra.mxu0 %v168
    %2926 = vmatprep.subr.mxu0 %v165
    %2927 = vmatpush1.msra.mxu0 %v164
    %2928 = vmatprep.subr.mxu0 %v161
    %2929 = vmatpush1.msra.mxu0 %v160
    %2930 = vmatprep.subr.mxu0 %v157
    %2931 = vmatpush1.msra.mxu0 %v156
    %2932 = vmatprep.subr.mxu0 %v153
    %2933 = vmatpush1.msra.mxu0 %v152
    %2934 = vmatprep.subr.mxu0 %v149
    %2935 = vmatpush1.msra.mxu0 %v148
    %2936 = vmatprep.subr.mxu0 %v145
    %2937 = vmatpush1.msra.mxu0 %v144
    %2938 = vmatprep.subr.mxu0 %v141
    %2939 = vmatpush1.msra.mxu0 %v140
    %2940 = vmatprep.subr.mxu0 %v137
    %2941 = vmatpush1.msra.mxu0 %v136
    %2942 = vmatprep.subr.mxu0 %v133
    %2943 = vmatpush1.msra.mxu0 %v132
    %2944 = vmatprep.subr.mxu0 %v257
    %2945 = vmatpush2.msra.mxu0 %v256
    %2946 = vmatprep.subr.mxu0 %v253
    %2947 = vmatpush2.msra.mxu0 %v252
    %2948 = vmatprep.subr.mxu0 %v249
    %2949 = vmatpush2.msra.mxu0 %v248
    %2950 = vmatprep.subr.mxu0 %v245
    %2951 = vmatpush2.msra.mxu0 %v244
    %2952 = vmatprep.subr.mxu0 %v241
    %2953 = vmatpush2.msra.mxu0 %v240
    %2954 = vmatprep.subr.mxu0 %v237
    %2955 = vmatpush2.msra.mxu0 %v236
    %2956 = vmatprep.subr.mxu0 %v233
    %2957 = vmatpush2.msra.mxu0 %v232
    %2958 = vmatprep.subr.mxu0 %v229
    %2959 = vmatpush2.msra.mxu0 %v228
    %2960 = vmatprep.subr.mxu0 %v225
    %2961 = vmatpush2.msra.mxu0 %v224
    %2962 = vmatprep.subr.mxu0 %v221
    %2963 = vmatpush2.msra.mxu0 %v220
    %2964 = vmatprep.subr.mxu0 %v217
    %2965 = vmatpush2.msra.mxu0 %v216
    %2966 = vmatprep.subr.mxu0 %v213
    %2967 = vmatpush2.msra.mxu0 %v212
    %2968 = vmatprep.subr.mxu0 %v209
    %2969 = vmatpush2.msra.mxu0 %v208
    %2970 = vmatprep.subr.mxu0 %v205
    %2971 = vmatpush2.msra.mxu0 %v204
    %2972 = vmatprep.subr.mxu0 %v201
    %2973 = vmatpush2.msra.mxu0 %v200
    %2974 = vmatprep.subr.mxu0 %v197
    %2975 = vmatpush2.msra.mxu0 %v196
    %2976 = vmatprep.mubr.f32.mxu0 %v2665
    %2977 = vmatmul.mubr.f32.gmra.mxu0 %v2840
    %v2978 = vpop.f32.mrf.mxu0
    %v2979 = vadd.f32 %v271, %v2978
    %v2980 = vpop.f32.mrf.mxu0
    %v2981 = vadd.f32 %v275, %v2980
    %2982 = vdwg.mxu0
    %v2983 = vxor.u32 %v2908, 2147483648
    %v2984 = vmul.f32 %v2983, 1.442695
    %v2985 = vpow.pop %v2984
    %v2986 = vadd.f32 %v2985, 1.0
    %v2987 = vrcp.pop %v2986
    %v2988 = vmul.f32 1.0, %v2987
    %v2989 = vxor.u32 %v2910, 2147483648
    %v2990 = vmul.f32 %v2989, 1.442695
    %v2991 = vpow.pop %v2990
    %v2992 = vadd.f32 %v2991, 1.0
    %v2993 = vrcp.pop %v2992
    %v2994 = vmul.f32 1.0, %v2993
    %v2995 = vtanh.pop %v2979
    %v2996 = vxor.u32 %v2981, 2147483648
    %v2997 = vmul.f32 %v2996, 1.442695
    %v2998 = vpow.pop %v2997
    %v2999 = vadd.f32 %v2998, 1.0
    %v3000 = vrcp.pop %v2999
    %v3001 = vmul.f32 1.0, %v3000
    %v3002 = vmul.f32 %v2994, %v2663
    %v3003 = vmul.f32 %v2988, %v2995
    %v3004 = vadd.f32 %v3002, %v3003
    %v3005 = vtanh.pop %v3004
    %v3006 = vmul.f32 %v3001, %v3005
    %v3007 = vld [vmem:[%s4] sm:$0xff]
    %v3008 = vld [vmem:[%s4 + $0x8] sm:$0xff]
    %v3009 = vld [vmem:[%s4 + $0x10] sm:$0xff]
    %v3010 = vld [vmem:[%s4 + $0x18] sm:$0xff]
    %v3011 = vld [vmem:[%s4 + $0x20] sm:$0xff]
    %v3012 = vld [vmem:[%s4 + $0x28] sm:$0xff]
    %v3013 = vld [vmem:[%s4 + $0x30] sm:$0xff]
    %v3014 = vld [vmem:[%s4 + $0x38] sm:$0xff]
    %v3015 = vld [vmem:[%s4 + $0x40] sm:$0xff]
    %v3016 = vld [vmem:[%s4 + $0x48] sm:$0xff]
    %v3017 = vld [vmem:[%s4 + $0x50] sm:$0xff]
    %v3018 = vld [vmem:[%s4 + $0x58] sm:$0xff]
    %v3019 = vld [vmem:[%s4 + $0x60] sm:$0xff]
    %v3020 = vld [vmem:[%s4 + $0x68] sm:$0xff]
    %v3021 = vld [vmem:[%s4 + $0x70] sm:$0xff]
    %v3022 = vld [vmem:[%s4 + $0x78] sm:$0xff]
    %v3023 = vld [vmem:[#allocation2] sm:$0x1]
    %v3025 = vlaneseq
    %v3026 = vshrl.u32 %v3025, 7
    %v3027 = vsub.s32 0, %v3026
    %v3028 = vrot.slane %v3023, %v3027
    %3030 = vmatprep.subr.mxu0 0.0
    %3031 = vmatpush1.msra.mxu0 %v3022
    %3032 = vmatprep.subr.mxu0 0.0
    %3033 = vmatpush1.msra.mxu0 %v3021
    %3034 = vmatprep.subr.mxu0 0.0
    %3035 = vmatpush1.msra.mxu0 %v3020
    %3036 = vmatprep.subr.mxu0 0.0
    %3037 = vmatpush1.msra.mxu0 %v3019
    %3038 = vmatprep.subr.mxu0 0.0
    %3039 = vmatpush1.msra.mxu0 %v3018
    %3040 = vmatprep.subr.mxu0 0.0
    %3041 = vmatpush1.msra.mxu0 %v3017
    %3042 = vmatprep.subr.mxu0 0.0
    %3043 = vmatpush1.msra.mxu0 %v3016
    %3044 = vmatprep.subr.mxu0 0.0
    %3045 = vmatpush1.msra.mxu0 %v3015
    %3046 = vmatprep.subr.mxu0 0.0
    %3047 = vmatpush1.msra.mxu0 %v3014
    %3048 = vmatprep.subr.mxu0 0.0
    %3049 = vmatpush1.msra.mxu0 %v3013
    %3050 = vmatprep.subr.mxu0 0.0
    %3051 = vmatpush1.msra.mxu0 %v3012
    %3052 = vmatprep.subr.mxu0 0.0
    %3053 = vmatpush1.msra.mxu0 %v3011
    %3054 = vmatprep.subr.mxu0 0.0
    %3055 = vmatpush1.msra.mxu0 %v3010
    %3056 = vmatprep.subr.mxu0 0.0
    %3057 = vmatpush1.msra.mxu0 %v3009
    %3058 = vmatprep.subr.mxu0 0.0
    %3059 = vmatpush1.msra.mxu0 %v3008
    %3060 = vmatprep.subr.mxu0 0.0
    %3061 = vmatpush1.msra.mxu0 %v3007
    %3062 = vmatprep.subr.mxu0 0.0
    %3063 = vmatpush2.msra.mxu0 0.0
    %3064 = vmatprep.subr.mxu0 0.0
    %3065 = vmatpush2.msra.mxu0 0.0
    %3066 = vmatprep.subr.mxu0 0.0
    %3067 = vmatpush2.msra.mxu0 0.0
    %3068 = vmatprep.subr.mxu0 0.0
    %3069 = vmatpush2.msra.mxu0 0.0
    %3070 = vmatprep.subr.mxu0 0.0
    %3071 = vmatpush2.msra.mxu0 0.0
    %3072 = vmatprep.subr.mxu0 0.0
    %3073 = vmatpush2.msra.mxu0 0.0
    %3074 = vmatprep.subr.mxu0 0.0
    %3075 = vmatpush2.msra.mxu0 0.0
    %3076 = vmatprep.subr.mxu0 0.0
    %3077 = vmatpush2.msra.mxu0 0.0
    %3078 = vmatprep.subr.mxu0 0.0
    %3079 = vmatpush2.msra.mxu0 0.0
    %3080 = vmatprep.subr.mxu0 0.0
    %3081 = vmatpush2.msra.mxu0 0.0
    %3082 = vmatprep.subr.mxu0 0.0
    %3083 = vmatpush2.msra.mxu0 0.0
    %3084 = vmatprep.subr.mxu0 0.0
    %3085 = vmatpush2.msra.mxu0 0.0
    %3086 = vmatprep.subr.mxu0 0.0
    %3087 = vmatpush2.msra.mxu0 0.0
    %3088 = vmatprep.subr.mxu0 0.0
    %3089 = vmatpush2.msra.mxu0 0.0
    %3090 = vmatprep.subr.mxu0 0.0
    %3091 = vmatpush2.msra.mxu0 0.0
    %3092 = vmatprep.subr.mxu0 0.0
    %3093 = vmatpush2.msra.mxu0 0.0
    %3094 = vmatprep.mubr.f32.mxu0 0.0
    %3095 = vmatmul.mubr.f32.gmra.mxu0 %v3006
    %v3096 = vpop.f32.mrf.mxu0
    %v3097 = vadd.f32 %v3028, %v3096
    %v3098 = vpop.f32.mrf.mxu0
    %3099 = vdwg.mxu0
    %vm3100 = vcmask 7168
    %3101 = vst.msk [vmem:[%s6] sm:$0xff] %vm3100, %v3097
    // Predicated region
    $region38: #{tpu_custom_call.1} parent=1 // pred_check
      _
    $region39: #{tpu_custom_call.1} parent=1 // pred_check_branch
      %3103 = sbr.rel (0) target = $region41
    $region40: #{tpu_custom_call.1} parent=1 // pred_region
      _
    $region41: #{tpu_custom_call.1} parent=1 // pred_fallthru
      _
    // Predicated region
    $region42: #{tpu_custom_call.1} parent=1 // pred_check
      _
    $region43: #{tpu_custom_call.1} parent=1 // pred_check_branch
      %3105 = sbr.rel (0) target = $region45
    $region44: #{tpu_custom_call.1} parent=1 // pred_region
      _
    $region45: #{tpu_custom_call.1} parent=1 // pred_fallthru
      _
    %3106 = vsyncpa [#allocation4], 1
    %3107 = vsyncpa [#allocation6], 1

</llo_original>
